<compile_context>
chip_gen: v5e
topology: v5e:2x2
jax: 0.10.0
libtpu: 0.0.40
codegen_flags: <defaults>
</compile_context>

<pallas_src>
import jax
import jax.numpy as jnp
from jax.experimental import pallas as pl
from jax.experimental.pallas import tpu as pltpu

NEG_SLOPE = 0.2   # GATConv default LeakyReLU negative slope
LANE = 128        # TPU lane width


def _round_up(x, m):
    return ((x + m - 1) // m) * m


def _fold_gat_weight(w_g, a_src, a_dst, n_agents, in_stride, gpad):
    """Block-diag GAT weight that also emits the full edge-logit lane slab.

    Input lanes  : node j's (un-padded) features at [j*in_stride : j*in_stride+gin]
    Output lanes : z_j        at [j*gpad : j*gpad+gout]      (128-aligned blocks)
                   e_{i<-j}   at [na*gpad + i*na + j]
    with e_{i<-j} = z_i . a_dst + z_j . a_src   (pre-LeakyReLU GAT logits).
    """
    gin, gout = w_g.shape
    na = n_agents
    K = na * in_stride
    N = na * gpad + na * na
    col_src = (w_g @ a_src.reshape(gout, 1))[:, 0]   # [gin]
    col_dst = (w_g @ a_dst.reshape(gout, 1))[:, 0]   # [gin]
    w = jnp.zeros((K, N), jnp.float32)
    for j in range(na):
        r = j * in_stride
        w = w.at[r:r + gin, j * gpad:j * gpad + gout].set(w_g)
        for i in range(na):
            c = na * gpad + i * na + j
            w = w.at[r:r + gin, c].add(col_src)          # source-node term
    for i in range(na):
        r = i * in_stride
        for j in range(na):
            c = na * gpad + i * na + j
            w = w.at[r:r + gin, c].add(col_dst)          # destination-node term
    return w


def _make_kernel(n_agents, gpad1, gpad2):
    na = n_agents
    nn = na * na

    def kernel(xg_ref, adj_ref,
               wenc_ref, benc_ref,
               wg1_ref, bg1_ref,
               wg2_ref, bg2_ref,
               wa1_ref, ba1_ref, wa2_ref, ba2_ref,
               out_ref):
        adj = adj_ref[...]                                      # [tb, na*na]

        # ---- EncoderByType: per-node class routing folded host-side into one
        #      block-diagonal weight -> single MXU matmul + ReLU (act_encoding).
        h = jnp.dot(xg_ref[...], wenc_ref[...],
                    preferred_element_type=jnp.float32) + benc_ref[...]
        h = jnp.maximum(h, 0.0)                                 # [tb, na*enc]

        def gat_layer(hin, w_ref, b_ref, gpad):
            zw = na * gpad
            # One MXU dispatch emits the na 128-aligned z_j blocks AND the
            # [tb, na*na] edge-logit slab (a_src/a_dst folded into the weight):
            # no per-edge VPU logit math, no cross-lane e_src/e_dst reductions.
            zfull = jnp.dot(hin, w_ref[...],
                            preferred_element_type=jnp.float32)  # [tb, zw+nn]
            e = zfull[:, zw:zw + nn]                             # [tb, na*na]
            e = jnp.where(e > 0.0, e, NEG_SLOPE * e)             # LeakyReLU
            e = jnp.where(adj > 0.0, e, -1e30)                   # single mask;
            bias = b_ref[...]                                    # [1, gpad] 0-padded
            outs = []
            for i in range(na):                                  # destination node i
                e_i = e[:, i * na:(i + 1) * na]                  # its na in-edges
                m_i = jnp.max(e_i, axis=-1, keepdims=True)
                p_i = jnp.exp(e_i - m_i)
                inv = pl.reciprocal(jnp.sum(p_i, axis=-1, keepdims=True),
                                    approx=True)                 # EUP slot
                alpha = p_i * inv                                # [tb, na]
                # whole-vreg aggregation over 128-lane-padded z blocks
                acc = alpha[:, 0:1] * zfull[:, 0:gpad]
                for j in range(1, na):
                    acc = acc + alpha[:, j:j + 1] * zfull[:, j * gpad:(j + 1) * gpad]
                outs.append(jnp.maximum(acc + bias, 0.0))        # act_comms (ReLU)
            return jnp.concatenate(outs, axis=-1)                # [tb, na*gpad]

        g1 = gat_layer(h, wg1_ref, bg1_ref, gpad1)
        g2 = gat_layer(g1, wg2_ref, bg2_ref, gpad2)

        # ---- x[::n_agents] == node 0 of each graph row; full_receptive_field
        #      concat(g1, g2) built as one whole-vreg slab -> single W_a1 dot.
        feat0 = jnp.concatenate([g1[:, :gpad1], g2[:, :gpad2]], axis=-1)
        a1 = jnp.dot(feat0, wa1_ref[...],
                     preferred_element_type=jnp.float32) + ba1_ref[...]
        a1 = jnp.maximum(a1, 0.0)                                # act_action
        logits = jnp.dot(a1, wa2_ref[...],
                         preferred_element_type=jnp.float32) + ba2_ref[...]
        out_ref[...] = logits.astype(out_ref.dtype)              # lane-dense [tb, 128]

    return kernel


def heteromagnet_forward(x, edge_index, node_types, params, *,
                         n_type, n_agents, dim_actions, max_tile_bs=256):
    """Graph-major layout, folded block-diag weights, batch-parallel grid."""
    na = n_agents
    n_nodes = x.shape[0]
    bs = n_nodes // na
    in_size = x.shape[1] - n_type
    enc = params['w_enc'].shape[-1]
    g1c = params['w_g1'].shape[-1]
    g2c = params['w_g2'].shape[-1]
    hidden = params['w_a1'].shape[-1]
    gpad1 = _round_up(g1c, LANE)
    gpad2 = _round_up(g2c, LANE)

    # graph-major layout: one row per graph, node features side by side on lanes
    xg = x[:, :in_size].reshape(bs, na * in_size)

    # per-graph adjacency lane slab: adj[g, i*na+j] = 1 iff edge j->i, + self loops
    src, dst = edge_index
    adj3 = jnp.zeros((bs, na, na), jnp.float32)
    adj3 = adj3.at[dst // na, dst % na, src % na].set(1.0)
    diag = jnp.arange(na)
    adj3 = adj3.at[:, diag, diag].set(1.0)                       # GATConv self loops
    adjg = adj3.reshape(bs, na * na)

    # fold static class routing / weight sharing / attention vectors host-side
    nt = [int(t) for t in node_types]
    w_enc_blk = jax.scipy.linalg.block_diag(*[params['w_enc'][c] for c in nt])
    b_enc_blk = jnp.concatenate([params['b_enc'][c] for c in nt], axis=-1)
    w_g1_full = _fold_gat_weight(params['w_g1'], params['a_src1'], params['a_dst1'],
                                 na, in_stride=enc, gpad=gpad1)
    w_g2_full = _fold_gat_weight(params['w_g2'], params['a_src2'], params['a_dst2'],
                                 na, in_stride=gpad1, gpad=gpad2)
    b_g1_pad = jnp.zeros((1, gpad1), jnp.float32).at[:, :g1c].set(params['b_g1'])
    b_g2_pad = jnp.zeros((1, gpad2), jnp.float32).at[:, :g2c].set(params['b_g2'])

    # actor head: fuse the two receptive-field dots into one K=gpad1+gpad2 dot
    w_a1_pad = jnp.zeros((gpad1 + gpad2, hidden), jnp.float32)
    w_a1_pad = w_a1_pad.at[:g1c, :].set(params['w_a1'][:g1c])
    w_a1_pad = w_a1_pad.at[gpad1:gpad1 + g2c, :].set(params['w_a1'][g1c:g1c + g2c])

    # lane-dense actor output: pad action columns to a full 128-lane slab
    out_pad = _round_up(max(dim_actions, 1), LANE)
    w_a2_pad = jnp.zeros((hidden, out_pad), jnp.float32).at[:, :dim_actions].set(params['w_a2'])
    b_a2_pad = jnp.zeros((1, out_pad), jnp.float32).at[:, :dim_actions].set(params['b_a2'])

    # batch tiling: 8-aligned sublane tiles, >=2 grid steps when bs allows (v7x)
    bs8 = _round_up(bs, 8)
    tile_bs = min(max_tile_bs, max(8, _round_up(pl.cdiv(bs8, 2), 8)))
    bs_p = _round_up(bs8, tile_bs)
    if bs_p != bs:
        pad = bs_p - bs
        xg = jnp.concatenate([xg, jnp.zeros((pad, na * in_size), jnp.float32)], axis=0)
        adjg = jnp.concatenate([adjg, jnp.ones((pad, na * na), jnp.float32)], axis=0)

    def const_spec(a):
        return pl.BlockSpec(a.shape, lambda b: (0,) * a.ndim)

    consts = (w_enc_blk, b_enc_blk,
              w_g1_full, b_g1_pad,
              w_g2_full, b_g2_pad,
              w_a1_pad, params['b_a1'], w_a2_pad, b_a2_pad)

    in_specs = ([pl.BlockSpec((tile_bs, na * in_size), lambda b: (b, 0)),
                 pl.BlockSpec((tile_bs, na * na), lambda b: (b, 0))]
                + [const_spec(a) for a in consts])

    out = pl.pallas_call(
        _make_kernel(na, gpad1, gpad2),
        out_shape=jax.ShapeDtypeStruct((bs_p, out_pad), jnp.float32),
        grid_spec=pltpu.PrefetchScalarGridSpec(
            num_scalar_prefetch=0,
            grid=(bs_p // tile_bs,),
            in_specs=in_specs,
            out_specs=pl.BlockSpec((tile_bs, out_pad), lambda b: (b, 0)),
        ),
        compiler_params=pltpu.CompilerParams(
            dimension_semantics=("parallel",),
            vmem_limit_bytes=32 * 1024 * 1024),
    )(xg, adjg, *consts)

    return out[:bs, :dim_actions]


def heteromagnet_reference(x, edge_index, node_types, params, *,
                           n_type, n_agents, dim_actions):
    """Pure-JAX reference mirroring the PyTorch ACTOR forward (for parity)."""
    na = n_agents
    N = x.shape[0]
    bs = N // na
    in_size = x.shape[1] - n_type
    feats = x[:, :in_size]
    nt = jnp.asarray([int(t) for t in node_types] * bs, jnp.int32)
    w_enc = params['w_enc'][nt]
    b_enc = params['b_enc'][nt][:, 0, :]
    h = jax.nn.relu(jnp.einsum('ni,nio->no', feats, w_enc) + b_enc)

    src, dst = edge_index
    A = jnp.zeros((N, N), jnp.float32).at[dst, src].set(1.0)
    A = A.at[jnp.arange(N), jnp.arange(N)].set(1.0)

    def gat(hin, w, a_src, a_dst, b):
        z = hin @ w
        es = jnp.sum(z * a_src, axis=-1)
        ed = jnp.sum(z * a_dst, axis=-1)
        e = ed[:, None] + es[None, :]
        e = jnp.where(e > 0, e, NEG_SLOPE * e)
        e = jnp.where(A > 0, e, -jnp.inf)
        alpha = jax.nn.softmax(e, axis=-1)
        return jax.nn.relu(alpha @ z + b)

    g1 = gat(h, params['w_g1'], params['a_src1'], params['a_dst1'], params['b_g1'])
    g2 = gat(g1, params['w_g2'], params['a_src2'], params['a_dst2'], params['b_g2'])
    feat0 = jnp.concatenate([g1, g2], axis=-1)[::na]
    a1 = jax.nn.relu(feat0 @ params['w_a1'] + params['b_a1'])
    return a1 @ params['w_a2'] + params['b_a2']


def init_params(key, *, n_classes, in_size, enc, g1, g2, hidden, dim_actions):
    ks = jax.random.split(key, 12)

    def w(k, shape):
        return jax.random.normal(k, shape, jnp.float32) * 0.1

    return dict(
        w_enc=w(ks[0], (n_classes, in_size, enc)),
        b_enc=w(ks[1], (n_classes, 1, enc)),
        w_g1=w(ks[2], (enc, g1)), a_src1=w(ks[3], (1, g1)),
        a_dst1=w(ks[4], (1, g1)), b_g1=w(ks[5], (1, g1)),
        w_g2=w(ks[6], (g1, g2)), a_src2=w(ks[7], (1, g2)),
        a_dst2=w(ks[8], (1, g2)), b_g2=w(ks[9], (1, g2)),
        w_a1=w(ks[10], (g1 + g2, hidden)),
        b_a1=jnp.zeros((1, hidden), jnp.float32),
        w_a2=w(ks[11], (hidden, dim_actions)),
        b_a2=jnp.zeros((1, dim_actions), jnp.float32),
    )


if __name__ == "__main__":
    key = jax.random.PRNGKey(0)

    node_types = [0, 0, 1, 1, 1]        # 5 agents, 2 node classes
    n_agents, n_type = 5, 2
    bs = 2                              # batch with 2 graphs
    in_size, enc, g1, g2 = 10, 32, 32, 32
    hidden, dim_actions = 32, 4
    n_nodes = bs * n_agents

    kx, kp = jax.random.split(key)
    feats = jax.random.normal(kx, (n_nodes, in_size), jnp.float32)
    onehot = jax.nn.one_hot(jnp.tile(jnp.asarray(node_types, jnp.int32), bs),
                            n_type, dtype=jnp.float32)
    x = jnp.concatenate([feats, onehot], axis=-1)     # [N, in_size + n_type] = [10, 12]

    # fully connected (no self edges) within each graph of n_agents nodes
    src, dst = [], []
    for g in range(bs):
        for i in range(n_agents):
            for j in range(n_agents):
                if i != j:
                    src.append(g * n_agents + j)
                    dst.append(g * n_agents + i)
    edge_index = jnp.asarray([src, dst], jnp.int32)   # [2, 40]

    params = init_params(kp, n_classes=n_type, in_size=in_size, enc=enc,
                         g1=g1, g2=g2, hidden=hidden, dim_actions=dim_actions)

    out = heteromagnet_forward(x, edge_index, node_types, params,
                               n_type=n_type, n_agents=n_agents,
                               dim_actions=dim_actions)
    jax.block_until_ready(out)

    ref = heteromagnet_reference(x, edge_index, node_types, params,
                                 n_type=n_type, n_agents=n_agents,
                                 dim_actions=dim_actions)

    assert out.shape == (bs, dim_actions) and out.dtype == jnp.float32
    assert bool(jnp.all(jnp.isfinite(out)))
    # approx reciprocal in the softmax denominator -> loose tolerance
    assert bool(jnp.allclose(out, ref, rtol=5e-2, atol=1e-3))
    print("KERNEL_OK")
</pallas_src>

<mosaic_0001>
module attributes {stable_mosaic.version = 11 : i64} {
  func.func @kernel(%arg0: i32, %arg1: memref<8x50xf32, #tpu.memory_space<vmem>>, %arg2: memref<8x25xf32, #tpu.memory_space<vmem>>, %arg3: memref<50x160xf32, #tpu.memory_space<vmem>>, %arg4: memref<1x160xf32, #tpu.memory_space<vmem>>, %arg5: memref<160x665xf32, #tpu.memory_space<vmem>>, %arg6: memref<1x128xf32, #tpu.memory_space<vmem>>, %arg7: memref<640x665xf32, #tpu.memory_space<vmem>>, %arg8: memref<1x128xf32, #tpu.memory_space<vmem>>, %arg9: memref<256x32xf32, #tpu.memory_space<vmem>>, %arg10: memref<1x32xf32, #tpu.memory_space<vmem>>, %arg11: memref<32x128xf32, #tpu.memory_space<vmem>>, %arg12: memref<1x128xf32, #tpu.memory_space<vmem>>, %arg13: memref<8x128xf32, #tpu.memory_space<vmem>>) attributes {dimension_semantics = [#tpu.dimension_semantics<parallel>], iteration_bounds = array<i64: 1>, scalar_prefetch = 0 : i64, scratch_operands = 0 : i64, tpu.core_type = #tpu.core_type<tc>, window_params = [{transform_indices = @transform_0, window_bounds = array<i64: 8, 50>}, {transform_indices = @transform_1, window_bounds = array<i64: 8, 25>}, {pipeline_mode = #tpu.pipeline_mode<synchronous>, transform_indices = @transform_2, window_bounds = array<i64: 50, 160>}, {pipeline_mode = #tpu.pipeline_mode<synchronous>, transform_indices = @transform_3, window_bounds = array<i64: 1, 160>}, {pipeline_mode = #tpu.pipeline_mode<synchronous>, transform_indices = @transform_4, window_bounds = array<i64: 160, 665>}, {pipeline_mode = #tpu.pipeline_mode<synchronous>, transform_indices = @transform_5, window_bounds = array<i64: 1, 128>}, {pipeline_mode = #tpu.pipeline_mode<synchronous>, transform_indices = @transform_6, window_bounds = array<i64: 640, 665>}, {pipeline_mode = #tpu.pipeline_mode<synchronous>, transform_indices = @transform_7, window_bounds = array<i64: 1, 128>}, {pipeline_mode = #tpu.pipeline_mode<synchronous>, transform_indices = @transform_8, window_bounds = array<i64: 256, 32>}, {pipeline_mode = #tpu.pipeline_mode<synchronous>, transform_indices = @transform_9, window_bounds = array<i64: 1, 32>}, {pipeline_mode = #tpu.pipeline_mode<synchronous>, transform_indices = @transform_10, window_bounds = array<i64: 32, 128>}, {pipeline_mode = #tpu.pipeline_mode<synchronous>, transform_indices = @transform_11, window_bounds = array<i64: 1, 128>}, {transform_indices = @transform_12, window_bounds = array<i64: 8, 128>}]} {
    %c0 = arith.constant 0 : index
    %c0_0 = arith.constant 0 : index
    %0 = vector.load %arg2[%c0, %c0_0] : memref<8x25xf32, #tpu.memory_space<vmem>>, vector<8x25xf32>
    %c0_1 = arith.constant 0 : index
    %c0_2 = arith.constant 0 : index
    %1 = vector.load %arg1[%c0_1, %c0_2] : memref<8x50xf32, #tpu.memory_space<vmem>>, vector<8x50xf32>
    %c0_3 = arith.constant 0 : index
    %c0_4 = arith.constant 0 : index
    %2 = vector.load %arg3[%c0_3, %c0_4] : memref<50x160xf32, #tpu.memory_space<vmem>>, vector<50x160xf32>
    %cst = arith.constant dense<0.000000e+00> : vector<8x160xf32>
    %3 = tpu.matmul %1, %2, %cst {dimension_numbers = #tpu.dot_dimension_numbers<[1], [0], [0], [1], [0, 0, 1, 1], [], []>} : vector<8x50xf32>, vector<50x160xf32>, vector<8x160xf32> -> vector<8x160xf32>
    %c0_5 = arith.constant 0 : index
    %c0_6 = arith.constant 0 : index
    %4 = vector.load %arg4[%c0_5, %c0_6] : memref<1x160xf32, #tpu.memory_space<vmem>>, vector<1x160xf32>
    %5 = vector.broadcast %4 : vector<1x160xf32> to vector<8x160xf32>
    %6 = arith.addf %3, %5 : vector<8x160xf32>
    %cst_7 = arith.constant 0.000000e+00 : f32
    %7 = vector.broadcast %cst_7 : f32 to vector<8x160xf32>
    %8 = arith.maximumf %6, %7 : vector<8x160xf32>
    %c0_8 = arith.constant 0 : index
    %c0_9 = arith.constant 0 : index
    %9 = vector.load %arg5[%c0_8, %c0_9] : memref<160x665xf32, #tpu.memory_space<vmem>>, vector<160x665xf32>
    %cst_10 = arith.constant dense<0.000000e+00> : vector<8x665xf32>
    %10 = tpu.matmul %8, %9, %cst_10 {dimension_numbers = #tpu.dot_dimension_numbers<[1], [0], [0], [1], [0, 0, 1, 1], [], []>} : vector<8x160xf32>, vector<160x665xf32>, vector<8x665xf32> -> vector<8x665xf32>
    %11 = vector.extract_strided_slice %10 {offsets = [0, 640], sizes = [8, 25], strides = [1, 1]} : vector<8x665xf32> to vector<8x25xf32>
    %cst_11 = arith.constant 0.000000e+00 : f32
    %12 = vector.broadcast %cst_11 : f32 to vector<8x25xf32>
    %13 = arith.cmpf ogt, %11, %12 : vector<8x25xf32>
    %cst_12 = arith.constant 2.000000e-01 : f32
    %14 = vector.broadcast %cst_12 : f32 to vector<8x25xf32>
    %15 = arith.mulf %14, %11 : vector<8x25xf32>
    %16 = arith.select %13, %11, %15 : vector<8x25xi1>, vector<8x25xf32>
    %cst_13 = arith.constant 0.000000e+00 : f32
    %17 = vector.broadcast %cst_13 : f32 to vector<8x25xf32>
    %18 = arith.cmpf ogt, %0, %17 : vector<8x25xf32>
    %cst_14 = arith.constant -1.000000e+30 : f32
    %19 = vector.broadcast %cst_14 : f32 to vector<8x25xf32>
    %20 = arith.select %18, %16, %19 : vector<8x25xi1>, vector<8x25xf32>
    %c0_15 = arith.constant 0 : index
    %c0_16 = arith.constant 0 : index
    %21 = vector.load %arg6[%c0_15, %c0_16] : memref<1x128xf32, #tpu.memory_space<vmem>>, vector<1x128xf32>
    %22 = vector.extract_strided_slice %20 {offsets = [0, 0], sizes = [8, 5], strides = [1, 1]} : vector<8x25xf32> to vector<8x5xf32>
    %cst_17 = arith.constant dense<0xFF800000> : vector<8xf32>
    %23 = vector.multi_reduction <maximumf>, %22, %cst_17 [1] : vector<8x5xf32> to vector<8xf32>
    %24 = vector.shape_cast %23 : vector<8xf32> to vector<8x1xf32>
    %25 = vector.broadcast %24 : vector<8x1xf32> to vector<8x5xf32>
    %26 = arith.subf %22, %25 : vector<8x5xf32>
    %27 = math.exp %26 : vector<8x5xf32>
    %cst_18 = arith.constant dense<0.000000e+00> : vector<8xf32>
    %28 = vector.multi_reduction <add>, %27, %cst_18 [1] : vector<8x5xf32> to vector<8xf32>
    %29 = vector.shape_cast %28 : vector<8xf32> to vector<8x1xf32>
    %30 = tpu.reciprocal %29 {approx = true} : vector<8x1xf32> -> vector<8x1xf32>
    %31 = vector.broadcast %30 : vector<8x1xf32> to vector<8x5xf32>
    %32 = arith.mulf %27, %31 : vector<8x5xf32>
    %33 = vector.extract_strided_slice %32 {offsets = [0, 0], sizes = [8, 1], strides = [1, 1]} : vector<8x5xf32> to vector<8x1xf32>
    %34 = vector.extract_strided_slice %10 {offsets = [0, 0], sizes = [8, 128], strides = [1, 1]} : vector<8x665xf32> to vector<8x128xf32>
    %35 = vector.broadcast %33 : vector<8x1xf32> to vector<8x128xf32>
    %36 = arith.mulf %35, %34 : vector<8x128xf32>
    %37 = vector.extract_strided_slice %32 {offsets = [0, 1], sizes = [8, 1], strides = [1, 1]} : vector<8x5xf32> to vector<8x1xf32>
    %38 = vector.extract_strided_slice %10 {offsets = [0, 128], sizes = [8, 128], strides = [1, 1]} : vector<8x665xf32> to vector<8x128xf32>
    %39 = vector.broadcast %37 : vector<8x1xf32> to vector<8x128xf32>
    %40 = arith.mulf %39, %38 : vector<8x128xf32>
    %41 = arith.addf %36, %40 : vector<8x128xf32>
    %42 = vector.extract_strided_slice %32 {offsets = [0, 2], sizes = [8, 1], strides = [1, 1]} : vector<8x5xf32> to vector<8x1xf32>
    %43 = vector.extract_strided_slice %10 {offsets = [0, 256], sizes = [8, 128], strides = [1, 1]} : vector<8x665xf32> to vector<8x128xf32>
    %44 = vector.broadcast %42 : vector<8x1xf32> to vector<8x128xf32>
    %45 = arith.mulf %44, %43 : vector<8x128xf32>
    %46 = arith.addf %41, %45 : vector<8x128xf32>
    %47 = vector.extract_strided_slice %32 {offsets = [0, 3], sizes = [8, 1], strides = [1, 1]} : vector<8x5xf32> to vector<8x1xf32>
    %48 = vector.extract_strided_slice %10 {offsets = [0, 384], sizes = [8, 128], strides = [1, 1]} : vector<8x665xf32> to vector<8x128xf32>
    %49 = vector.broadcast %47 : vector<8x1xf32> to vector<8x128xf32>
    %50 = arith.mulf %49, %48 : vector<8x128xf32>
    %51 = arith.addf %46, %50 : vector<8x128xf32>
    %52 = vector.extract_strided_slice %32 {offsets = [0, 4], sizes = [8, 1], strides = [1, 1]} : vector<8x5xf32> to vector<8x1xf32>
    %53 = vector.extract_strided_slice %10 {offsets = [0, 512], sizes = [8, 128], strides = [1, 1]} : vector<8x665xf32> to vector<8x128xf32>
    %54 = vector.broadcast %52 : vector<8x1xf32> to vector<8x128xf32>
    %55 = arith.mulf %54, %53 : vector<8x128xf32>
    %56 = arith.addf %51, %55 : vector<8x128xf32>
    %57 = vector.broadcast %21 : vector<1x128xf32> to vector<8x128xf32>
    %58 = arith.addf %56, %57 : vector<8x128xf32>
    %cst_19 = arith.constant 0.000000e+00 : f32
    %59 = vector.broadcast %cst_19 : f32 to vector<8x128xf32>
    %60 = arith.maximumf %58, %59 : vector<8x128xf32>
    %61 = vector.extract_strided_slice %20 {offsets = [0, 5], sizes = [8, 5], strides = [1, 1]} : vector<8x25xf32> to vector<8x5xf32>
    %cst_20 = arith.constant dense<0xFF800000> : vector<8xf32>
    %62 = vector.multi_reduction <maximumf>, %61, %cst_20 [1] : vector<8x5xf32> to vector<8xf32>
    %63 = vector.shape_cast %62 : vector<8xf32> to vector<8x1xf32>
    %64 = vector.broadcast %63 : vector<8x1xf32> to vector<8x5xf32>
    %65 = arith.subf %61, %64 : vector<8x5xf32>
    %66 = math.exp %65 : vector<8x5xf32>
    %cst_21 = arith.constant dense<0.000000e+00> : vector<8xf32>
    %67 = vector.multi_reduction <add>, %66, %cst_21 [1] : vector<8x5xf32> to vector<8xf32>
    %68 = vector.shape_cast %67 : vector<8xf32> to vector<8x1xf32>
    %69 = tpu.reciprocal %68 {approx = true} : vector<8x1xf32> -> vector<8x1xf32>
    %70 = vector.broadcast %69 : vector<8x1xf32> to vector<8x5xf32>
    %71 = arith.mulf %66, %70 : vector<8x5xf32>
    %72 = vector.extract_strided_slice %71 {offsets = [0, 0], sizes = [8, 1], strides = [1, 1]} : vector<8x5xf32> to vector<8x1xf32>
    %73 = vector.extract_strided_slice %10 {offsets = [0, 0], sizes = [8, 128], strides = [1, 1]} : vector<8x665xf32> to vector<8x128xf32>
    %74 = vector.broadcast %72 : vector<8x1xf32> to vector<8x128xf32>
    %75 = arith.mulf %74, %73 : vector<8x128xf32>
    %76 = vector.extract_strided_slice %71 {offsets = [0, 1], sizes = [8, 1], strides = [1, 1]} : vector<8x5xf32> to vector<8x1xf32>
    %77 = vector.extract_strided_slice %10 {offsets = [0, 128], sizes = [8, 128], strides = [1, 1]} : vector<8x665xf32> to vector<8x128xf32>
    %78 = vector.broadcast %76 : vector<8x1xf32> to vector<8x128xf32>
    %79 = arith.mulf %78, %77 : vector<8x128xf32>
    %80 = arith.addf %75, %79 : vector<8x128xf32>
    %81 = vector.extract_strided_slice %71 {offsets = [0, 2], sizes = [8, 1], strides = [1, 1]} : vector<8x5xf32> to vector<8x1xf32>
    %82 = vector.extract_strided_slice %10 {offsets = [0, 256], sizes = [8, 128], strides = [1, 1]} : vector<8x665xf32> to vector<8x128xf32>
    %83 = vector.broadcast %81 : vector<8x1xf32> to vector<8x128xf32>
    %84 = arith.mulf %83, %82 : vector<8x128xf32>
    %85 = arith.addf %80, %84 : vector<8x128xf32>
    %86 = vector.extract_strided_slice %71 {offsets = [0, 3], sizes = [8, 1], strides = [1, 1]} : vector<8x5xf32> to vector<8x1xf32>
    %87 = vector.extract_strided_slice %10 {offsets = [0, 384], sizes = [8, 128], strides = [1, 1]} : vector<8x665xf32> to vector<8x128xf32>
    %88 = vector.broadcast %86 : vector<8x1xf32> to vector<8x128xf32>
    %89 = arith.mulf %88, %87 : vector<8x128xf32>
    %90 = arith.addf %85, %89 : vector<8x128xf32>
    %91 = vector.extract_strided_slice %71 {offsets = [0, 4], sizes = [8, 1], strides = [1, 1]} : vector<8x5xf32> to vector<8x1xf32>
    %92 = vector.extract_strided_slice %10 {offsets = [0, 512], sizes = [8, 128], strides = [1, 1]} : vector<8x665xf32> to vector<8x128xf32>
    %93 = vector.broadcast %91 : vector<8x1xf32> to vector<8x128xf32>
    %94 = arith.mulf %93, %92 : vector<8x128xf32>
    %95 = arith.addf %90, %94 : vector<8x128xf32>
    %96 = vector.broadcast %21 : vector<1x128xf32> to vector<8x128xf32>
    %97 = arith.addf %95, %96 : vector<8x128xf32>
    %cst_22 = arith.constant 0.000000e+00 : f32
    %98 = vector.broadcast %cst_22 : f32 to vector<8x128xf32>
    %99 = arith.maximumf %97, %98 : vector<8x128xf32>
    %100 = vector.extract_strided_slice %20 {offsets = [0, 10], sizes = [8, 5], strides = [1, 1]} : vector<8x25xf32> to vector<8x5xf32>
    %cst_23 = arith.constant dense<0xFF800000> : vector<8xf32>
    %101 = vector.multi_reduction <maximumf>, %100, %cst_23 [1] : vector<8x5xf32> to vector<8xf32>
    %102 = vector.shape_cast %101 : vector<8xf32> to vector<8x1xf32>
    %103 = vector.broadcast %102 : vector<8x1xf32> to vector<8x5xf32>
    %104 = arith.subf %100, %103 : vector<8x5xf32>
    %105 = math.exp %104 : vector<8x5xf32>
    %cst_24 = arith.constant dense<0.000000e+00> : vector<8xf32>
    %106 = vector.multi_reduction <add>, %105, %cst_24 [1] : vector<8x5xf32> to vector<8xf32>
    %107 = vector.shape_cast %106 : vector<8xf32> to vector<8x1xf32>
    %108 = tpu.reciprocal %107 {approx = true} : vector<8x1xf32> -> vector<8x1xf32>
    %109 = vector.broadcast %108 : vector<8x1xf32> to vector<8x5xf32>
    %110 = arith.mulf %105, %109 : vector<8x5xf32>
    %111 = vector.extract_strided_slice %110 {offsets = [0, 0], sizes = [8, 1], strides = [1, 1]} : vector<8x5xf32> to vector<8x1xf32>
    %112 = vector.extract_strided_slice %10 {offsets = [0, 0], sizes = [8, 128], strides = [1, 1]} : vector<8x665xf32> to vector<8x128xf32>
    %113 = vector.broadcast %111 : vector<8x1xf32> to vector<8x128xf32>
    %114 = arith.mulf %113, %112 : vector<8x128xf32>
    %115 = vector.extract_strided_slice %110 {offsets = [0, 1], sizes = [8, 1], strides = [1, 1]} : vector<8x5xf32> to vector<8x1xf32>
    %116 = vector.extract_strided_slice %10 {offsets = [0, 128], sizes = [8, 128], strides = [1, 1]} : vector<8x665xf32> to vector<8x128xf32>
    %117 = vector.broadcast %115 : vector<8x1xf32> to vector<8x128xf32>
    %118 = arith.mulf %117, %116 : vector<8x128xf32>
    %119 = arith.addf %114, %118 : vector<8x128xf32>
    %120 = vector.extract_strided_slice %110 {offsets = [0, 2], sizes = [8, 1], strides = [1, 1]} : vector<8x5xf32> to vector<8x1xf32>
    %121 = vector.extract_strided_slice %10 {offsets = [0, 256], sizes = [8, 128], strides = [1, 1]} : vector<8x665xf32> to vector<8x128xf32>
    %122 = vector.broadcast %120 : vector<8x1xf32> to vector<8x128xf32>
    %123 = arith.mulf %122, %121 : vector<8x128xf32>
    %124 = arith.addf %119, %123 : vector<8x128xf32>
    %125 = vector.extract_strided_slice %110 {offsets = [0, 3], sizes = [8, 1], strides = [1, 1]} : vector<8x5xf32> to vector<8x1xf32>
    %126 = vector.extract_strided_slice %10 {offsets = [0, 384], sizes = [8, 128], strides = [1, 1]} : vector<8x665xf32> to vector<8x128xf32>
    %127 = vector.broadcast %125 : vector<8x1xf32> to vector<8x128xf32>
    %128 = arith.mulf %127, %126 : vector<8x128xf32>
    %129 = arith.addf %124, %128 : vector<8x128xf32>
    %130 = vector.extract_strided_slice %110 {offsets = [0, 4], sizes = [8, 1], strides = [1, 1]} : vector<8x5xf32> to vector<8x1xf32>
    %131 = vector.extract_strided_slice %10 {offsets = [0, 512], sizes = [8, 128], strides = [1, 1]} : vector<8x665xf32> to vector<8x128xf32>
    %132 = vector.broadcast %130 : vector<8x1xf32> to vector<8x128xf32>
    %133 = arith.mulf %132, %131 : vector<8x128xf32>
    %134 = arith.addf %129, %133 : vector<8x128xf32>
    %135 = vector.broadcast %21 : vector<1x128xf32> to vector<8x128xf32>
    %136 = arith.addf %134, %135 : vector<8x128xf32>
    %cst_25 = arith.constant 0.000000e+00 : f32
    %137 = vector.broadcast %cst_25 : f32 to vector<8x128xf32>
    %138 = arith.maximumf %136, %137 : vector<8x128xf32>
    %139 = vector.extract_strided_slice %20 {offsets = [0, 15], sizes = [8, 5], strides = [1, 1]} : vector<8x25xf32> to vector<8x5xf32>
    %cst_26 = arith.constant dense<0xFF800000> : vector<8xf32>
    %140 = vector.multi_reduction <maximumf>, %139, %cst_26 [1] : vector<8x5xf32> to vector<8xf32>
    %141 = vector.shape_cast %140 : vector<8xf32> to vector<8x1xf32>
    %142 = vector.broadcast %141 : vector<8x1xf32> to vector<8x5xf32>
    %143 = arith.subf %139, %142 : vector<8x5xf32>
    %144 = math.exp %143 : vector<8x5xf32>
    %cst_27 = arith.constant dense<0.000000e+00> : vector<8xf32>
    %145 = vector.multi_reduction <add>, %144, %cst_27 [1] : vector<8x5xf32> to vector<8xf32>
    %146 = vector.shape_cast %145 : vector<8xf32> to vector<8x1xf32>
    %147 = tpu.reciprocal %146 {approx = true} : vector<8x1xf32> -> vector<8x1xf32>
    %148 = vector.broadcast %147 : vector<8x1xf32> to vector<8x5xf32>
    %149 = arith.mulf %144, %148 : vector<8x5xf32>
    %150 = vector.extract_strided_slice %149 {offsets = [0, 0], sizes = [8, 1], strides = [1, 1]} : vector<8x5xf32> to vector<8x1xf32>
    %151 = vector.extract_strided_slice %10 {offsets = [0, 0], sizes = [8, 128], strides = [1, 1]} : vector<8x665xf32> to vector<8x128xf32>
    %152 = vector.broadcast %150 : vector<8x1xf32> to vector<8x128xf32>
    %153 = arith.mulf %152, %151 : vector<8x128xf32>
    %154 = vector.extract_strided_slice %149 {offsets = [0, 1], sizes = [8, 1], strides = [1, 1]} : vector<8x5xf32> to vector<8x1xf32>
    %155 = vector.extract_strided_slice %10 {offsets = [0, 128], sizes = [8, 128], strides = [1, 1]} : vector<8x665xf32> to vector<8x128xf32>
    %156 = vector.broadcast %154 : vector<8x1xf32> to vector<8x128xf32>
    %157 = arith.mulf %156, %155 : vector<8x128xf32>
    %158 = arith.addf %153, %157 : vector<8x128xf32>
    %159 = vector.extract_strided_slice %149 {offsets = [0, 2], sizes = [8, 1], strides = [1, 1]} : vector<8x5xf32> to vector<8x1xf32>
    %160 = vector.extract_strided_slice %10 {offsets = [0, 256], sizes = [8, 128], strides = [1, 1]} : vector<8x665xf32> to vector<8x128xf32>
    %161 = vector.broadcast %159 : vector<8x1xf32> to vector<8x128xf32>
    %162 = arith.mulf %161, %160 : vector<8x128xf32>
    %163 = arith.addf %158, %162 : vector<8x128xf32>
    %164 = vector.extract_strided_slice %149 {offsets = [0, 3], sizes = [8, 1], strides = [1, 1]} : vector<8x5xf32> to vector<8x1xf32>
    %165 = vector.extract_strided_slice %10 {offsets = [0, 384], sizes = [8, 128], strides = [1, 1]} : vector<8x665xf32> to vector<8x128xf32>
    %166 = vector.broadcast %164 : vector<8x1xf32> to vector<8x128xf32>
    %167 = arith.mulf %166, %165 : vector<8x128xf32>
    %168 = arith.addf %163, %167 : vector<8x128xf32>
    %169 = vector.extract_strided_slice %149 {offsets = [0, 4], sizes = [8, 1], strides = [1, 1]} : vector<8x5xf32> to vector<8x1xf32>
    %170 = vector.extract_strided_slice %10 {offsets = [0, 512], sizes = [8, 128], strides = [1, 1]} : vector<8x665xf32> to vector<8x128xf32>
    %171 = vector.broadcast %169 : vector<8x1xf32> to vector<8x128xf32>
    %172 = arith.mulf %171, %170 : vector<8x128xf32>
    %173 = arith.addf %168, %172 : vector<8x128xf32>
    %174 = vector.broadcast %21 : vector<1x128xf32> to vector<8x128xf32>
    %175 = arith.addf %173, %174 : vector<8x128xf32>
    %cst_28 = arith.constant 0.000000e+00 : f32
    %176 = vector.broadcast %cst_28 : f32 to vector<8x128xf32>
    %177 = arith.maximumf %175, %176 : vector<8x128xf32>
    %178 = vector.extract_strided_slice %20 {offsets = [0, 20], sizes = [8, 5], strides = [1, 1]} : vector<8x25xf32> to vector<8x5xf32>
    %cst_29 = arith.constant dense<0xFF800000> : vector<8xf32>
    %179 = vector.multi_reduction <maximumf>, %178, %cst_29 [1] : vector<8x5xf32> to vector<8xf32>
    %180 = vector.shape_cast %179 : vector<8xf32> to vector<8x1xf32>
    %181 = vector.broadcast %180 : vector<8x1xf32> to vector<8x5xf32>
    %182 = arith.subf %178, %181 : vector<8x5xf32>
    %183 = math.exp %182 : vector<8x5xf32>
    %cst_30 = arith.constant dense<0.000000e+00> : vector<8xf32>
    %184 = vector.multi_reduction <add>, %183, %cst_30 [1] : vector<8x5xf32> to vector<8xf32>
    %185 = vector.shape_cast %184 : vector<8xf32> to vector<8x1xf32>
    %186 = tpu.reciprocal %185 {approx = true} : vector<8x1xf32> -> vector<8x1xf32>
    %187 = vector.broadcast %186 : vector<8x1xf32> to vector<8x5xf32>
    %188 = arith.mulf %183, %187 : vector<8x5xf32>
    %189 = vector.extract_strided_slice %188 {offsets = [0, 0], sizes = [8, 1], strides = [1, 1]} : vector<8x5xf32> to vector<8x1xf32>
    %190 = vector.extract_strided_slice %10 {offsets = [0, 0], sizes = [8, 128], strides = [1, 1]} : vector<8x665xf32> to vector<8x128xf32>
    %191 = vector.broadcast %189 : vector<8x1xf32> to vector<8x128xf32>
    %192 = arith.mulf %191, %190 : vector<8x128xf32>
    %193 = vector.extract_strided_slice %188 {offsets = [0, 1], sizes = [8, 1], strides = [1, 1]} : vector<8x5xf32> to vector<8x1xf32>
    %194 = vector.extract_strided_slice %10 {offsets = [0, 128], sizes = [8, 128], strides = [1, 1]} : vector<8x665xf32> to vector<8x128xf32>
    %195 = vector.broadcast %193 : vector<8x1xf32> to vector<8x128xf32>
    %196 = arith.mulf %195, %194 : vector<8x128xf32>
    %197 = arith.addf %192, %196 : vector<8x128xf32>
    %198 = vector.extract_strided_slice %188 {offsets = [0, 2], sizes = [8, 1], strides = [1, 1]} : vector<8x5xf32> to vector<8x1xf32>
    %199 = vector.extract_strided_slice %10 {offsets = [0, 256], sizes = [8, 128], strides = [1, 1]} : vector<8x665xf32> to vector<8x128xf32>
    %200 = vector.broadcast %198 : vector<8x1xf32> to vector<8x128xf32>
    %201 = arith.mulf %200, %199 : vector<8x128xf32>
    %202 = arith.addf %197, %201 : vector<8x128xf32>
    %203 = vector.extract_strided_slice %188 {offsets = [0, 3], sizes = [8, 1], strides = [1, 1]} : vector<8x5xf32> to vector<8x1xf32>
    %204 = vector.extract_strided_slice %10 {offsets = [0, 384], sizes = [8, 128], strides = [1, 1]} : vector<8x665xf32> to vector<8x128xf32>
    %205 = vector.broadcast %203 : vector<8x1xf32> to vector<8x128xf32>
    %206 = arith.mulf %205, %204 : vector<8x128xf32>
    %207 = arith.addf %202, %206 : vector<8x128xf32>
    %208 = vector.extract_strided_slice %188 {offsets = [0, 4], sizes = [8, 1], strides = [1, 1]} : vector<8x5xf32> to vector<8x1xf32>
    %209 = vector.extract_strided_slice %10 {offsets = [0, 512], sizes = [8, 128], strides = [1, 1]} : vector<8x665xf32> to vector<8x128xf32>
    %210 = vector.broadcast %208 : vector<8x1xf32> to vector<8x128xf32>
    %211 = arith.mulf %210, %209 : vector<8x128xf32>
    %212 = arith.addf %207, %211 : vector<8x128xf32>
    %213 = vector.broadcast %21 : vector<1x128xf32> to vector<8x128xf32>
    %214 = arith.addf %212, %213 : vector<8x128xf32>
    %cst_31 = arith.constant 0.000000e+00 : f32
    %215 = vector.broadcast %cst_31 : f32 to vector<8x128xf32>
    %216 = arith.maximumf %214, %215 : vector<8x128xf32>
    %217 = tpu.concatenate %60, %99, %138, %177, %216 in 1 : vector<8x128xf32>, vector<8x128xf32>, vector<8x128xf32>, vector<8x128xf32>, vector<8x128xf32> -> vector<8x640xf32>
    %c0_32 = arith.constant 0 : index
    %c0_33 = arith.constant 0 : index
    %218 = vector.load %arg7[%c0_32, %c0_33] : memref<640x665xf32, #tpu.memory_space<vmem>>, vector<640x665xf32>
    %cst_34 = arith.constant dense<0.000000e+00> : vector<8x665xf32>
    %219 = tpu.matmul %217, %218, %cst_34 {dimension_numbers = #tpu.dot_dimension_numbers<[1], [0], [0], [1], [0, 0, 1, 1], [], []>} : vector<8x640xf32>, vector<640x665xf32>, vector<8x665xf32> -> vector<8x665xf32>
    %220 = vector.extract_strided_slice %219 {offsets = [0, 640], sizes = [8, 25], strides = [1, 1]} : vector<8x665xf32> to vector<8x25xf32>
    %cst_35 = arith.constant 0.000000e+00 : f32
    %221 = vector.broadcast %cst_35 : f32 to vector<8x25xf32>
    %222 = arith.cmpf ogt, %220, %221 : vector<8x25xf32>
    %cst_36 = arith.constant 2.000000e-01 : f32
    %223 = vector.broadcast %cst_36 : f32 to vector<8x25xf32>
    %224 = arith.mulf %223, %220 : vector<8x25xf32>
    %225 = arith.select %222, %220, %224 : vector<8x25xi1>, vector<8x25xf32>
    %cst_37 = arith.constant 0.000000e+00 : f32
    %226 = vector.broadcast %cst_37 : f32 to vector<8x25xf32>
    %227 = arith.cmpf ogt, %0, %226 : vector<8x25xf32>
    %cst_38 = arith.constant -1.000000e+30 : f32
    %228 = vector.broadcast %cst_38 : f32 to vector<8x25xf32>
    %229 = arith.select %227, %225, %228 : vector<8x25xi1>, vector<8x25xf32>
    %c0_39 = arith.constant 0 : index
    %c0_40 = arith.constant 0 : index
    %230 = vector.load %arg8[%c0_39, %c0_40] : memref<1x128xf32, #tpu.memory_space<vmem>>, vector<1x128xf32>
    %231 = vector.extract_strided_slice %229 {offsets = [0, 0], sizes = [8, 5], strides = [1, 1]} : vector<8x25xf32> to vector<8x5xf32>
    %cst_41 = arith.constant dense<0xFF800000> : vector<8xf32>
    %232 = vector.multi_reduction <maximumf>, %231, %cst_41 [1] : vector<8x5xf32> to vector<8xf32>
    %233 = vector.shape_cast %232 : vector<8xf32> to vector<8x1xf32>
    %234 = vector.broadcast %233 : vector<8x1xf32> to vector<8x5xf32>
    %235 = arith.subf %231, %234 : vector<8x5xf32>
    %236 = math.exp %235 : vector<8x5xf32>
    %cst_42 = arith.constant dense<0.000000e+00> : vector<8xf32>
    %237 = vector.multi_reduction <add>, %236, %cst_42 [1] : vector<8x5xf32> to vector<8xf32>
    %238 = vector.shape_cast %237 : vector<8xf32> to vector<8x1xf32>
    %239 = tpu.reciprocal %238 {approx = true} : vector<8x1xf32> -> vector<8x1xf32>
    %240 = vector.broadcast %239 : vector<8x1xf32> to vector<8x5xf32>
    %241 = arith.mulf %236, %240 : vector<8x5xf32>
    %242 = vector.extract_strided_slice %241 {offsets = [0, 0], sizes = [8, 1], strides = [1, 1]} : vector<8x5xf32> to vector<8x1xf32>
    %243 = vector.extract_strided_slice %219 {offsets = [0, 0], sizes = [8, 128], strides = [1, 1]} : vector<8x665xf32> to vector<8x128xf32>
    %244 = vector.broadcast %242 : vector<8x1xf32> to vector<8x128xf32>
    %245 = arith.mulf %244, %243 : vector<8x128xf32>
    %246 = vector.extract_strided_slice %241 {offsets = [0, 1], sizes = [8, 1], strides = [1, 1]} : vector<8x5xf32> to vector<8x1xf32>
    %247 = vector.extract_strided_slice %219 {offsets = [0, 128], sizes = [8, 128], strides = [1, 1]} : vector<8x665xf32> to vector<8x128xf32>
    %248 = vector.broadcast %246 : vector<8x1xf32> to vector<8x128xf32>
    %249 = arith.mulf %248, %247 : vector<8x128xf32>
    %250 = arith.addf %245, %249 : vector<8x128xf32>
    %251 = vector.extract_strided_slice %241 {offsets = [0, 2], sizes = [8, 1], strides = [1, 1]} : vector<8x5xf32> to vector<8x1xf32>
    %252 = vector.extract_strided_slice %219 {offsets = [0, 256], sizes = [8, 128], strides = [1, 1]} : vector<8x665xf32> to vector<8x128xf32>
    %253 = vector.broadcast %251 : vector<8x1xf32> to vector<8x128xf32>
    %254 = arith.mulf %253, %252 : vector<8x128xf32>
    %255 = arith.addf %250, %254 : vector<8x128xf32>
    %256 = vector.extract_strided_slice %241 {offsets = [0, 3], sizes = [8, 1], strides = [1, 1]} : vector<8x5xf32> to vector<8x1xf32>
    %257 = vector.extract_strided_slice %219 {offsets = [0, 384], sizes = [8, 128], strides = [1, 1]} : vector<8x665xf32> to vector<8x128xf32>
    %258 = vector.broadcast %256 : vector<8x1xf32> to vector<8x128xf32>
    %259 = arith.mulf %258, %257 : vector<8x128xf32>
    %260 = arith.addf %255, %259 : vector<8x128xf32>
    %261 = vector.extract_strided_slice %241 {offsets = [0, 4], sizes = [8, 1], strides = [1, 1]} : vector<8x5xf32> to vector<8x1xf32>
    %262 = vector.extract_strided_slice %219 {offsets = [0, 512], sizes = [8, 128], strides = [1, 1]} : vector<8x665xf32> to vector<8x128xf32>
    %263 = vector.broadcast %261 : vector<8x1xf32> to vector<8x128xf32>
    %264 = arith.mulf %263, %262 : vector<8x128xf32>
    %265 = arith.addf %260, %264 : vector<8x128xf32>
    %266 = vector.broadcast %230 : vector<1x128xf32> to vector<8x128xf32>
    %267 = arith.addf %265, %266 : vector<8x128xf32>
    %cst_43 = arith.constant 0.000000e+00 : f32
    %268 = vector.broadcast %cst_43 : f32 to vector<8x128xf32>
    %269 = arith.maximumf %267, %268 : vector<8x128xf32>
    %270 = vector.extract_strided_slice %229 {offsets = [0, 5], sizes = [8, 5], strides = [1, 1]} : vector<8x25xf32> to vector<8x5xf32>
    %cst_44 = arith.constant dense<0xFF800000> : vector<8xf32>
    %271 = vector.multi_reduction <maximumf>, %270, %cst_44 [1] : vector<8x5xf32> to vector<8xf32>
    %272 = vector.shape_cast %271 : vector<8xf32> to vector<8x1xf32>
    %273 = vector.broadcast %272 : vector<8x1xf32> to vector<8x5xf32>
    %274 = arith.subf %270, %273 : vector<8x5xf32>
    %275 = math.exp %274 : vector<8x5xf32>
    %cst_45 = arith.constant dense<0.000000e+00> : vector<8xf32>
    %276 = vector.multi_reduction <add>, %275, %cst_45 [1] : vector<8x5xf32> to vector<8xf32>
    %277 = vector.shape_cast %276 : vector<8xf32> to vector<8x1xf32>
    %278 = tpu.reciprocal %277 {approx = true} : vector<8x1xf32> -> vector<8x1xf32>
    %279 = vector.broadcast %278 : vector<8x1xf32> to vector<8x5xf32>
    %280 = arith.mulf %275, %279 : vector<8x5xf32>
    %281 = vector.extract_strided_slice %280 {offsets = [0, 0], sizes = [8, 1], strides = [1, 1]} : vector<8x5xf32> to vector<8x1xf32>
    %282 = vector.extract_strided_slice %219 {offsets = [0, 0], sizes = [8, 128], strides = [1, 1]} : vector<8x665xf32> to vector<8x128xf32>
    %283 = vector.broadcast %281 : vector<8x1xf32> to vector<8x128xf32>
    %284 = arith.mulf %283, %282 : vector<8x128xf32>
    %285 = vector.extract_strided_slice %280 {offsets = [0, 1], sizes = [8, 1], strides = [1, 1]} : vector<8x5xf32> to vector<8x1xf32>
    %286 = vector.extract_strided_slice %219 {offsets = [0, 128], sizes = [8, 128], strides = [1, 1]} : vector<8x665xf32> to vector<8x128xf32>
    %287 = vector.broadcast %285 : vector<8x1xf32> to vector<8x128xf32>
    %288 = arith.mulf %287, %286 : vector<8x128xf32>
    %289 = arith.addf %284, %288 : vector<8x128xf32>
    %290 = vector.extract_strided_slice %280 {offsets = [0, 2], sizes = [8, 1], strides = [1, 1]} : vector<8x5xf32> to vector<8x1xf32>
    %291 = vector.extract_strided_slice %219 {offsets = [0, 256], sizes = [8, 128], strides = [1, 1]} : vector<8x665xf32> to vector<8x128xf32>
    %292 = vector.broadcast %290 : vector<8x1xf32> to vector<8x128xf32>
    %293 = arith.mulf %292, %291 : vector<8x128xf32>
    %294 = arith.addf %289, %293 : vector<8x128xf32>
    %295 = vector.extract_strided_slice %280 {offsets = [0, 3], sizes = [8, 1], strides = [1, 1]} : vector<8x5xf32> to vector<8x1xf32>
    %296 = vector.extract_strided_slice %219 {offsets = [0, 384], sizes = [8, 128], strides = [1, 1]} : vector<8x665xf32> to vector<8x128xf32>
    %297 = vector.broadcast %295 : vector<8x1xf32> to vector<8x128xf32>
    %298 = arith.mulf %297, %296 : vector<8x128xf32>
    %299 = arith.addf %294, %298 : vector<8x128xf32>
    %300 = vector.extract_strided_slice %280 {offsets = [0, 4], sizes = [8, 1], strides = [1, 1]} : vector<8x5xf32> to vector<8x1xf32>
    %301 = vector.extract_strided_slice %219 {offsets = [0, 512], sizes = [8, 128], strides = [1, 1]} : vector<8x665xf32> to vector<8x128xf32>
    %302 = vector.broadcast %300 : vector<8x1xf32> to vector<8x128xf32>
    %303 = arith.mulf %302, %301 : vector<8x128xf32>
    %304 = arith.addf %299, %303 : vector<8x128xf32>
    %305 = vector.broadcast %230 : vector<1x128xf32> to vector<8x128xf32>
    %306 = arith.addf %304, %305 : vector<8x128xf32>
    %cst_46 = arith.constant 0.000000e+00 : f32
    %307 = vector.broadcast %cst_46 : f32 to vector<8x128xf32>
    %308 = arith.maximumf %306, %307 : vector<8x128xf32>
    %309 = vector.extract_strided_slice %229 {offsets = [0, 10], sizes = [8, 5], strides = [1, 1]} : vector<8x25xf32> to vector<8x5xf32>
    %cst_47 = arith.constant dense<0xFF800000> : vector<8xf32>
    %310 = vector.multi_reduction <maximumf>, %309, %cst_47 [1] : vector<8x5xf32> to vector<8xf32>
    %311 = vector.shape_cast %310 : vector<8xf32> to vector<8x1xf32>
    %312 = vector.broadcast %311 : vector<8x1xf32> to vector<8x5xf32>
    %313 = arith.subf %309, %312 : vector<8x5xf32>
    %314 = math.exp %313 : vector<8x5xf32>
    %cst_48 = arith.constant dense<0.000000e+00> : vector<8xf32>
    %315 = vector.multi_reduction <add>, %314, %cst_48 [1] : vector<8x5xf32> to vector<8xf32>
    %316 = vector.shape_cast %315 : vector<8xf32> to vector<8x1xf32>
    %317 = tpu.reciprocal %316 {approx = true} : vector<8x1xf32> -> vector<8x1xf32>
    %318 = vector.broadcast %317 : vector<8x1xf32> to vector<8x5xf32>
    %319 = arith.mulf %314, %318 : vector<8x5xf32>
    %320 = vector.extract_strided_slice %319 {offsets = [0, 0], sizes = [8, 1], strides = [1, 1]} : vector<8x5xf32> to vector<8x1xf32>
    %321 = vector.extract_strided_slice %219 {offsets = [0, 0], sizes = [8, 128], strides = [1, 1]} : vector<8x665xf32> to vector<8x128xf32>
    %322 = vector.broadcast %320 : vector<8x1xf32> to vector<8x128xf32>
    %323 = arith.mulf %322, %321 : vector<8x128xf32>
    %324 = vector.extract_strided_slice %319 {offsets = [0, 1], sizes = [8, 1], strides = [1, 1]} : vector<8x5xf32> to vector<8x1xf32>
    %325 = vector.extract_strided_slice %219 {offsets = [0, 128], sizes = [8, 128], strides = [1, 1]} : vector<8x665xf32> to vector<8x128xf32>
    %326 = vector.broadcast %324 : vector<8x1xf32> to vector<8x128xf32>
    %327 = arith.mulf %326, %325 : vector<8x128xf32>
    %328 = arith.addf %323, %327 : vector<8x128xf32>
    %329 = vector.extract_strided_slice %319 {offsets = [0, 2], sizes = [8, 1], strides = [1, 1]} : vector<8x5xf32> to vector<8x1xf32>
    %330 = vector.extract_strided_slice %219 {offsets = [0, 256], sizes = [8, 128], strides = [1, 1]} : vector<8x665xf32> to vector<8x128xf32>
    %331 = vector.broadcast %329 : vector<8x1xf32> to vector<8x128xf32>
    %332 = arith.mulf %331, %330 : vector<8x128xf32>
    %333 = arith.addf %328, %332 : vector<8x128xf32>
    %334 = vector.extract_strided_slice %319 {offsets = [0, 3], sizes = [8, 1], strides = [1, 1]} : vector<8x5xf32> to vector<8x1xf32>
    %335 = vector.extract_strided_slice %219 {offsets = [0, 384], sizes = [8, 128], strides = [1, 1]} : vector<8x665xf32> to vector<8x128xf32>
    %336 = vector.broadcast %334 : vector<8x1xf32> to vector<8x128xf32>
    %337 = arith.mulf %336, %335 : vector<8x128xf32>
    %338 = arith.addf %333, %337 : vector<8x128xf32>
    %339 = vector.extract_strided_slice %319 {offsets = [0, 4], sizes = [8, 1], strides = [1, 1]} : vector<8x5xf32> to vector<8x1xf32>
    %340 = vector.extract_strided_slice %219 {offsets = [0, 512], sizes = [8, 128], strides = [1, 1]} : vector<8x665xf32> to vector<8x128xf32>
    %341 = vector.broadcast %339 : vector<8x1xf32> to vector<8x128xf32>
    %342 = arith.mulf %341, %340 : vector<8x128xf32>
    %343 = arith.addf %338, %342 : vector<8x128xf32>
    %344 = vector.broadcast %230 : vector<1x128xf32> to vector<8x128xf32>
    %345 = arith.addf %343, %344 : vector<8x128xf32>
    %cst_49 = arith.constant 0.000000e+00 : f32
    %346 = vector.broadcast %cst_49 : f32 to vector<8x128xf32>
    %347 = arith.maximumf %345, %346 : vector<8x128xf32>
    %348 = vector.extract_strided_slice %229 {offsets = [0, 15], sizes = [8, 5], strides = [1, 1]} : vector<8x25xf32> to vector<8x5xf32>
    %cst_50 = arith.constant dense<0xFF800000> : vector<8xf32>
    %349 = vector.multi_reduction <maximumf>, %348, %cst_50 [1] : vector<8x5xf32> to vector<8xf32>
    %350 = vector.shape_cast %349 : vector<8xf32> to vector<8x1xf32>
    %351 = vector.broadcast %350 : vector<8x1xf32> to vector<8x5xf32>
    %352 = arith.subf %348, %351 : vector<8x5xf32>
    %353 = math.exp %352 : vector<8x5xf32>
    %cst_51 = arith.constant dense<0.000000e+00> : vector<8xf32>
    %354 = vector.multi_reduction <add>, %353, %cst_51 [1] : vector<8x5xf32> to vector<8xf32>
    %355 = vector.shape_cast %354 : vector<8xf32> to vector<8x1xf32>
    %356 = tpu.reciprocal %355 {approx = true} : vector<8x1xf32> -> vector<8x1xf32>
    %357 = vector.broadcast %356 : vector<8x1xf32> to vector<8x5xf32>
    %358 = arith.mulf %353, %357 : vector<8x5xf32>
    %359 = vector.extract_strided_slice %358 {offsets = [0, 0], sizes = [8, 1], strides = [1, 1]} : vector<8x5xf32> to vector<8x1xf32>
    %360 = vector.extract_strided_slice %219 {offsets = [0, 0], sizes = [8, 128], strides = [1, 1]} : vector<8x665xf32> to vector<8x128xf32>
    %361 = vector.broadcast %359 : vector<8x1xf32> to vector<8x128xf32>
    %362 = arith.mulf %361, %360 : vector<8x128xf32>
    %363 = vector.extract_strided_slice %358 {offsets = [0, 1], sizes = [8, 1], strides = [1, 1]} : vector<8x5xf32> to vector<8x1xf32>
    %364 = vector.extract_strided_slice %219 {offsets = [0, 128], sizes = [8, 128], strides = [1, 1]} : vector<8x665xf32> to vector<8x128xf32>
    %365 = vector.broadcast %363 : vector<8x1xf32> to vector<8x128xf32>
    %366 = arith.mulf %365, %364 : vector<8x128xf32>
    %367 = arith.addf %362, %366 : vector<8x128xf32>
    %368 = vector.extract_strided_slice %358 {offsets = [0, 2], sizes = [8, 1], strides = [1, 1]} : vector<8x5xf32> to vector<8x1xf32>
    %369 = vector.extract_strided_slice %219 {offsets = [0, 256], sizes = [8, 128], strides = [1, 1]} : vector<8x665xf32> to vector<8x128xf32>
    %370 = vector.broadcast %368 : vector<8x1xf32> to vector<8x128xf32>
    %371 = arith.mulf %370, %369 : vector<8x128xf32>
    %372 = arith.addf %367, %371 : vector<8x128xf32>
    %373 = vector.extract_strided_slice %358 {offsets = [0, 3], sizes = [8, 1], strides = [1, 1]} : vector<8x5xf32> to vector<8x1xf32>
    %374 = vector.extract_strided_slice %219 {offsets = [0, 384], sizes = [8, 128], strides = [1, 1]} : vector<8x665xf32> to vector<8x128xf32>
    %375 = vector.broadcast %373 : vector<8x1xf32> to vector<8x128xf32>
    %376 = arith.mulf %375, %374 : vector<8x128xf32>
    %377 = arith.addf %372, %376 : vector<8x128xf32>
    %378 = vector.extract_strided_slice %358 {offsets = [0, 4], sizes = [8, 1], strides = [1, 1]} : vector<8x5xf32> to vector<8x1xf32>
    %379 = vector.extract_strided_slice %219 {offsets = [0, 512], sizes = [8, 128], strides = [1, 1]} : vector<8x665xf32> to vector<8x128xf32>
    %380 = vector.broadcast %378 : vector<8x1xf32> to vector<8x128xf32>
    %381 = arith.mulf %380, %379 : vector<8x128xf32>
    %382 = arith.addf %377, %381 : vector<8x128xf32>
    %383 = vector.broadcast %230 : vector<1x128xf32> to vector<8x128xf32>
    %384 = arith.addf %382, %383 : vector<8x128xf32>
    %cst_52 = arith.constant 0.000000e+00 : f32
    %385 = vector.broadcast %cst_52 : f32 to vector<8x128xf32>
    %386 = arith.maximumf %384, %385 : vector<8x128xf32>
    %387 = vector.extract_strided_slice %229 {offsets = [0, 20], sizes = [8, 5], strides = [1, 1]} : vector<8x25xf32> to vector<8x5xf32>
    %cst_53 = arith.constant dense<0xFF800000> : vector<8xf32>
    %388 = vector.multi_reduction <maximumf>, %387, %cst_53 [1] : vector<8x5xf32> to vector<8xf32>
    %389 = vector.shape_cast %388 : vector<8xf32> to vector<8x1xf32>
    %390 = vector.broadcast %389 : vector<8x1xf32> to vector<8x5xf32>
    %391 = arith.subf %387, %390 : vector<8x5xf32>
    %392 = math.exp %391 : vector<8x5xf32>
    %cst_54 = arith.constant dense<0.000000e+00> : vector<8xf32>
    %393 = vector.multi_reduction <add>, %392, %cst_54 [1] : vector<8x5xf32> to vector<8xf32>
    %394 = vector.shape_cast %393 : vector<8xf32> to vector<8x1xf32>
    %395 = tpu.reciprocal %394 {approx = true} : vector<8x1xf32> -> vector<8x1xf32>
    %396 = vector.broadcast %395 : vector<8x1xf32> to vector<8x5xf32>
    %397 = arith.mulf %392, %396 : vector<8x5xf32>
    %398 = vector.extract_strided_slice %397 {offsets = [0, 0], sizes = [8, 1], strides = [1, 1]} : vector<8x5xf32> to vector<8x1xf32>
    %399 = vector.extract_strided_slice %219 {offsets = [0, 0], sizes = [8, 128], strides = [1, 1]} : vector<8x665xf32> to vector<8x128xf32>
    %400 = vector.broadcast %398 : vector<8x1xf32> to vector<8x128xf32>
    %401 = arith.mulf %400, %399 : vector<8x128xf32>
    %402 = vector.extract_strided_slice %397 {offsets = [0, 1], sizes = [8, 1], strides = [1, 1]} : vector<8x5xf32> to vector<8x1xf32>
    %403 = vector.extract_strided_slice %219 {offsets = [0, 128], sizes = [8, 128], strides = [1, 1]} : vector<8x665xf32> to vector<8x128xf32>
    %404 = vector.broadcast %402 : vector<8x1xf32> to vector<8x128xf32>
    %405 = arith.mulf %404, %403 : vector<8x128xf32>
    %406 = arith.addf %401, %405 : vector<8x128xf32>
    %407 = vector.extract_strided_slice %397 {offsets = [0, 2], sizes = [8, 1], strides = [1, 1]} : vector<8x5xf32> to vector<8x1xf32>
    %408 = vector.extract_strided_slice %219 {offsets = [0, 256], sizes = [8, 128], strides = [1, 1]} : vector<8x665xf32> to vector<8x128xf32>
    %409 = vector.broadcast %407 : vector<8x1xf32> to vector<8x128xf32>
    %410 = arith.mulf %409, %408 : vector<8x128xf32>
    %411 = arith.addf %406, %410 : vector<8x128xf32>
    %412 = vector.extract_strided_slice %397 {offsets = [0, 3], sizes = [8, 1], strides = [1, 1]} : vector<8x5xf32> to vector<8x1xf32>
    %413 = vector.extract_strided_slice %219 {offsets = [0, 384], sizes = [8, 128], strides = [1, 1]} : vector<8x665xf32> to vector<8x128xf32>
    %414 = vector.broadcast %412 : vector<8x1xf32> to vector<8x128xf32>
    %415 = arith.mulf %414, %413 : vector<8x128xf32>
    %416 = arith.addf %411, %415 : vector<8x128xf32>
    %417 = vector.extract_strided_slice %397 {offsets = [0, 4], sizes = [8, 1], strides = [1, 1]} : vector<8x5xf32> to vector<8x1xf32>
    %418 = vector.extract_strided_slice %219 {offsets = [0, 512], sizes = [8, 128], strides = [1, 1]} : vector<8x665xf32> to vector<8x128xf32>
    %419 = vector.broadcast %417 : vector<8x1xf32> to vector<8x128xf32>
    %420 = arith.mulf %419, %418 : vector<8x128xf32>
    %421 = arith.addf %416, %420 : vector<8x128xf32>
    %422 = vector.broadcast %230 : vector<1x128xf32> to vector<8x128xf32>
    %423 = arith.addf %421, %422 : vector<8x128xf32>
    %cst_55 = arith.constant 0.000000e+00 : f32
    %424 = vector.broadcast %cst_55 : f32 to vector<8x128xf32>
    %425 = arith.maximumf %423, %424 : vector<8x128xf32>
    %426 = tpu.concatenate %269, %308, %347, %386, %425 in 1 : vector<8x128xf32>, vector<8x128xf32>, vector<8x128xf32>, vector<8x128xf32>, vector<8x128xf32> -> vector<8x640xf32>
    %427 = vector.extract_strided_slice %217 {offsets = [0, 0], sizes = [8, 128], strides = [1, 1]} : vector<8x640xf32> to vector<8x128xf32>
    %428 = vector.extract_strided_slice %426 {offsets = [0, 0], sizes = [8, 128], strides = [1, 1]} : vector<8x640xf32> to vector<8x128xf32>
    %429 = tpu.concatenate %427, %428 in 1 : vector<8x128xf32>, vector<8x128xf32> -> vector<8x256xf32>
    %c0_56 = arith.constant 0 : index
    %c0_57 = arith.constant 0 : index
    %430 = vector.load %arg9[%c0_56, %c0_57] : memref<256x32xf32, #tpu.memory_space<vmem>>, vector<256x32xf32>
    %cst_58 = arith.constant dense<0.000000e+00> : vector<8x32xf32>
    %431 = tpu.matmul %429, %430, %cst_58 {dimension_numbers = #tpu.dot_dimension_numbers<[1], [0], [0], [1], [0, 0, 1, 1], [], []>} : vector<8x256xf32>, vector<256x32xf32>, vector<8x32xf32> -> vector<8x32xf32>
    %c0_59 = arith.constant 0 : index
    %c0_60 = arith.constant 0 : index
    %432 = vector.load %arg10[%c0_59, %c0_60] : memref<1x32xf32, #tpu.memory_space<vmem>>, vector<1x32xf32>
    %433 = vector.broadcast %432 : vector<1x32xf32> to vector<8x32xf32>
    %434 = arith.addf %431, %433 : vector<8x32xf32>
    %cst_61 = arith.constant 0.000000e+00 : f32
    %435 = vector.broadcast %cst_61 : f32 to vector<8x32xf32>
    %436 = arith.maximumf %434, %435 : vector<8x32xf32>
    %c0_62 = arith.constant 0 : index
    %c0_63 = arith.constant 0 : index
    %437 = vector.load %arg11[%c0_62, %c0_63] : memref<32x128xf32, #tpu.memory_space<vmem>>, vector<32x128xf32>
    %cst_64 = arith.constant dense<0.000000e+00> : vector<8x128xf32>
    %438 = tpu.matmul %436, %437, %cst_64 {dimension_numbers = #tpu.dot_dimension_numbers<[1], [0], [0], [1], [0, 0, 1, 1], [], []>} : vector<8x32xf32>, vector<32x128xf32>, vector<8x128xf32> -> vector<8x128xf32>
    %c0_65 = arith.constant 0 : index
    %c0_66 = arith.constant 0 : index
    %439 = vector.load %arg12[%c0_65, %c0_66] : memref<1x128xf32, #tpu.memory_space<vmem>>, vector<1x128xf32>
    %440 = vector.broadcast %439 : vector<1x128xf32> to vector<8x128xf32>
    %441 = arith.addf %438, %440 : vector<8x128xf32>
    %c0_67 = arith.constant 0 : index
    %c0_68 = arith.constant 0 : index
    %442 = vector.load %arg13[%c0_67, %c0_68] : memref<8x128xf32, #tpu.memory_space<vmem>>, vector<8x128xf32>
    tpu.vector_store %arg13[%c0_67, %c0_68], %441 {strides = array<i32>} : memref<8x128xf32, #tpu.memory_space<vmem>>, vector<8x128xf32>,
    return
  }
  func.func @transform_0(%arg0: i32) -> (i32, i32) {
    %c0_i32 = arith.constant 0 : i32
    %c0_i32_0 = arith.constant 0 : i32
    return %arg0, %c0_i32 : i32, i32
  }
  func.func @transform_1(%arg0: i32) -> (i32, i32) {
    %c0_i32 = arith.constant 0 : i32
    %c0_i32_0 = arith.constant 0 : i32
    return %arg0, %c0_i32 : i32, i32
  }
  func.func @transform_2(%arg0: i32) -> (i32, i32) {
    %c0_i32 = arith.constant 0 : i32
    %c0_i32_0 = arith.constant 0 : i32
    %c0_i32_1 = arith.constant 0 : i32
    return %c0_i32, %c0_i32_0 : i32, i32
  }
  func.func @transform_3(%arg0: i32) -> (i32, i32) {
    %c0_i32 = arith.constant 0 : i32
    %c0_i32_0 = arith.constant 0 : i32
    %c0_i32_1 = arith.constant 0 : i32
    return %c0_i32, %c0_i32_0 : i32, i32
  }
  func.func @transform_4(%arg0: i32) -> (i32, i32) {
    %c0_i32 = arith.constant 0 : i32
    %c0_i32_0 = arith.constant 0 : i32
    %c0_i32_1 = arith.constant 0 : i32
    return %c0_i32, %c0_i32_0 : i32, i32
  }
  func.func @transform_5(%arg0: i32) -> (i32, i32) {
    %c0_i32 = arith.constant 0 : i32
    %c0_i32_0 = arith.constant 0 : i32
    %c0_i32_1 = arith.constant 0 : i32
    return %c0_i32, %c0_i32_0 : i32, i32
  }
  func.func @transform_6(%arg0: i32) -> (i32, i32) {
    %c0_i32 = arith.constant 0 : i32
    %c0_i32_0 = arith.constant 0 : i32
    %c0_i32_1 = arith.constant 0 : i32
    return %c0_i32, %c0_i32_0 : i32, i32
  }
  func.func @transform_7(%arg0: i32) -> (i32, i32) {
    %c0_i32 = arith.constant 0 : i32
    %c0_i32_0 = arith.constant 0 : i32
    %c0_i32_1 = arith.constant 0 : i32
    return %c0_i32, %c0_i32_0 : i32, i32
  }
  func.func @transform_8(%arg0: i32) -> (i32, i32) {
    %c0_i32 = arith.constant 0 : i32
    %c0_i32_0 = arith.constant 0 : i32
    %c0_i32_1 = arith.constant 0 : i32
    return %c0_i32, %c0_i32_0 : i32, i32
  }
  func.func @transform_9(%arg0: i32) -> (i32, i32) {
    %c0_i32 = arith.constant 0 : i32
    %c0_i32_0 = arith.constant 0 : i32
    %c0_i32_1 = arith.constant 0 : i32
    return %c0_i32, %c0_i32_0 : i32, i32
  }
  func.func @transform_10(%arg0: i32) -> (i32, i32) {
    %c0_i32 = arith.constant 0 : i32
    %c0_i32_0 = arith.constant 0 : i32
    %c0_i32_1 = arith.constant 0 : i32
    return %c0_i32, %c0_i32_0 : i32, i32
  }
  func.func @transform_11(%arg0: i32) -> (i32, i32) {
    %c0_i32 = arith.constant 0 : i32
    %c0_i32_0 = arith.constant 0 : i32
    %c0_i32_1 = arith.constant 0 : i32
    return %c0_i32, %c0_i32_0 : i32, i32
  }
  func.func @transform_12(%arg0: i32) -> (i32, i32) {
    %c0_i32 = arith.constant 0 : i32
    %c0_i32_0 = arith.constant 0 : i32
    return %arg0, %c0_i32 : i32, i32
  }
}

</mosaic_0001>

<llo_original>
// kernel: tpu_custom_call.1
$region0: #{tpu_custom_call.1}
  #allocation0 [shape = 'u32[]', space=smem, size = 0x4, offset = 0x4, fixed_abs, tag = 'smem constant byte address 0x4 - core index']
  #allocation1 [shape = 'u32[72,128]{1,0:T(1,128)}', space=vmem, size = 0x9000, scoped, tag = 'internal scratch']
  %s0 = inlined_call_operand.vmem [shape: f32[8,50], index: 0, kind: input, shape index: {}]
  %s1 = inlined_call_operand.vmem [shape: f32[8,25], index: 1, kind: input, shape index: {}]
  %s2 = inlined_call_operand.vmem [shape: f32[50,160], index: 2, kind: input, shape index: {}]
  %s3 = inlined_call_operand.vmem [shape: f32[1,160], index: 3, kind: input, shape index: {}]
  %s4 = inlined_call_operand.vmem [shape: f32[160,665], index: 4, kind: input, shape index: {}]
  %s5 = inlined_call_operand.vmem [shape: f32[1,128], index: 5, kind: input, shape index: {}]
  %s6 = inlined_call_operand.vmem [shape: f32[640,665], index: 6, kind: input, shape index: {}]
  %s7 = inlined_call_operand.vmem [shape: f32[1,128], index: 7, kind: input, shape index: {}]
  %s8 = inlined_call_operand.vmem [shape: f32[256,32], index: 8, kind: input, shape index: {}]
  %s9 = inlined_call_operand.vmem [shape: f32[1,32], index: 9, kind: input, shape index: {}]
  %s10 = inlined_call_operand.vmem [shape: f32[32,128], index: 10, kind: input, shape index: {}]
  %s11 = inlined_call_operand.vmem [shape: f32[1,128], index: 11, kind: input, shape index: {}]
  %s12 = inlined_call_operand.hbm [shape: f32[8,128], index: 12, kind: output, shape index: {}]
  %s13 = sld [smem:[#allocation0]]
  $region58: #{tpu_custom_call.1} parent=0
    _
  %s15 = ssub.s32 1, %s13
  %s16 = scalar_select 0, %s15, %s13
  $region1: #{tpu_custom_call.1} parent=0
    #allocation2 [shape = 'u8[4096]{0}', space=vmem, size = 0x1000, scoped, tag = 'output window, operand 0, single buffered']
    #allocation3 [shape = 's32[1]{0}', space=sflag, size = 0x4, scoped, tag = 'scoped memory for tpu_custom_call.1']
    %17 = vsyncpa [#allocation3], 0
    // Predicated region
    $region2: #{tpu_custom_call.1} parent=1 // pred_check
      _
    $region3: #{tpu_custom_call.1} parent=1 // pred_check_branch
      %19 = sbr.rel (0) target = $region5
    $region4: #{tpu_custom_call.1} parent=1 // pred_region
      _
    $region5: #{tpu_custom_call.1} parent=1 // pred_fallthru
      _
    // Predicated region
    $region6: #{tpu_custom_call.1} parent=1 // pred_check
      _
    $region7: #{tpu_custom_call.1} parent=1 // pred_check_branch
      %21 = sbr.rel (0) target = $region9
    $region8: #{tpu_custom_call.1} parent=1 // pred_region
      _
    $region9: #{tpu_custom_call.1} parent=1 // pred_fallthru
      _
    // Predicated region
    $region10: #{tpu_custom_call.1} parent=1 // pred_check
      _
    $region11: #{tpu_custom_call.1} parent=1 // pred_check_branch
      %23 = sbr.rel (0) target = $region13
    $region12: #{tpu_custom_call.1} parent=1 // pred_region
      _
    $region13: #{tpu_custom_call.1} parent=1 // pred_fallthru
      _
    // Predicated region
    $region14: #{tpu_custom_call.1} parent=1 // pred_check
      _
    $region15: #{tpu_custom_call.1} parent=1 // pred_check_branch
      %25 = sbr.rel (0) target = $region17
    $region16: #{tpu_custom_call.1} parent=1 // pred_region
      _
    $region17: #{tpu_custom_call.1} parent=1 // pred_fallthru
      _
    // Predicated region
    $region18: #{tpu_custom_call.1} parent=1 // pred_check
      _
    $region19: #{tpu_custom_call.1} parent=1 // pred_check_branch
      %27 = sbr.rel (0) target = $region21
    $region20: #{tpu_custom_call.1} parent=1 // pred_region
      _
    $region21: #{tpu_custom_call.1} parent=1 // pred_fallthru
      _
    // Predicated region
    $region22: #{tpu_custom_call.1} parent=1 // pred_check
      _
    $region23: #{tpu_custom_call.1} parent=1 // pred_check_branch
      %29 = sbr.rel (0) target = $region25
    $region24: #{tpu_custom_call.1} parent=1 // pred_region
      _
    $region25: #{tpu_custom_call.1} parent=1 // pred_fallthru
      _
    // Predicated region
    $region26: #{tpu_custom_call.1} parent=1 // pred_check
      _
    $region27: #{tpu_custom_call.1} parent=1 // pred_check_branch
      %31 = sbr.rel (0) target = $region29
    $region28: #{tpu_custom_call.1} parent=1 // pred_region
      _
    $region29: #{tpu_custom_call.1} parent=1 // pred_fallthru
      _
    // Predicated region
    $region30: #{tpu_custom_call.1} parent=1 // pred_check
      _
    $region31: #{tpu_custom_call.1} parent=1 // pred_check_branch
      %33 = sbr.rel (0) target = $region33
    $region32: #{tpu_custom_call.1} parent=1 // pred_region
      _
    $region33: #{tpu_custom_call.1} parent=1 // pred_fallthru
      _
    // Predicated region
    $region34: #{tpu_custom_call.1} parent=1 // pred_check
      _
    $region35: #{tpu_custom_call.1} parent=1 // pred_check_branch
      %35 = sbr.rel (0) target = $region37
    $region36: #{tpu_custom_call.1} parent=1 // pred_region
      _
    $region37: #{tpu_custom_call.1} parent=1 // pred_fallthru
      _
    // Predicated region
    $region38: #{tpu_custom_call.1} parent=1 // pred_check
      _
    $region39: #{tpu_custom_call.1} parent=1 // pred_check_branch
      %37 = sbr.rel (0) target = $region41
    $region40: #{tpu_custom_call.1} parent=1 // pred_region
      _
    $region41: #{tpu_custom_call.1} parent=1 // pred_fallthru
      _
    // Predicated region
    $region42: #{tpu_custom_call.1} parent=1 // pred_check
      _
    $region43: #{tpu_custom_call.1} parent=1 // pred_check_branch
      %39 = sbr.rel (0) target = $region45
    $region44: #{tpu_custom_call.1} parent=1 // pred_region
      _
    $region45: #{tpu_custom_call.1} parent=1 // pred_fallthru
      _
    // Predicated region
    $region46: #{tpu_custom_call.1} parent=1 // pred_check
      _
    $region47: #{tpu_custom_call.1} parent=1 // pred_check_branch
      %41 = sbr.rel (0) target = $region49
    $region48: #{tpu_custom_call.1} parent=1 // pred_region
      _
    $region49: #{tpu_custom_call.1} parent=1 // pred_fallthru
      _
    %v42 = vld [vmem:[%s1] sm:$0xff]
    %v43 = vld [vmem:[%s0] sm:$0xff]
    %v44 = vld [vmem:[%s2] sm:$0xff]
    %v45 = vld [vmem:[%s2 + $0x8] sm:$0xff]
    %v46 = vld [vmem:[%s2 + $0x10] sm:$0xff]
    %v47 = vld [vmem:[%s2 + $0x18] sm:$0xff]
    %v48 = vld [vmem:[%s2 + $0x20] sm:$0xff]
    %v49 = vld [vmem:[%s2 + $0x28] sm:$0xff]
    %v50 = vld [vmem:[%s2 + $0x30] sm:$0xff]
    %v51 = vld [vmem:[%s2 + $0x38] sm:$0xff]
    %v52 = vld [vmem:[%s2 + $0x40] sm:$0xff]
    %v53 = vld [vmem:[%s2 + $0x48] sm:$0xff]
    %v54 = vld [vmem:[%s2 + $0x50] sm:$0xff]
    %v55 = vld [vmem:[%s2 + $0x58] sm:$0xff]
    %v56 = vld [vmem:[%s2 + $0x60] sm:$0x3]
    %v57 = vld [vmem:[%s2 + $0x68] sm:$0x3]
    %v58 = vld [vmem:[%s3] sm:$0x3]
    %v60 = vperm.slane %v58, 0
    %v61 = vperm.slane %v58, 1
    %vm64 = vcmask 408576
    %v66 = vsel %vm64, %v43, 0
    %vm68 = vcmask 1041408
    %v70 = vsel %vm68, %v56, 0
    %v73 = vsel %vm68, %v57, 0
    %75 = vmatpush.msra.mxu0 0.0
    %76 = vmatpush.msra.mxu0 0.0
    %77 = vmatpush.msra.mxu0 0.0
    %78 = vmatpush.msra.mxu0 0.0
    %79 = vmatpush.msra.mxu0 0.0
    %80 = vmatpush.msra.mxu0 0.0
    %81 = vmatpush.msra.mxu0 0.0
    %82 = vmatpush.msra.mxu0 0.0
    %83 = vmatpush.msra.mxu0 0.0
    %84 = vmatpush.msra.mxu0 %v70
    %85 = vmatpush.msra.mxu0 %v54
    %86 = vmatpush.msra.mxu0 %v52
    %87 = vmatpush.msra.mxu0 %v50
    %88 = vmatpush.msra.mxu0 %v48
    %89 = vmatpush.msra.mxu0 %v46
    %90 = vmatpush.msra.mxu0 %v44
    %91 = vmatmul.f32.gmra.mxu0 %v66
    %v92 = vpop.f32.mrf.mxu0
    %v93 = vadd.f32 %v60, %v92
    %94 = vdwg.mxu0
    %95 = vmatpush.msra.mxu0 0.0
    %96 = vmatpush.msra.mxu0 0.0
    %97 = vmatpush.msra.mxu0 0.0
    %98 = vmatpush.msra.mxu0 0.0
    %99 = vmatpush.msra.mxu0 0.0
    %100 = vmatpush.msra.mxu0 0.0
    %101 = vmatpush.msra.mxu0 0.0
    %102 = vmatpush.msra.mxu0 0.0
    %103 = vmatpush.msra.mxu0 0.0
    %104 = vmatpush.msra.mxu0 %v73
    %105 = vmatpush.msra.mxu0 %v55
    %106 = vmatpush.msra.mxu0 %v53
    %107 = vmatpush.msra.mxu0 %v51
    %108 = vmatpush.msra.mxu0 %v49
    %109 = vmatpush.msra.mxu0 %v47
    %110 = vmatpush.msra.mxu0 %v45
    %111 = vmatmul.f32.gmra.mxu0 %v66
    %v112 = vpop.f32.mrf.mxu0
    %v113 = vadd.f32 %v61, %v112
    %114 = vdwg.mxu0
    %v115 = vmax.f32 %v93, 0.0
    %v116 = vmax.f32 %v113, 0.0
    %v117 = vld [vmem:[%s4] sm:$0xff]
    %v118 = vld [vmem:[%s4 + $0x8] sm:$0xff]
    %v119 = vld [vmem:[%s4 + $0x10] sm:$0xff]
    %v120 = vld [vmem:[%s4 + $0x18] sm:$0xff]
    %v121 = vld [vmem:[%s4 + $0x20] sm:$0xff]
    %v122 = vld [vmem:[%s4 + $0x28] sm:$0xff]
    %v123 = vld [vmem:[%s4 + $0x30] sm:$0xff]
    %v124 = vld [vmem:[%s4 + $0x38] sm:$0xff]
    %v125 = vld [vmem:[%s4 + $0x40] sm:$0xff]
    %v126 = vld [vmem:[%s4 + $0x48] sm:$0xff]
    %v127 = vld [vmem:[%s4 + $0x50] sm:$0xff]
    %v128 = vld [vmem:[%s4 + $0x58] sm:$0xff]
    %v129 = vld [vmem:[%s4 + $0x60] sm:$0xff]
    %v130 = vld [vmem:[%s4 + $0x68] sm:$0xff]
    %v131 = vld [vmem:[%s4 + $0x70] sm:$0xff]
    %v132 = vld [vmem:[%s4 + $0x78] sm:$0xff]
    %v133 = vld [vmem:[%s4 + $0x80] sm:$0xff]
    %v134 = vld [vmem:[%s4 + $0x88] sm:$0xff]
    %v135 = vld [vmem:[%s4 + $0x90] sm:$0xff]
    %v136 = vld [vmem:[%s4 + $0x98] sm:$0xff]
    %v137 = vld [vmem:[%s4 + $0xa0] sm:$0xff]
    %v138 = vld [vmem:[%s4 + $0xa8] sm:$0xff]
    %v139 = vld [vmem:[%s4 + $0xb0] sm:$0xff]
    %v140 = vld [vmem:[%s4 + $0xb8] sm:$0xff]
    %v141 = vld [vmem:[%s4 + $0xc0] sm:$0xff]
    %v142 = vld [vmem:[%s4 + $0xc8] sm:$0xff]
    %v143 = vld [vmem:[%s4 + $0xd0] sm:$0xff]
    %v144 = vld [vmem:[%s4 + $0xd8] sm:$0xff]
    %v145 = vld [vmem:[%s4 + $0xe0] sm:$0xff]
    %v146 = vld [vmem:[%s4 + $0xe8] sm:$0xff]
    %v147 = vld [vmem:[%s4 + $0xf0] sm:$0xff]
    %v148 = vld [vmem:[%s4 + $0xf8] sm:$0xff]
    %v149 = vld [vmem:[%s4 + $0x100] sm:$0xff]
    %v150 = vld [vmem:[%s4 + $0x108] sm:$0xff]
    %v151 = vld [vmem:[%s4 + $0x110] sm:$0xff]
    %v152 = vld [vmem:[%s4 + $0x118] sm:$0xff]
    %v153 = vld [vmem:[%s4 + $0x120] sm:$0xff]
    %v154 = vld [vmem:[%s4 + $0x128] sm:$0xff]
    %v155 = vld [vmem:[%s4 + $0x130] sm:$0xff]
    %v156 = vld [vmem:[%s4 + $0x138] sm:$0xff]
    %v157 = vld [vmem:[%s4 + $0x140] sm:$0xff]
    %v158 = vld [vmem:[%s4 + $0x148] sm:$0xff]
    %v159 = vld [vmem:[%s4 + $0x150] sm:$0xff]
    %v160 = vld [vmem:[%s4 + $0x158] sm:$0xff]
    %v161 = vld [vmem:[%s4 + $0x160] sm:$0xff]
    %v162 = vld [vmem:[%s4 + $0x168] sm:$0xff]
    %v163 = vld [vmem:[%s4 + $0x170] sm:$0xff]
    %v164 = vld [vmem:[%s4 + $0x178] sm:$0xff]
    %v165 = vld [vmem:[%s4 + $0x180] sm:$0xff]
    %v166 = vld [vmem:[%s4 + $0x188] sm:$0xff]
    %v167 = vld [vmem:[%s4 + $0x190] sm:$0xff]
    %v168 = vld [vmem:[%s4 + $0x198] sm:$0xff]
    %v169 = vld [vmem:[%s4 + $0x1a0] sm:$0xff]
    %v170 = vld [vmem:[%s4 + $0x1a8] sm:$0xff]
    %v171 = vld [vmem:[%s4 + $0x1b0] sm:$0xff]
    %v172 = vld [vmem:[%s4 + $0x1b8] sm:$0xff]
    %v173 = vld [vmem:[%s4 + $0x1c0] sm:$0xff]
    %v174 = vld [vmem:[%s4 + $0x1c8] sm:$0xff]
    %v175 = vld [vmem:[%s4 + $0x1d0] sm:$0xff]
    %v176 = vld [vmem:[%s4 + $0x1d8] sm:$0xff]
    %v177 = vld [vmem:[%s4 + $0x1e0] sm:$0xff]
    %v178 = vld [vmem:[%s4 + $0x1e8] sm:$0xff]
    %v179 = vld [vmem:[%s4 + $0x1f0] sm:$0xff]
    %v180 = vld [vmem:[%s4 + $0x1f8] sm:$0xff]
    %v181 = vld [vmem:[%s4 + $0x200] sm:$0xff]
    %v182 = vld [vmem:[%s4 + $0x208] sm:$0xff]
    %v183 = vld [vmem:[%s4 + $0x210] sm:$0xff]
    %v184 = vld [vmem:[%s4 + $0x218] sm:$0xff]
    %v185 = vld [vmem:[%s4 + $0x220] sm:$0xff]
    %v186 = vld [vmem:[%s4 + $0x228] sm:$0xff]
    %v187 = vld [vmem:[%s4 + $0x230] sm:$0xff]
    %v188 = vld [vmem:[%s4 + $0x238] sm:$0xff]
    %v189 = vld [vmem:[%s4 + $0x240] sm:$0xff]
    %v190 = vld [vmem:[%s4 + $0x248] sm:$0xff]
    %v191 = vld [vmem:[%s4 + $0x250] sm:$0xff]
    %v192 = vld [vmem:[%s4 + $0x258] sm:$0xff]
    %v193 = vld [vmem:[%s4 + $0x260] sm:$0xff]
    %v194 = vld [vmem:[%s4 + $0x268] sm:$0xff]
    %v195 = vld [vmem:[%s4 + $0x270] sm:$0xff]
    %v196 = vld [vmem:[%s4 + $0x278] sm:$0xff]
    %v197 = vld [vmem:[%s4 + $0x280] sm:$0xff]
    %v198 = vld [vmem:[%s4 + $0x288] sm:$0xff]
    %v199 = vld [vmem:[%s4 + $0x290] sm:$0xff]
    %v200 = vld [vmem:[%s4 + $0x298] sm:$0xff]
    %v201 = vld [vmem:[%s4 + $0x2a0] sm:$0xff]
    %v202 = vld [vmem:[%s4 + $0x2a8] sm:$0xff]
    %v203 = vld [vmem:[%s4 + $0x2b0] sm:$0xff]
    %v204 = vld [vmem:[%s4 + $0x2b8] sm:$0xff]
    %v205 = vld [vmem:[%s4 + $0x2c0] sm:$0xff]
    %v206 = vld [vmem:[%s4 + $0x2c8] sm:$0xff]
    %v207 = vld [vmem:[%s4 + $0x2d0] sm:$0xff]
    %v208 = vld [vmem:[%s4 + $0x2d8] sm:$0xff]
    %v209 = vld [vmem:[%s4 + $0x2e0] sm:$0xff]
    %v210 = vld [vmem:[%s4 + $0x2e8] sm:$0xff]
    %v211 = vld [vmem:[%s4 + $0x2f0] sm:$0xff]
    %v212 = vld [vmem:[%s4 + $0x2f8] sm:$0xff]
    %v213 = vld [vmem:[%s4 + $0x300] sm:$0xff]
    %v214 = vld [vmem:[%s4 + $0x308] sm:$0xff]
    %v215 = vld [vmem:[%s4 + $0x310] sm:$0xff]
    %v216 = vld [vmem:[%s4 + $0x318] sm:$0xff]
    %v217 = vld [vmem:[%s4 + $0x320] sm:$0xff]
    %v218 = vld [vmem:[%s4 + $0x328] sm:$0xff]
    %v219 = vld [vmem:[%s4 + $0x330] sm:$0xff]
    %v220 = vld [vmem:[%s4 + $0x338] sm:$0xff]
    %v221 = vld [vmem:[%s4 + $0x340] sm:$0xff]
    %v222 = vld [vmem:[%s4 + $0x348] sm:$0xff]
    %v223 = vld [vmem:[%s4 + $0x350] sm:$0xff]
    %v224 = vld [vmem:[%s4 + $0x358] sm:$0xff]
    %v225 = vld [vmem:[%s4 + $0x360] sm:$0xff]
    %v226 = vld [vmem:[%s4 + $0x368] sm:$0xff]
    %v227 = vld [vmem:[%s4 + $0x370] sm:$0xff]
    %v228 = vld [vmem:[%s4 + $0x378] sm:$0xff]
    %v229 = vld [vmem:[%s4 + $0x380] sm:$0xff]
    %v230 = vld [vmem:[%s4 + $0x388] sm:$0xff]
    %v231 = vld [vmem:[%s4 + $0x390] sm:$0xff]
    %v232 = vld [vmem:[%s4 + $0x398] sm:$0xff]
    %v233 = vld [vmem:[%s4 + $0x3a0] sm:$0xff]
    %v234 = vld [vmem:[%s4 + $0x3a8] sm:$0xff]
    %v235 = vld [vmem:[%s4 + $0x3b0] sm:$0xff]
    %v236 = vld [vmem:[%s4 + $0x3b8] sm:$0xff]
    %vm237 = vcmask 261120
    %v239 = vsel %vm237, %v116, 0
    %241 = vmatpush.msra.mxu0 %v207
    %242 = vmatpush.msra.mxu0 %v201
    %243 = vmatpush.msra.mxu0 %v195
    %244 = vmatpush.msra.mxu0 %v189
    %245 = vmatpush.msra.mxu0 %v183
    %246 = vmatpush.msra.mxu0 %v177
    %247 = vmatpush.msra.mxu0 %v171
    %248 = vmatpush.msra.mxu0 %v165
    %249 = vmatpush.msra.mxu0 %v159
    %250 = vmatpush.msra.mxu0 %v153
    %251 = vmatpush.msra.mxu0 %v147
    %252 = vmatpush.msra.mxu0 %v141
    %253 = vmatpush.msra.mxu0 %v135
    %254 = vmatpush.msra.mxu0 %v129
    %255 = vmatpush.msra.mxu0 %v123
    %256 = vmatpush.msra.mxu0 %v117
    %257 = vmatmul.f32.gmra.mxu0 %v115
    %v258 = vpop.f32.mrf.mxu0
    %v259 = vadd.f32 0.0, %v258
    %260 = vdwg.mxu0
    %261 = vmatpush.msra.mxu0 0.0
    %262 = vmatpush.msra.mxu0 0.0
    %263 = vmatpush.msra.mxu0 0.0
    %264 = vmatpush.msra.mxu0 0.0
    %265 = vmatpush.msra.mxu0 0.0
    %266 = vmatpush.msra.mxu0 0.0
    %267 = vmatpush.msra.mxu0 0.0
    %268 = vmatpush.msra.mxu0 0.0
    %269 = vmatpush.msra.mxu0 0.0
    %270 = vmatpush.msra.mxu0 0.0
    %271 = vmatpush.msra.mxu0 0.0
    %272 = vmatpush.msra.mxu0 0.0
    %273 = vmatpush.msra.mxu0 %v231
    %274 = vmatpush.msra.mxu0 %v225
    %275 = vmatpush.msra.mxu0 %v219
    %276 = vmatpush.msra.mxu0 %v213
    %277 = vmatmul.f32.gmra.mxu0 %v239
    %v278 = vpop.f32.mrf.mxu0
    %v279 = vadd.f32 %v259, %v278
    %280 = vdwg.mxu0
    %281 = vmatpush.msra.mxu0 %v208
    %282 = vmatpush.msra.mxu0 %v202
    %283 = vmatpush.msra.mxu0 %v196
    %284 = vmatpush.msra.mxu0 %v190
    %285 = vmatpush.msra.mxu0 %v184
    %286 = vmatpush.msra.mxu0 %v178
    %287 = vmatpush.msra.mxu0 %v172
    %288 = vmatpush.msra.mxu0 %v166
    %289 = vmatpush.msra.mxu0 %v160
    %290 = vmatpush.msra.mxu0 %v154
    %291 = vmatpush.msra.mxu0 %v148
    %292 = vmatpush.msra.mxu0 %v142
    %293 = vmatpush.msra.mxu0 %v136
    %294 = vmatpush.msra.mxu0 %v130
    %295 = vmatpush.msra.mxu0 %v124
    %296 = vmatpush.msra.mxu0 %v118
    %297 = vmatmul.f32.gmra.mxu0 %v115
    %v298 = vpop.f32.mrf.mxu0
    %v299 = vadd.f32 0.0, %v298
    %300 = vdwg.mxu0
    %301 = vmatpush.msra.mxu0 0.0
    %302 = vmatpush.msra.mxu0 0.0
    %303 = vmatpush.msra.mxu0 0.0
    %304 = vmatpush.msra.mxu0 0.0
    %305 = vmatpush.msra.mxu0 0.0
    %306 = vmatpush.msra.mxu0 0.0
    %307 = vmatpush.msra.mxu0 0.0
    %308 = vmatpush.msra.mxu0 0.0
    %309 = vmatpush.msra.mxu0 0.0
    %310 = vmatpush.msra.mxu0 0.0
    %311 = vmatpush.msra.mxu0 0.0
    %312 = vmatpush.msra.mxu0 0.0
    %313 = vmatpush.msra.mxu0 %v232
    %314 = vmatpush.msra.mxu0 %v226
    %315 = vmatpush.msra.mxu0 %v220
    %316 = vmatpush.msra.mxu0 %v214
    %317 = vmatmul.f32.gmra.mxu0 %v239
    %v318 = vpop.f32.mrf.mxu0
    %v319 = vadd.f32 %v299, %v318
    %320 = vdwg.mxu0
    %321 = vmatpush.msra.mxu0 %v209
    %322 = vmatpush.msra.mxu0 %v203
    %323 = vmatpush.msra.mxu0 %v197
    %324 = vmatpush.msra.mxu0 %v191
    %325 = vmatpush.msra.mxu0 %v185
    %326 = vmatpush.msra.mxu0 %v179
    %327 = vmatpush.msra.mxu0 %v173
    %328 = vmatpush.msra.mxu0 %v167
    %329 = vmatpush.msra.mxu0 %v161
    %330 = vmatpush.msra.mxu0 %v155
    %331 = vmatpush.msra.mxu0 %v149
    %332 = vmatpush.msra.mxu0 %v143
    %333 = vmatpush.msra.mxu0 %v137
    %334 = vmatpush.msra.mxu0 %v131
    %335 = vmatpush.msra.mxu0 %v125
    %336 = vmatpush.msra.mxu0 %v119
    %337 = vmatmul.f32.gmra.mxu0 %v115
    %v338 = vpop.f32.mrf.mxu0
    %v339 = vadd.f32 0.0, %v338
    %340 = vdwg.mxu0
    %341 = vmatpush.msra.mxu0 0.0
    %342 = vmatpush.msra.mxu0 0.0
    %343 = vmatpush.msra.mxu0 0.0
    %344 = vmatpush.msra.mxu0 0.0
    %345 = vmatpush.msra.mxu0 0.0
    %346 = vmatpush.msra.mxu0 0.0
    %347 = vmatpush.msra.mxu0 0.0
    %348 = vmatpush.msra.mxu0 0.0
    %349 = vmatpush.msra.mxu0 0.0
    %350 = vmatpush.msra.mxu0 0.0
    %351 = vmatpush.msra.mxu0 0.0
    %352 = vmatpush.msra.mxu0 0.0
    %353 = vmatpush.msra.mxu0 %v233
    %354 = vmatpush.msra.mxu0 %v227
    %355 = vmatpush.msra.mxu0 %v221
    %356 = vmatpush.msra.mxu0 %v215
    %357 = vmatmul.f32.gmra.mxu0 %v239
    %v358 = vpop.f32.mrf.mxu0
    %v359 = vadd.f32 %v339, %v358
    %360 = vdwg.mxu0
    %361 = vmatpush.msra.mxu0 %v210
    %362 = vmatpush.msra.mxu0 %v204
    %363 = vmatpush.msra.mxu0 %v198
    %364 = vmatpush.msra.mxu0 %v192
    %365 = vmatpush.msra.mxu0 %v186
    %366 = vmatpush.msra.mxu0 %v180
    %367 = vmatpush.msra.mxu0 %v174
    %368 = vmatpush.msra.mxu0 %v168
    %369 = vmatpush.msra.mxu0 %v162
    %370 = vmatpush.msra.mxu0 %v156
    %371 = vmatpush.msra.mxu0 %v150
    %372 = vmatpush.msra.mxu0 %v144
    %373 = vmatpush.msra.mxu0 %v138
    %374 = vmatpush.msra.mxu0 %v132
    %375 = vmatpush.msra.mxu0 %v126
    %376 = vmatpush.msra.mxu0 %v120
    %377 = vmatmul.f32.gmra.mxu0 %v115
    %v378 = vpop.f32.mrf.mxu0
    %v379 = vadd.f32 0.0, %v378
    %380 = vdwg.mxu0
    %381 = vmatpush.msra.mxu0 0.0
    %382 = vmatpush.msra.mxu0 0.0
    %383 = vmatpush.msra.mxu0 0.0
    %384 = vmatpush.msra.mxu0 0.0
    %385 = vmatpush.msra.mxu0 0.0
    %386 = vmatpush.msra.mxu0 0.0
    %387 = vmatpush.msra.mxu0 0.0
    %388 = vmatpush.msra.mxu0 0.0
    %389 = vmatpush.msra.mxu0 0.0
    %390 = vmatpush.msra.mxu0 0.0
    %391 = vmatpush.msra.mxu0 0.0
    %392 = vmatpush.msra.mxu0 0.0
    %393 = vmatpush.msra.mxu0 %v234
    %394 = vmatpush.msra.mxu0 %v228
    %395 = vmatpush.msra.mxu0 %v222
    %396 = vmatpush.msra.mxu0 %v216
    %397 = vmatmul.f32.gmra.mxu0 %v239
    %v398 = vpop.f32.mrf.mxu0
    %v399 = vadd.f32 %v379, %v398
    %400 = vdwg.mxu0
    %401 = vmatpush.msra.mxu0 %v211
    %402 = vmatpush.msra.mxu0 %v205
    %403 = vmatpush.msra.mxu0 %v199
    %404 = vmatpush.msra.mxu0 %v193
    %405 = vmatpush.msra.mxu0 %v187
    %406 = vmatpush.msra.mxu0 %v181
    %407 = vmatpush.msra.mxu0 %v175
    %408 = vmatpush.msra.mxu0 %v169
    %409 = vmatpush.msra.mxu0 %v163
    %410 = vmatpush.msra.mxu0 %v157
    %411 = vmatpush.msra.mxu0 %v151
    %412 = vmatpush.msra.mxu0 %v145
    %413 = vmatpush.msra.mxu0 %v139
    %414 = vmatpush.msra.mxu0 %v133
    %415 = vmatpush.msra.mxu0 %v127
    %416 = vmatpush.msra.mxu0 %v121
    %417 = vmatmul.f32.gmra.mxu0 %v115
    %v418 = vpop.f32.mrf.mxu0
    %v419 = vadd.f32 0.0, %v418
    %420 = vdwg.mxu0
    %421 = vmatpush.msra.mxu0 0.0
    %422 = vmatpush.msra.mxu0 0.0
    %423 = vmatpush.msra.mxu0 0.0
    %424 = vmatpush.msra.mxu0 0.0
    %425 = vmatpush.msra.mxu0 0.0
    %426 = vmatpush.msra.mxu0 0.0
    %427 = vmatpush.msra.mxu0 0.0
    %428 = vmatpush.msra.mxu0 0.0
    %429 = vmatpush.msra.mxu0 0.0
    %430 = vmatpush.msra.mxu0 0.0
    %431 = vmatpush.msra.mxu0 0.0
    %432 = vmatpush.msra.mxu0 0.0
    %433 = vmatpush.msra.mxu0 %v235
    %434 = vmatpush.msra.mxu0 %v229
    %435 = vmatpush.msra.mxu0 %v223
    %436 = vmatpush.msra.mxu0 %v217
    %437 = vmatmul.f32.gmra.mxu0 %v239
    %v438 = vpop.f32.mrf.mxu0
    %v439 = vadd.f32 %v419, %v438
    %440 = vdwg.mxu0
    %441 = vmatpush.msra.mxu0 %v212
    %442 = vmatpush.msra.mxu0 %v206
    %443 = vmatpush.msra.mxu0 %v200
    %444 = vmatpush.msra.mxu0 %v194
    %445 = vmatpush.msra.mxu0 %v188
    %446 = vmatpush.msra.mxu0 %v182
    %447 = vmatpush.msra.mxu0 %v176
    %448 = vmatpush.msra.mxu0 %v170
    %449 = vmatpush.msra.mxu0 %v164
    %450 = vmatpush.msra.mxu0 %v158
    %451 = vmatpush.msra.mxu0 %v152
    %452 = vmatpush.msra.mxu0 %v146
    %453 = vmatpush.msra.mxu0 %v140
    %454 = vmatpush.msra.mxu0 %v134
    %455 = vmatpush.msra.mxu0 %v128
    %456 = vmatpush.msra.mxu0 %v122
    %457 = vmatmul.f32.gmra.mxu0 %v115
    %v458 = vpop.f32.mrf.mxu0
    %v459 = vadd.f32 0.0, %v458
    %460 = vdwg.mxu0
    %461 = vmatpush.msra.mxu0 0.0
    %462 = vmatpush.msra.mxu0 0.0
    %463 = vmatpush.msra.mxu0 0.0
    %464 = vmatpush.msra.mxu0 0.0
    %465 = vmatpush.msra.mxu0 0.0
    %466 = vmatpush.msra.mxu0 0.0
    %467 = vmatpush.msra.mxu0 0.0
    %468 = vmatpush.msra.mxu0 0.0
    %469 = vmatpush.msra.mxu0 0.0
    %470 = vmatpush.msra.mxu0 0.0
    %471 = vmatpush.msra.mxu0 0.0
    %472 = vmatpush.msra.mxu0 0.0
    %473 = vmatpush.msra.mxu0 %v236
    %474 = vmatpush.msra.mxu0 %v230
    %475 = vmatpush.msra.mxu0 %v224
    %476 = vmatpush.msra.mxu0 %v218
    %477 = vmatmul.f32.gmra.mxu0 %v239
    %v478 = vpop.f32.mrf.mxu0
    %v479 = vadd.f32 %v459, %v478
    %480 = vdwg.mxu0
    %vm481 = vcmp.gt.f32.partialorder %v479, 0.0
    %v482 = vmul.f32 %v479, 0.2
    %v483 = vsel %vm481, %v479, %v482
    %vm484 = vcmp.gt.f32.partialorder %v42, 0.0
    %v485 = vsel %vm484, %v483, -1e+30
    %v486 = vld [vmem:[%s5] sm:$0x1]
    %vm487 = vcmask 39936
    %v488 = vsel %vm487, %v485, -inf
    %489 = vmax.xlane.f32.xlu0 %v488
    %v490 = vpop.xlane.xlu0 %489
    %v491 = vsub.f32 %v485, %v490
    %v492 = vmul.f32 %v491, 1.442695
    %v493 = vpow.pop %v492
    %v494 = vsel %vm487, %v493, 0.0
    %495 = vadd.xlane.f32.xlu0 %v494
    %v496 = vpop.xlane.xlu0 %495
    %v497 = vrcp.pop %v496
    %v498 = vmul.f32 %v493, %v497
    %500 = vset.pattern.permute.xlu0 0
    %501 = vperm.xlu0 %500, %v498
    %v502 = vpop.permute.xlu0 %501
    %v504 = vmul.f32 %v502, %v279
    %505 = vset.pattern.permute.xlu0 1
    %506 = vperm.xlu0 %505, %v498
    %v507 = vpop.permute.xlu0 %506
    %v509 = vmul.f32 %v507, %v319
    %v510 = vadd.f32 %v504, %v509
    %511 = vset.pattern.permute.xlu0 2
    %512 = vperm.xlu0 %511, %v498
    %v513 = vpop.permute.xlu0 %512
    %v515 = vmul.f32 %v513, %v359
    %v516 = vadd.f32 %v510, %v515
    %517 = vset.pattern.permute.xlu0 3
    %518 = vperm.xlu0 %517, %v498
    %v519 = vpop.permute.xlu0 %518
    %v521 = vmul.f32 %v519, %v399
    %v522 = vadd.f32 %v516, %v521
    %523 = vset.pattern.permute.xlu0 4
    %524 = vperm.xlu0 %523, %v498
    %v525 = vpop.permute.xlu0 %524
    %v527 = vmul.f32 %v525, %v439
    %v528 = vadd.f32 %v522, %v527
    %v530 = vperm.slane %v486, 0
    %v532 = vadd.f32 %v528, %v530
    %v533 = vmax.f32 %v532, 0.0
    %vm534 = vcmask 80936
    %v535 = vsel %vm534, %v485, -inf
    %536 = vmax.xlane.f32.xlu0 %v535
    %v537 = vpop.xlane.xlu0 %536
    %v538 = vsub.f32 %v485, %v537
    %v539 = vmul.f32 %v538, 1.442695
    %v540 = vpow.pop %v539
    %542 = vrot.lane.b32.xlu0 %v540, 123
    %v543 = vpop.permute.xlu0 %542
    %v545 = vsel %vm487, %v543, 0.0
    %546 = vadd.xlane.f32.xlu0 %v545
    %v547 = vpop.xlane.xlu0 %546
    %v548 = vrcp.pop %v547
    %v549 = vmul.f32 %v540, %v548
    %551 = vset.pattern.permute.xlu0 5
    %552 = vperm.xlu0 %551, %v549
    %v553 = vpop.permute.xlu0 %552
    %v555 = vmul.f32 %v553, %v279
    %556 = vset.pattern.permute.xlu0 6
    %557 = vperm.xlu0 %556, %v549
    %v558 = vpop.permute.xlu0 %557
    %v560 = vmul.f32 %v558, %v319
    %v561 = vadd.f32 %v555, %v560
    %562 = vset.pattern.permute.xlu0 7
    %563 = vperm.xlu0 %562, %v549
    %v564 = vpop.permute.xlu0 %563
    %v566 = vmul.f32 %v564, %v359
    %v567 = vadd.f32 %v561, %v566
    %568 = vset.pattern.permute.xlu0 8
    %569 = vperm.xlu0 %568, %v549
    %v570 = vpop.permute.xlu0 %569
    %v572 = vmul.f32 %v570, %v399
    %v573 = vadd.f32 %v567, %v572
    %574 = vset.pattern.permute.xlu0 9
    %575 = vperm.xlu0 %574, %v549
    %v576 = vpop.permute.xlu0 %575
    %v578 = vmul.f32 %v576, %v439
    %v579 = vadd.f32 %v573, %v578
    %v580 = vadd.f32 %v579, %v530
    %v581 = vmax.f32 %v580, 0.0
    %vm582 = vcmask 121936
    %v583 = vsel %vm582, %v485, -inf
    %584 = vmax.xlane.f32.xlu0 %v583
    %v585 = vpop.xlane.xlu0 %584
    %v586 = vsub.f32 %v485, %v585
    %v587 = vmul.f32 %v586, 1.442695
    %v588 = vpow.pop %v587
    %590 = vrot.lane.b32.xlu0 %v588, 118
    %v591 = vpop.permute.xlu0 %590
    %v593 = vsel %vm487, %v591, 0.0
    %594 = vadd.xlane.f32.xlu0 %v593
    %v595 = vpop.xlane.xlu0 %594
    %v596 = vrcp.pop %v595
    %v597 = vmul.f32 %v588, %v596
    %599 = vset.pattern.permute.xlu0 10
    %600 = vperm.xlu0 %599, %v597
    %v601 = vpop.permute.xlu0 %600
    %v603 = vmul.f32 %v601, %v279
    %604 = vset.pattern.permute.xlu0 11
    %605 = vperm.xlu0 %604, %v597
    %v606 = vpop.permute.xlu0 %605
    %v608 = vmul.f32 %v606, %v319
    %v609 = vadd.f32 %v603, %v608
    %610 = vset.pattern.permute.xlu0 12
    %611 = vperm.xlu0 %610, %v597
    %v612 = vpop.permute.xlu0 %611
    %v614 = vmul.f32 %v612, %v359
    %v615 = vadd.f32 %v609, %v614
    %616 = vset.pattern.permute.xlu0 13
    %617 = vperm.xlu0 %616, %v597
    %v618 = vpop.permute.xlu0 %617
    %v620 = vmul.f32 %v618, %v399
    %v621 = vadd.f32 %v615, %v620
    %622 = vset.pattern.permute.xlu0 14
    %623 = vperm.xlu0 %622, %v597
    %v624 = vpop.permute.xlu0 %623
    %v626 = vmul.f32 %v624, %v439
    %v627 = vadd.f32 %v621, %v626
    %v628 = vadd.f32 %v627, %v530
    %v629 = vmax.f32 %v628, 0.0
    %vm630 = vcmask 162936
    %v631 = vsel %vm630, %v485, -inf
    %632 = vmax.xlane.f32.xlu0 %v631
    %v633 = vpop.xlane.xlu0 %632
    %v634 = vsub.f32 %v485, %v633
    %v635 = vmul.f32 %v634, 1.442695
    %v636 = vpow.pop %v635
    %638 = vrot.lane.b32.xlu0 %v636, 113
    %v639 = vpop.permute.xlu0 %638
    %v641 = vsel %vm487, %v639, 0.0
    %642 = vadd.xlane.f32.xlu0 %v641
    %v643 = vpop.xlane.xlu0 %642
    %v644 = vrcp.pop %v643
    %v645 = vmul.f32 %v636, %v644
    %647 = vset.pattern.permute.xlu0 15
    %648 = vperm.xlu0 %647, %v645
    %v649 = vpop.permute.xlu0 %648
    %v651 = vmul.f32 %v649, %v279
    %652 = vset.pattern.permute.xlu0 16
    %653 = vperm.xlu0 %652, %v645
    %v654 = vpop.permute.xlu0 %653
    %v656 = vmul.f32 %v654, %v319
    %v657 = vadd.f32 %v651, %v656
    %658 = vset.pattern.permute.xlu0 17
    %659 = vperm.xlu0 %658, %v645
    %v660 = vpop.permute.xlu0 %659
    %v662 = vmul.f32 %v660, %v359
    %v663 = vadd.f32 %v657, %v662
    %664 = vset.pattern.permute.xlu0 18
    %665 = vperm.xlu0 %664, %v645
    %v666 = vpop.permute.xlu0 %665
    %v668 = vmul.f32 %v666, %v399
    %v669 = vadd.f32 %v663, %v668
    %670 = vset.pattern.permute.xlu0 19
    %671 = vperm.xlu0 %670, %v645
    %v672 = vpop.permute.xlu0 %671
    %v674 = vmul.f32 %v672, %v439
    %v675 = vadd.f32 %v669, %v674
    %v676 = vadd.f32 %v675, %v530
    %v677 = vmax.f32 %v676, 0.0
    %vm678 = vcmask 203936
    %v679 = vsel %vm678, %v485, -inf
    %680 = vmax.xlane.f32.xlu0 %v679
    %v681 = vpop.xlane.xlu0 %680
    %v682 = vsub.f32 %v485, %v681
    %v683 = vmul.f32 %v682, 1.442695
    %v684 = vpow.pop %v683
    %686 = vrot.lane.b32.xlu0 %v684, 108
    %v687 = vpop.permute.xlu0 %686
    %v689 = vsel %vm487, %v687, 0.0
    %690 = vadd.xlane.f32.xlu0 %v689
    %v691 = vpop.xlane.xlu0 %690
    %v692 = vrcp.pop %v691
    %v693 = vmul.f32 %v684, %v692
    %695 = vset.pattern.permute.xlu0 20
    %696 = vperm.xlu0 %695, %v693
    %v697 = vpop.permute.xlu0 %696
    %v699 = vmul.f32 %v697, %v279
    %700 = vset.pattern.permute.xlu0 21
    %701 = vperm.xlu0 %700, %v693
    %v702 = vpop.permute.xlu0 %701
    %v704 = vmul.f32 %v702, %v319
    %v705 = vadd.f32 %v699, %v704
    %706 = vset.pattern.permute.xlu0 22
    %707 = vperm.xlu0 %706, %v693
    %v708 = vpop.permute.xlu0 %707
    %v710 = vmul.f32 %v708, %v359
    %v711 = vadd.f32 %v705, %v710
    %712 = vset.pattern.permute.xlu0 23
    %713 = vperm.xlu0 %712, %v693
    %v714 = vpop.permute.xlu0 %713
    %v716 = vmul.f32 %v714, %v399
    %v717 = vadd.f32 %v711, %v716
    %718 = vset.pattern.permute.xlu0 24
    %719 = vperm.xlu0 %718, %v693
    %v720 = vpop.permute.xlu0 %719
    %v722 = vmul.f32 %v720, %v439
    %v723 = vadd.f32 %v717, %v722
    %v724 = vadd.f32 %v723, %v530
    %v725 = vmax.f32 %v724, 0.0
    %v726 = vld [vmem:[%s6] sm:$0xff]
    %v727 = vld [vmem:[%s6 + $0x8] sm:$0xff]
    %v728 = vld [vmem:[%s6 + $0x10] sm:$0xff]
    %v729 = vld [vmem:[%s6 + $0x18] sm:$0xff]
    %v730 = vld [vmem:[%s6 + $0x20] sm:$0xff]
    %v731 = vld [vmem:[%s6 + $0x28] sm:$0xff]
    %v732 = vld [vmem:[%s6 + $0x30] sm:$0xff]
    %v733 = vld [vmem:[%s6 + $0x38] sm:$0xff]
    %v734 = vld [vmem:[%s6 + $0x40] sm:$0xff]
    %v735 = vld [vmem:[%s6 + $0x48] sm:$0xff]
    %v736 = vld [vmem:[%s6 + $0x50] sm:$0xff]
    %v737 = vld [vmem:[%s6 + $0x58] sm:$0xff]
    %v738 = vld [vmem:[%s6 + $0x60] sm:$0xff]
    %v739 = vld [vmem:[%s6 + $0x68] sm:$0xff]
    %v740 = vld [vmem:[%s6 + $0x70] sm:$0xff]
    %v741 = vld [vmem:[%s6 + $0x78] sm:$0xff]
    %v742 = vld [vmem:[%s6 + $0x80] sm:$0xff]
    %v743 = vld [vmem:[%s6 + $0x88] sm:$0xff]
    %v744 = vld [vmem:[%s6 + $0x90] sm:$0xff]
    %v745 = vld [vmem:[%s6 + $0x98] sm:$0xff]
    %v746 = vld [vmem:[%s6 + $0xa0] sm:$0xff]
    %v747 = vld [vmem:[%s6 + $0xa8] sm:$0xff]
    %v748 = vld [vmem:[%s6 + $0xb0] sm:$0xff]
    %v749 = vld [vmem:[%s6 + $0xb8] sm:$0xff]
    %v750 = vld [vmem:[%s6 + $0xc0] sm:$0xff]
    %v751 = vld [vmem:[%s6 + $0xc8] sm:$0xff]
    %v752 = vld [vmem:[%s6 + $0xd0] sm:$0xff]
    %v753 = vld [vmem:[%s6 + $0xd8] sm:$0xff]
    %v754 = vld [vmem:[%s6 + $0xe0] sm:$0xff]
    %v755 = vld [vmem:[%s6 + $0xe8] sm:$0xff]
    %v756 = vld [vmem:[%s6 + $0xf0] sm:$0xff]
    %v757 = vld [vmem:[%s6 + $0xf8] sm:$0xff]
    %v758 = vld [vmem:[%s6 + $0x100] sm:$0xff]
    %v759 = vld [vmem:[%s6 + $0x108] sm:$0xff]
    %v760 = vld [vmem:[%s6 + $0x110] sm:$0xff]
    %v761 = vld [vmem:[%s6 + $0x118] sm:$0xff]
    %v762 = vld [vmem:[%s6 + $0x120] sm:$0xff]
    %v763 = vld [vmem:[%s6 + $0x128] sm:$0xff]
    %v764 = vld [vmem:[%s6 + $0x130] sm:$0xff]
    %v765 = vld [vmem:[%s6 + $0x138] sm:$0xff]
    %v766 = vld [vmem:[%s6 + $0x140] sm:$0xff]
    %v767 = vld [vmem:[%s6 + $0x148] sm:$0xff]
    %v768 = vld [vmem:[%s6 + $0x150] sm:$0xff]
    %v769 = vld [vmem:[%s6 + $0x158] sm:$0xff]
    %v770 = vld [vmem:[%s6 + $0x160] sm:$0xff]
    %v771 = vld [vmem:[%s6 + $0x168] sm:$0xff]
    %v772 = vld [vmem:[%s6 + $0x170] sm:$0xff]
    %v773 = vld [vmem:[%s6 + $0x178] sm:$0xff]
    %v774 = vld [vmem:[%s6 + $0x180] sm:$0xff]
    %v775 = vld [vmem:[%s6 + $0x188] sm:$0xff]
    %v776 = vld [vmem:[%s6 + $0x190] sm:$0xff]
    %v777 = vld [vmem:[%s6 + $0x198] sm:$0xff]
    %v778 = vld [vmem:[%s6 + $0x1a0] sm:$0xff]
    %v779 = vld [vmem:[%s6 + $0x1a8] sm:$0xff]
    %v780 = vld [vmem:[%s6 + $0x1b0] sm:$0xff]
    %v781 = vld [vmem:[%s6 + $0x1b8] sm:$0xff]
    %v782 = vld [vmem:[%s6 + $0x1c0] sm:$0xff]
    %v783 = vld [vmem:[%s6 + $0x1c8] sm:$0xff]
    %v784 = vld [vmem:[%s6 + $0x1d0] sm:$0xff]
    %v785 = vld [vmem:[%s6 + $0x1d8] sm:$0xff]
    %v786 = vld [vmem:[%s6 + $0x1e0] sm:$0xff]
    %v787 = vld [vmem:[%s6 + $0x1e8] sm:$0xff]
    %v788 = vld [vmem:[%s6 + $0x1f0] sm:$0xff]
    %v789 = vld [vmem:[%s6 + $0x1f8] sm:$0xff]
    %v790 = vld [vmem:[%s6 + $0x200] sm:$0xff]
    %v791 = vld [vmem:[%s6 + $0x208] sm:$0xff]
    %v792 = vld [vmem:[%s6 + $0x210] sm:$0xff]
    %v793 = vld [vmem:[%s6 + $0x218] sm:$0xff]
    %v794 = vld [vmem:[%s6 + $0x220] sm:$0xff]
    %v795 = vld [vmem:[%s6 + $0x228] sm:$0xff]
    %v796 = vld [vmem:[%s6 + $0x230] sm:$0xff]
    %v797 = vld [vmem:[%s6 + $0x238] sm:$0xff]
    %v798 = vld [vmem:[%s6 + $0x240] sm:$0xff]
    %v799 = vld [vmem:[%s6 + $0x248] sm:$0xff]
    %v800 = vld [vmem:[%s6 + $0x250] sm:$0xff]
    %v801 = vld [vmem:[%s6 + $0x258] sm:$0xff]
    %v802 = vld [vmem:[%s6 + $0x260] sm:$0xff]
    %v803 = vld [vmem:[%s6 + $0x268] sm:$0xff]
    %v804 = vld [vmem:[%s6 + $0x270] sm:$0xff]
    %v805 = vld [vmem:[%s6 + $0x278] sm:$0xff]
    %v806 = vld [vmem:[%s6 + $0x280] sm:$0xff]
    %v807 = vld [vmem:[%s6 + $0x288] sm:$0xff]
    %v808 = vld [vmem:[%s6 + $0x290] sm:$0xff]
    %v809 = vld [vmem:[%s6 + $0x298] sm:$0xff]
    %v810 = vld [vmem:[%s6 + $0x2a0] sm:$0xff]
    %v811 = vld [vmem:[%s6 + $0x2a8] sm:$0xff]
    %v812 = vld [vmem:[%s6 + $0x2b0] sm:$0xff]
    %v813 = vld [vmem:[%s6 + $0x2b8] sm:$0xff]
    %v814 = vld [vmem:[%s6 + $0x2c0] sm:$0xff]
    %v815 = vld [vmem:[%s6 + $0x2c8] sm:$0xff]
    %v816 = vld [vmem:[%s6 + $0x2d0] sm:$0xff]
    %v817 = vld [vmem:[%s6 + $0x2d8] sm:$0xff]
    %v818 = vld [vmem:[%s6 + $0x2e0] sm:$0xff]
    %v819 = vld [vmem:[%s6 + $0x2e8] sm:$0xff]
    %v820 = vld [vmem:[%s6 + $0x2f0] sm:$0xff]
    %v821 = vld [vmem:[%s6 + $0x2f8] sm:$0xff]
    %v822 = vld [vmem:[%s6 + $0x300] sm:$0xff]
    %v823 = vld [vmem:[%s6 + $0x308] sm:$0xff]
    %v824 = vld [vmem:[%s6 + $0x310] sm:$0xff]
    %v825 = vld [vmem:[%s6 + $0x318] sm:$0xff]
    %v826 = vld [vmem:[%s6 + $0x320] sm:$0xff]
    %v827 = vld [vmem:[%s6 + $0x328] sm:$0xff]
    %v828 = vld [vmem:[%s6 + $0x330] sm:$0xff]
    %v829 = vld [vmem:[%s6 + $0x338] sm:$0xff]
    %v830 = vld [vmem:[%s6 + $0x340] sm:$0xff]
    %v831 = vld [vmem:[%s6 + $0x348] sm:$0xff]
    %v832 = vld [vmem:[%s6 + $0x350] sm:$0xff]
    %v833 = vld [vmem:[%s6 + $0x358] sm:$0xff]
    %v834 = vld [vmem:[%s6 + $0x360] sm:$0xff]
    %v835 = vld [vmem:[%s6 + $0x368] sm:$0xff]
    %v836 = vld [vmem:[%s6 + $0x370] sm:$0xff]
    %v837 = vld [vmem:[%s6 + $0x378] sm:$0xff]
    %v838 = vld [vmem:[%s6 + $0x380] sm:$0xff]
    %v839 = vld [vmem:[%s6 + $0x388] sm:$0xff]
    %v840 = vld [vmem:[%s6 + $0x390] sm:$0xff]
    %v841 = vld [vmem:[%s6 + $0x398] sm:$0xff]
    %v842 = vld [vmem:[%s6 + $0x3a0] sm:$0xff]
    %v843 = vld [vmem:[%s6 + $0x3a8] sm:$0xff]
    %v844 = vld [vmem:[%s6 + $0x3b0] sm:$0xff]
    %v845 = vld [vmem:[%s6 + $0x3b8] sm:$0xff]
    %v846 = vld [vmem:[%s6 + $0x3c0] sm:$0xff]
    %v847 = vld [vmem:[%s6 + $0x3c8] sm:$0xff]
    %v848 = vld [vmem:[%s6 + $0x3d0] sm:$0xff]
    %v849 = vld [vmem:[%s6 + $0x3d8] sm:$0xff]
    %v850 = vld [vmem:[%s6 + $0x3e0] sm:$0xff]
    %v851 = vld [vmem:[%s6 + $0x3e8] sm:$0xff]
    %v852 = vld [vmem:[%s6 + $0x3f0] sm:$0xff]
    %v853 = vld [vmem:[%s6 + $0x3f8] sm:$0xff]
    %v854 = vld [vmem:[%s6 + $0x400] sm:$0xff]
    %v855 = vld [vmem:[%s6 + $0x408] sm:$0xff]
    %v856 = vld [vmem:[%s6 + $0x410] sm:$0xff]
    %v857 = vld [vmem:[%s6 + $0x418] sm:$0xff]
    %v858 = vld [vmem:[%s6 + $0x420] sm:$0xff]
    %v859 = vld [vmem:[%s6 + $0x428] sm:$0xff]
    %v860 = vld [vmem:[%s6 + $0x430] sm:$0xff]
    %v861 = vld [vmem:[%s6 + $0x438] sm:$0xff]
    %v862 = vld [vmem:[%s6 + $0x440] sm:$0xff]
    %v863 = vld [vmem:[%s6 + $0x448] sm:$0xff]
    %v864 = vld [vmem:[%s6 + $0x450] sm:$0xff]
    %v865 = vld [vmem:[%s6 + $0x458] sm:$0xff]
    %v866 = vld [vmem:[%s6 + $0x460] sm:$0xff]
    %v867 = vld [vmem:[%s6 + $0x468] sm:$0xff]
    %v868 = vld [vmem:[%s6 + $0x470] sm:$0xff]
    %v869 = vld [vmem:[%s6 + $0x478] sm:$0xff]
    %v870 = vld [vmem:[%s6 + $0x480] sm:$0xff]
    %v871 = vld [vmem:[%s6 + $0x488] sm:$0xff]
    %v872 = vld [vmem:[%s6 + $0x490] sm:$0xff]
    %v873 = vld [vmem:[%s6 + $0x498] sm:$0xff]
    %v874 = vld [vmem:[%s6 + $0x4a0] sm:$0xff]
    %v875 = vld [vmem:[%s6 + $0x4a8] sm:$0xff]
    %v876 = vld [vmem:[%s6 + $0x4b0] sm:$0xff]
    %v877 = vld [vmem:[%s6 + $0x4b8] sm:$0xff]
    %v878 = vld [vmem:[%s6 + $0x4c0] sm:$0xff]
    %v879 = vld [vmem:[%s6 + $0x4c8] sm:$0xff]
    %v880 = vld [vmem:[%s6 + $0x4d0] sm:$0xff]
    %v881 = vld [vmem:[%s6 + $0x4d8] sm:$0xff]
    %v882 = vld [vmem:[%s6 + $0x4e0] sm:$0xff]
    %v883 = vld [vmem:[%s6 + $0x4e8] sm:$0xff]
    %v884 = vld [vmem:[%s6 + $0x4f0] sm:$0xff]
    %v885 = vld [vmem:[%s6 + $0x4f8] sm:$0xff]
    %v886 = vld [vmem:[%s6 + $0x500] sm:$0xff]
    %v887 = vld [vmem:[%s6 + $0x508] sm:$0xff]
    %v888 = vld [vmem:[%s6 + $0x510] sm:$0xff]
    %v889 = vld [vmem:[%s6 + $0x518] sm:$0xff]
    %v890 = vld [vmem:[%s6 + $0x520] sm:$0xff]
    %v891 = vld [vmem:[%s6 + $0x528] sm:$0xff]
    %v892 = vld [vmem:[%s6 + $0x530] sm:$0xff]
    %v893 = vld [vmem:[%s6 + $0x538] sm:$0xff]
    %v894 = vld [vmem:[%s6 + $0x540] sm:$0xff]
    %v895 = vld [vmem:[%s6 + $0x548] sm:$0xff]
    %v896 = vld [vmem:[%s6 + $0x550] sm:$0xff]
    %v897 = vld [vmem:[%s6 + $0x558] sm:$0xff]
    %v898 = vld [vmem:[%s6 + $0x560] sm:$0xff]
    %v899 = vld [vmem:[%s6 + $0x568] sm:$0xff]
    %v900 = vld [vmem:[%s6 + $0x570] sm:$0xff]
    %v901 = vld [vmem:[%s6 + $0x578] sm:$0xff]
    %v902 = vld [vmem:[%s6 + $0x580] sm:$0xff]
    %v903 = vld [vmem:[%s6 + $0x588] sm:$0xff]
    %v904 = vld [vmem:[%s6 + $0x590] sm:$0xff]
    %v905 = vld [vmem:[%s6 + $0x598] sm:$0xff]
    %v906 = vld [vmem:[%s6 + $0x5a0] sm:$0xff]
    %v907 = vld [vmem:[%s6 + $0x5a8] sm:$0xff]
    %v908 = vld [vmem:[%s6 + $0x5b0] sm:$0xff]
    %v909 = vld [vmem:[%s6 + $0x5b8] sm:$0xff]
    %v910 = vld [vmem:[%s6 + $0x5c0] sm:$0xff]
    %v911 = vld [vmem:[%s6 + $0x5c8] sm:$0xff]
    %v912 = vld [vmem:[%s6 + $0x5d0] sm:$0xff]
    %v913 = vld [vmem:[%s6 + $0x5d8] sm:$0xff]
    %v914 = vld [vmem:[%s6 + $0x5e0] sm:$0xff]
    %v915 = vld [vmem:[%s6 + $0x5e8] sm:$0xff]
    %v916 = vld [vmem:[%s6 + $0x5f0] sm:$0xff]
    %v917 = vld [vmem:[%s6 + $0x5f8] sm:$0xff]
    %v918 = vld [vmem:[%s6 + $0x600] sm:$0xff]
    %v919 = vld [vmem:[%s6 + $0x608] sm:$0xff]
    %v920 = vld [vmem:[%s6 + $0x610] sm:$0xff]
    %v921 = vld [vmem:[%s6 + $0x618] sm:$0xff]
    %v922 = vld [vmem:[%s6 + $0x620] sm:$0xff]
    %v923 = vld [vmem:[%s6 + $0x628] sm:$0xff]
    %v924 = vld [vmem:[%s6 + $0x630] sm:$0xff]
    %v925 = vld [vmem:[%s6 + $0x638] sm:$0xff]
    %v926 = vld [vmem:[%s6 + $0x640] sm:$0xff]
    %v927 = vld [vmem:[%s6 + $0x648] sm:$0xff]
    %v928 = vld [vmem:[%s6 + $0x650] sm:$0xff]
    %v929 = vld [vmem:[%s6 + $0x658] sm:$0xff]
    %v930 = vld [vmem:[%s6 + $0x660] sm:$0xff]
    %v931 = vld [vmem:[%s6 + $0x668] sm:$0xff]
    %v932 = vld [vmem:[%s6 + $0x670] sm:$0xff]
    %v933 = vld [vmem:[%s6 + $0x678] sm:$0xff]
    %v934 = vld [vmem:[%s6 + $0x680] sm:$0xff]
    %v935 = vld [vmem:[%s6 + $0x688] sm:$0xff]
    %v936 = vld [vmem:[%s6 + $0x690] sm:$0xff]
    %v937 = vld [vmem:[%s6 + $0x698] sm:$0xff]
    %v938 = vld [vmem:[%s6 + $0x6a0] sm:$0xff]
    %v939 = vld [vmem:[%s6 + $0x6a8] sm:$0xff]
    %v940 = vld [vmem:[%s6 + $0x6b0] sm:$0xff]
    %v941 = vld [vmem:[%s6 + $0x6b8] sm:$0xff]
    %v942 = vld [vmem:[%s6 + $0x6c0] sm:$0xff]
    %v943 = vld [vmem:[%s6 + $0x6c8] sm:$0xff]
    %v944 = vld [vmem:[%s6 + $0x6d0] sm:$0xff]
    %v945 = vld [vmem:[%s6 + $0x6d8] sm:$0xff]
    %v946 = vld [vmem:[%s6 + $0x6e0] sm:$0xff]
    %v947 = vld [vmem:[%s6 + $0x6e8] sm:$0xff]
    %v948 = vld [vmem:[%s6 + $0x6f0] sm:$0xff]
    %v949 = vld [vmem:[%s6 + $0x6f8] sm:$0xff]
    %v950 = vld [vmem:[%s6 + $0x700] sm:$0xff]
    %v951 = vld [vmem:[%s6 + $0x708] sm:$0xff]
    %v952 = vld [vmem:[%s6 + $0x710] sm:$0xff]
    %v953 = vld [vmem:[%s6 + $0x718] sm:$0xff]
    %v954 = vld [vmem:[%s6 + $0x720] sm:$0xff]
    %v955 = vld [vmem:[%s6 + $0x728] sm:$0xff]
    %v956 = vld [vmem:[%s6 + $0x730] sm:$0xff]
    %v957 = vld [vmem:[%s6 + $0x738] sm:$0xff]
    %v958 = vld [vmem:[%s6 + $0x740] sm:$0xff]
    %v959 = vld [vmem:[%s6 + $0x748] sm:$0xff]
    %v960 = vld [vmem:[%s6 + $0x750] sm:$0xff]
    %v961 = vld [vmem:[%s6 + $0x758] sm:$0xff]
    %v962 = vld [vmem:[%s6 + $0x760] sm:$0xff]
    %v963 = vld [vmem:[%s6 + $0x768] sm:$0xff]
    %v964 = vld [vmem:[%s6 + $0x770] sm:$0xff]
    %v965 = vld [vmem:[%s6 + $0x778] sm:$0xff]
    %v966 = vld [vmem:[%s6 + $0x780] sm:$0xff]
    %v967 = vld [vmem:[%s6 + $0x788] sm:$0xff]
    %v968 = vld [vmem:[%s6 + $0x790] sm:$0xff]
    %v969 = vld [vmem:[%s6 + $0x798] sm:$0xff]
    %v970 = vld [vmem:[%s6 + $0x7a0] sm:$0xff]
    %v971 = vld [vmem:[%s6 + $0x7a8] sm:$0xff]
    %v972 = vld [vmem:[%s6 + $0x7b0] sm:$0xff]
    %v973 = vld [vmem:[%s6 + $0x7b8] sm:$0xff]
    %v974 = vld [vmem:[%s6 + $0x7c0] sm:$0xff]
    %v975 = vld [vmem:[%s6 + $0x7c8] sm:$0xff]
    %v976 = vld [vmem:[%s6 + $0x7d0] sm:$0xff]
    %v977 = vld [vmem:[%s6 + $0x7d8] sm:$0xff]
    %v978 = vld [vmem:[%s6 + $0x7e0] sm:$0xff]
    %v979 = vld [vmem:[%s6 + $0x7e8] sm:$0xff]
    %v980 = vld [vmem:[%s6 + $0x7f0] sm:$0xff]
    %v981 = vld [vmem:[%s6 + $0x7f8] sm:$0xff]
    %v982 = vld [vmem:[%s6 + $0x800] sm:$0xff]
    %v983 = vld [vmem:[%s6 + $0x808] sm:$0xff]
    %v984 = vld [vmem:[%s6 + $0x810] sm:$0xff]
    %v985 = vld [vmem:[%s6 + $0x818] sm:$0xff]
    %v986 = vld [vmem:[%s6 + $0x820] sm:$0xff]
    %v987 = vld [vmem:[%s6 + $0x828] sm:$0xff]
    %v988 = vld [vmem:[%s6 + $0x830] sm:$0xff]
    %v989 = vld [vmem:[%s6 + $0x838] sm:$0xff]
    %v990 = vld [vmem:[%s6 + $0x840] sm:$0xff]
    %v991 = vld [vmem:[%s6 + $0x848] sm:$0xff]
    %v992 = vld [vmem:[%s6 + $0x850] sm:$0xff]
    %v993 = vld [vmem:[%s6 + $0x858] sm:$0xff]
    %v994 = vld [vmem:[%s6 + $0x860] sm:$0xff]
    %v995 = vld [vmem:[%s6 + $0x868] sm:$0xff]
    %v996 = vld [vmem:[%s6 + $0x870] sm:$0xff]
    %v997 = vld [vmem:[%s6 + $0x878] sm:$0xff]
    %v998 = vld [vmem:[%s6 + $0x880] sm:$0xff]
    %v999 = vld [vmem:[%s6 + $0x888] sm:$0xff]
    %v1000 = vld [vmem:[%s6 + $0x890] sm:$0xff]
    %v1001 = vld [vmem:[%s6 + $0x898] sm:$0xff]
    %v1002 = vld [vmem:[%s6 + $0x8a0] sm:$0xff]
    %v1003 = vld [vmem:[%s6 + $0x8a8] sm:$0xff]
    %v1004 = vld [vmem:[%s6 + $0x8b0] sm:$0xff]
    %v1005 = vld [vmem:[%s6 + $0x8b8] sm:$0xff]
    %v1006 = vld [vmem:[%s6 + $0x8c0] sm:$0xff]
    %v1007 = vld [vmem:[%s6 + $0x8c8] sm:$0xff]
    %v1008 = vld [vmem:[%s6 + $0x8d0] sm:$0xff]
    %v1009 = vld [vmem:[%s6 + $0x8d8] sm:$0xff]
    %v1010 = vld [vmem:[%s6 + $0x8e0] sm:$0xff]
    %v1011 = vld [vmem:[%s6 + $0x8e8] sm:$0xff]
    %v1012 = vld [vmem:[%s6 + $0x8f0] sm:$0xff]
    %v1013 = vld [vmem:[%s6 + $0x8f8] sm:$0xff]
    %v1014 = vld [vmem:[%s6 + $0x900] sm:$0xff]
    %v1015 = vld [vmem:[%s6 + $0x908] sm:$0xff]
    %v1016 = vld [vmem:[%s6 + $0x910] sm:$0xff]
    %v1017 = vld [vmem:[%s6 + $0x918] sm:$0xff]
    %v1018 = vld [vmem:[%s6 + $0x920] sm:$0xff]
    %v1019 = vld [vmem:[%s6 + $0x928] sm:$0xff]
    %v1020 = vld [vmem:[%s6 + $0x930] sm:$0xff]
    %v1021 = vld [vmem:[%s6 + $0x938] sm:$0xff]
    %v1022 = vld [vmem:[%s6 + $0x940] sm:$0xff]
    %v1023 = vld [vmem:[%s6 + $0x948] sm:$0xff]
    %v1024 = vld [vmem:[%s6 + $0x950] sm:$0xff]
    %v1025 = vld [vmem:[%s6 + $0x958] sm:$0xff]
    %v1026 = vld [vmem:[%s6 + $0x960] sm:$0xff]
    %v1027 = vld [vmem:[%s6 + $0x968] sm:$0xff]
    %v1028 = vld [vmem:[%s6 + $0x970] sm:$0xff]
    %v1029 = vld [vmem:[%s6 + $0x978] sm:$0xff]
    %v1030 = vld [vmem:[%s6 + $0x980] sm:$0xff]
    %v1031 = vld [vmem:[%s6 + $0x988] sm:$0xff]
    %v1032 = vld [vmem:[%s6 + $0x990] sm:$0xff]
    %v1033 = vld [vmem:[%s6 + $0x998] sm:$0xff]
    %v1034 = vld [vmem:[%s6 + $0x9a0] sm:$0xff]
    %v1035 = vld [vmem:[%s6 + $0x9a8] sm:$0xff]
    %v1036 = vld [vmem:[%s6 + $0x9b0] sm:$0xff]
    %v1037 = vld [vmem:[%s6 + $0x9b8] sm:$0xff]
    %v1038 = vld [vmem:[%s6 + $0x9c0] sm:$0xff]
    %v1039 = vld [vmem:[%s6 + $0x9c8] sm:$0xff]
    %v1040 = vld [vmem:[%s6 + $0x9d0] sm:$0xff]
    %v1041 = vld [vmem:[%s6 + $0x9d8] sm:$0xff]
    %v1042 = vld [vmem:[%s6 + $0x9e0] sm:$0xff]
    %v1043 = vld [vmem:[%s6 + $0x9e8] sm:$0xff]
    %v1044 = vld [vmem:[%s6 + $0x9f0] sm:$0xff]
    %v1045 = vld [vmem:[%s6 + $0x9f8] sm:$0xff]
    %v1046 = vld [vmem:[%s6 + $0xa00] sm:$0xff]
    %v1047 = vld [vmem:[%s6 + $0xa08] sm:$0xff]
    %v1048 = vld [vmem:[%s6 + $0xa10] sm:$0xff]
    %v1049 = vld [vmem:[%s6 + $0xa18] sm:$0xff]
    %v1050 = vld [vmem:[%s6 + $0xa20] sm:$0xff]
    %v1051 = vld [vmem:[%s6 + $0xa28] sm:$0xff]
    %v1052 = vld [vmem:[%s6 + $0xa30] sm:$0xff]
    %v1053 = vld [vmem:[%s6 + $0xa38] sm:$0xff]
    %v1054 = vld [vmem:[%s6 + $0xa40] sm:$0xff]
    %v1055 = vld [vmem:[%s6 + $0xa48] sm:$0xff]
    %v1056 = vld [vmem:[%s6 + $0xa50] sm:$0xff]
    %v1057 = vld [vmem:[%s6 + $0xa58] sm:$0xff]
    %v1058 = vld [vmem:[%s6 + $0xa60] sm:$0xff]
    %v1059 = vld [vmem:[%s6 + $0xa68] sm:$0xff]
    %v1060 = vld [vmem:[%s6 + $0xa70] sm:$0xff]
    %v1061 = vld [vmem:[%s6 + $0xa78] sm:$0xff]
    %v1062 = vld [vmem:[%s6 + $0xa80] sm:$0xff]
    %v1063 = vld [vmem:[%s6 + $0xa88] sm:$0xff]
    %v1064 = vld [vmem:[%s6 + $0xa90] sm:$0xff]
    %v1065 = vld [vmem:[%s6 + $0xa98] sm:$0xff]
    %v1066 = vld [vmem:[%s6 + $0xaa0] sm:$0xff]
    %v1067 = vld [vmem:[%s6 + $0xaa8] sm:$0xff]
    %v1068 = vld [vmem:[%s6 + $0xab0] sm:$0xff]
    %v1069 = vld [vmem:[%s6 + $0xab8] sm:$0xff]
    %v1070 = vld [vmem:[%s6 + $0xac0] sm:$0xff]
    %v1071 = vld [vmem:[%s6 + $0xac8] sm:$0xff]
    %v1072 = vld [vmem:[%s6 + $0xad0] sm:$0xff]
    %v1073 = vld [vmem:[%s6 + $0xad8] sm:$0xff]
    %v1074 = vld [vmem:[%s6 + $0xae0] sm:$0xff]
    %v1075 = vld [vmem:[%s6 + $0xae8] sm:$0xff]
    %v1076 = vld [vmem:[%s6 + $0xaf0] sm:$0xff]
    %v1077 = vld [vmem:[%s6 + $0xaf8] sm:$0xff]
    %v1078 = vld [vmem:[%s6 + $0xb00] sm:$0xff]
    %v1079 = vld [vmem:[%s6 + $0xb08] sm:$0xff]
    %v1080 = vld [vmem:[%s6 + $0xb10] sm:$0xff]
    %v1081 = vld [vmem:[%s6 + $0xb18] sm:$0xff]
    %v1082 = vld [vmem:[%s6 + $0xb20] sm:$0xff]
    %v1083 = vld [vmem:[%s6 + $0xb28] sm:$0xff]
    %v1084 = vld [vmem:[%s6 + $0xb30] sm:$0xff]
    %v1085 = vld [vmem:[%s6 + $0xb38] sm:$0xff]
    %v1086 = vld [vmem:[%s6 + $0xb40] sm:$0xff]
    %v1087 = vld [vmem:[%s6 + $0xb48] sm:$0xff]
    %v1088 = vld [vmem:[%s6 + $0xb50] sm:$0xff]
    %v1089 = vld [vmem:[%s6 + $0xb58] sm:$0xff]
    %v1090 = vld [vmem:[%s6 + $0xb60] sm:$0xff]
    %v1091 = vld [vmem:[%s6 + $0xb68] sm:$0xff]
    %v1092 = vld [vmem:[%s6 + $0xb70] sm:$0xff]
    %v1093 = vld [vmem:[%s6 + $0xb78] sm:$0xff]
    %v1094 = vld [vmem:[%s6 + $0xb80] sm:$0xff]
    %v1095 = vld [vmem:[%s6 + $0xb88] sm:$0xff]
    %v1096 = vld [vmem:[%s6 + $0xb90] sm:$0xff]
    %v1097 = vld [vmem:[%s6 + $0xb98] sm:$0xff]
    %v1098 = vld [vmem:[%s6 + $0xba0] sm:$0xff]
    %v1099 = vld [vmem:[%s6 + $0xba8] sm:$0xff]
    %v1100 = vld [vmem:[%s6 + $0xbb0] sm:$0xff]
    %v1101 = vld [vmem:[%s6 + $0xbb8] sm:$0xff]
    %v1102 = vld [vmem:[%s6 + $0xbc0] sm:$0xff]
    %v1103 = vld [vmem:[%s6 + $0xbc8] sm:$0xff]
    %v1104 = vld [vmem:[%s6 + $0xbd0] sm:$0xff]
    %v1105 = vld [vmem:[%s6 + $0xbd8] sm:$0xff]
    %v1106 = vld [vmem:[%s6 + $0xbe0] sm:$0xff]
    %v1107 = vld [vmem:[%s6 + $0xbe8] sm:$0xff]
    %v1108 = vld [vmem:[%s6 + $0xbf0] sm:$0xff]
    %v1109 = vld [vmem:[%s6 + $0xbf8] sm:$0xff]
    %v1110 = vld [vmem:[%s6 + $0xc00] sm:$0xff]
    %v1111 = vld [vmem:[%s6 + $0xc08] sm:$0xff]
    %v1112 = vld [vmem:[%s6 + $0xc10] sm:$0xff]
    %v1113 = vld [vmem:[%s6 + $0xc18] sm:$0xff]
    %v1114 = vld [vmem:[%s6 + $0xc20] sm:$0xff]
    %v1115 = vld [vmem:[%s6 + $0xc28] sm:$0xff]
    %v1116 = vld [vmem:[%s6 + $0xc30] sm:$0xff]
    %v1117 = vld [vmem:[%s6 + $0xc38] sm:$0xff]
    %v1118 = vld [vmem:[%s6 + $0xc40] sm:$0xff]
    %v1119 = vld [vmem:[%s6 + $0xc48] sm:$0xff]
    %v1120 = vld [vmem:[%s6 + $0xc50] sm:$0xff]
    %v1121 = vld [vmem:[%s6 + $0xc58] sm:$0xff]
    %v1122 = vld [vmem:[%s6 + $0xc60] sm:$0xff]
    %v1123 = vld [vmem:[%s6 + $0xc68] sm:$0xff]
    %v1124 = vld [vmem:[%s6 + $0xc70] sm:$0xff]
    %v1125 = vld [vmem:[%s6 + $0xc78] sm:$0xff]
    %v1126 = vld [vmem:[%s6 + $0xc80] sm:$0xff]
    %v1127 = vld [vmem:[%s6 + $0xc88] sm:$0xff]
    %v1128 = vld [vmem:[%s6 + $0xc90] sm:$0xff]
    %v1129 = vld [vmem:[%s6 + $0xc98] sm:$0xff]
    %v1130 = vld [vmem:[%s6 + $0xca0] sm:$0xff]
    %v1131 = vld [vmem:[%s6 + $0xca8] sm:$0xff]
    %v1132 = vld [vmem:[%s6 + $0xcb0] sm:$0xff]
    %v1133 = vld [vmem:[%s6 + $0xcb8] sm:$0xff]
    %v1134 = vld [vmem:[%s6 + $0xcc0] sm:$0xff]
    %v1135 = vld [vmem:[%s6 + $0xcc8] sm:$0xff]
    %v1136 = vld [vmem:[%s6 + $0xcd0] sm:$0xff]
    %v1137 = vld [vmem:[%s6 + $0xcd8] sm:$0xff]
    %v1138 = vld [vmem:[%s6 + $0xce0] sm:$0xff]
    %v1139 = vld [vmem:[%s6 + $0xce8] sm:$0xff]
    %v1140 = vld [vmem:[%s6 + $0xcf0] sm:$0xff]
    %v1141 = vld [vmem:[%s6 + $0xcf8] sm:$0xff]
    %v1142 = vld [vmem:[%s6 + $0xd00] sm:$0xff]
    %v1143 = vld [vmem:[%s6 + $0xd08] sm:$0xff]
    %v1144 = vld [vmem:[%s6 + $0xd10] sm:$0xff]
    %v1145 = vld [vmem:[%s6 + $0xd18] sm:$0xff]
    %v1146 = vld [vmem:[%s6 + $0xd20] sm:$0xff]
    %v1147 = vld [vmem:[%s6 + $0xd28] sm:$0xff]
    %v1148 = vld [vmem:[%s6 + $0xd30] sm:$0xff]
    %v1149 = vld [vmem:[%s6 + $0xd38] sm:$0xff]
    %v1150 = vld [vmem:[%s6 + $0xd40] sm:$0xff]
    %v1151 = vld [vmem:[%s6 + $0xd48] sm:$0xff]
    %v1152 = vld [vmem:[%s6 + $0xd50] sm:$0xff]
    %v1153 = vld [vmem:[%s6 + $0xd58] sm:$0xff]
    %v1154 = vld [vmem:[%s6 + $0xd60] sm:$0xff]
    %v1155 = vld [vmem:[%s6 + $0xd68] sm:$0xff]
    %v1156 = vld [vmem:[%s6 + $0xd70] sm:$0xff]
    %v1157 = vld [vmem:[%s6 + $0xd78] sm:$0xff]
    %v1158 = vld [vmem:[%s6 + $0xd80] sm:$0xff]
    %v1159 = vld [vmem:[%s6 + $0xd88] sm:$0xff]
    %v1160 = vld [vmem:[%s6 + $0xd90] sm:$0xff]
    %v1161 = vld [vmem:[%s6 + $0xd98] sm:$0xff]
    %v1162 = vld [vmem:[%s6 + $0xda0] sm:$0xff]
    %v1163 = vld [vmem:[%s6 + $0xda8] sm:$0xff]
    %v1164 = vld [vmem:[%s6 + $0xdb0] sm:$0xff]
    %v1165 = vld [vmem:[%s6 + $0xdb8] sm:$0xff]
    %v1166 = vld [vmem:[%s6 + $0xdc0] sm:$0xff]
    %v1167 = vld [vmem:[%s6 + $0xdc8] sm:$0xff]
    %v1168 = vld [vmem:[%s6 + $0xdd0] sm:$0xff]
    %v1169 = vld [vmem:[%s6 + $0xdd8] sm:$0xff]
    %v1170 = vld [vmem:[%s6 + $0xde0] sm:$0xff]
    %v1171 = vld [vmem:[%s6 + $0xde8] sm:$0xff]
    %v1172 = vld [vmem:[%s6 + $0xdf0] sm:$0xff]
    %v1173 = vld [vmem:[%s6 + $0xdf8] sm:$0xff]
    %v1174 = vld [vmem:[%s6 + $0xe00] sm:$0xff]
    %v1175 = vld [vmem:[%s6 + $0xe08] sm:$0xff]
    %v1176 = vld [vmem:[%s6 + $0xe10] sm:$0xff]
    %v1177 = vld [vmem:[%s6 + $0xe18] sm:$0xff]
    %v1178 = vld [vmem:[%s6 + $0xe20] sm:$0xff]
    %v1179 = vld [vmem:[%s6 + $0xe28] sm:$0xff]
    %v1180 = vld [vmem:[%s6 + $0xe30] sm:$0xff]
    %v1181 = vld [vmem:[%s6 + $0xe38] sm:$0xff]
    %v1182 = vld [vmem:[%s6 + $0xe40] sm:$0xff]
    %v1183 = vld [vmem:[%s6 + $0xe48] sm:$0xff]
    %v1184 = vld [vmem:[%s6 + $0xe50] sm:$0xff]
    %v1185 = vld [vmem:[%s6 + $0xe58] sm:$0xff]
    %v1186 = vld [vmem:[%s6 + $0xe60] sm:$0xff]
    %v1187 = vld [vmem:[%s6 + $0xe68] sm:$0xff]
    %v1188 = vld [vmem:[%s6 + $0xe70] sm:$0xff]
    %v1189 = vld [vmem:[%s6 + $0xe78] sm:$0xff]
    %v1190 = vld [vmem:[%s6 + $0xe80] sm:$0xff]
    %v1191 = vld [vmem:[%s6 + $0xe88] sm:$0xff]
    %v1192 = vld [vmem:[%s6 + $0xe90] sm:$0xff]
    %v1193 = vld [vmem:[%s6 + $0xe98] sm:$0xff]
    %v1194 = vld [vmem:[%s6 + $0xea0] sm:$0xff]
    %v1195 = vld [vmem:[%s6 + $0xea8] sm:$0xff]
    %v1196 = vld [vmem:[%s6 + $0xeb0] sm:$0xff]
    %v1197 = vld [vmem:[%s6 + $0xeb8] sm:$0xff]
    %v1198 = vld [vmem:[%s6 + $0xec0] sm:$0xff]
    %v1199 = vld [vmem:[%s6 + $0xec8] sm:$0xff]
    %v1200 = vld [vmem:[%s6 + $0xed0] sm:$0xff]
    %v1201 = vld [vmem:[%s6 + $0xed8] sm:$0xff]
    %v1202 = vld [vmem:[%s6 + $0xee0] sm:$0xff]
    %v1203 = vld [vmem:[%s6 + $0xee8] sm:$0xff]
    %v1204 = vld [vmem:[%s6 + $0xef0] sm:$0xff]
    %v1205 = vld [vmem:[%s6 + $0xef8] sm:$0xff]
    %1206 = vmatpush.msra.mxu0 %v816
    %1207 = vmatpush.msra.mxu0 %v810
    %1208 = vmatpush.msra.mxu0 %v804
    %1209 = vmatpush.msra.mxu0 %v798
    %1210 = vmatpush.msra.mxu0 %v792
    %1211 = vmatpush.msra.mxu0 %v786
    %1212 = vmatpush.msra.mxu0 %v780
    %1213 = vmatpush.msra.mxu0 %v774
    %1214 = vmatpush.msra.mxu0 %v768
    %1215 = vmatpush.msra.mxu0 %v762
    %1216 = vmatpush.msra.mxu0 %v756
    %1217 = vmatpush.msra.mxu0 %v750
    %1218 = vmatpush.msra.mxu0 %v744
    %1219 = vmatpush.msra.mxu0 %v738
    %1220 = vmatpush.msra.mxu0 %v732
    %1221 = vmatpush.msra.mxu0 %v726
    %1222 = vmatmul.f32.gmra.mxu0 %v533
    %v1223 = vpop.f32.mrf.mxu0
    %v1224 = vadd.f32 0.0, %v1223
    %1225 = vdwg.mxu0
    %1226 = vmatpush.msra.mxu0 %v912
    %1227 = vmatpush.msra.mxu0 %v906
    %1228 = vmatpush.msra.mxu0 %v900
    %1229 = vmatpush.msra.mxu0 %v894
    %1230 = vmatpush.msra.mxu0 %v888
    %1231 = vmatpush.msra.mxu0 %v882
    %1232 = vmatpush.msra.mxu0 %v876
    %1233 = vmatpush.msra.mxu0 %v870
    %1234 = vmatpush.msra.mxu0 %v864
    %1235 = vmatpush.msra.mxu0 %v858
    %1236 = vmatpush.msra.mxu0 %v852
    %1237 = vmatpush.msra.mxu0 %v846
    %1238 = vmatpush.msra.mxu0 %v840
    %1239 = vmatpush.msra.mxu0 %v834
    %1240 = vmatpush.msra.mxu0 %v828
    %1241 = vmatpush.msra.mxu0 %v822
    %1242 = vmatmul.f32.gmra.mxu0 %v581
    %v1243 = vpop.f32.mrf.mxu0
    %v1244 = vadd.f32 %v1224, %v1243
    %1245 = vdwg.mxu0
    %1246 = vmatpush.msra.mxu0 %v1008
    %1247 = vmatpush.msra.mxu0 %v1002
    %1248 = vmatpush.msra.mxu0 %v996
    %1249 = vmatpush.msra.mxu0 %v990
    %1250 = vmatpush.msra.mxu0 %v984
    %1251 = vmatpush.msra.mxu0 %v978
    %1252 = vmatpush.msra.mxu0 %v972
    %1253 = vmatpush.msra.mxu0 %v966
    %1254 = vmatpush.msra.mxu0 %v960
    %1255 = vmatpush.msra.mxu0 %v954
    %1256 = vmatpush.msra.mxu0 %v948
    %1257 = vmatpush.msra.mxu0 %v942
    %1258 = vmatpush.msra.mxu0 %v936
    %1259 = vmatpush.msra.mxu0 %v930
    %1260 = vmatpush.msra.mxu0 %v924
    %1261 = vmatpush.msra.mxu0 %v918
    %1262 = vmatmul.f32.gmra.mxu0 %v629
    %v1263 = vpop.f32.mrf.mxu0
    %v1264 = vadd.f32 %v1244, %v1263
    %1265 = vdwg.mxu0
    %1266 = vmatpush.msra.mxu0 %v1104
    %1267 = vmatpush.msra.mxu0 %v1098
    %1268 = vmatpush.msra.mxu0 %v1092
    %1269 = vmatpush.msra.mxu0 %v1086
    %1270 = vmatpush.msra.mxu0 %v1080
    %1271 = vmatpush.msra.mxu0 %v1074
    %1272 = vmatpush.msra.mxu0 %v1068
    %1273 = vmatpush.msra.mxu0 %v1062
    %1274 = vmatpush.msra.mxu0 %v1056
    %1275 = vmatpush.msra.mxu0 %v1050
    %1276 = vmatpush.msra.mxu0 %v1044
    %1277 = vmatpush.msra.mxu0 %v1038
    %1278 = vmatpush.msra.mxu0 %v1032
    %1279 = vmatpush.msra.mxu0 %v1026
    %1280 = vmatpush.msra.mxu0 %v1020
    %1281 = vmatpush.msra.mxu0 %v1014
    %1282 = vmatmul.f32.gmra.mxu0 %v677
    %v1283 = vpop.f32.mrf.mxu0
    %v1284 = vadd.f32 %v1264, %v1283
    %1285 = vdwg.mxu0
    %1286 = vmatpush.msra.mxu0 %v1200
    %1287 = vmatpush.msra.mxu0 %v1194
    %1288 = vmatpush.msra.mxu0 %v1188
    %1289 = vmatpush.msra.mxu0 %v1182
    %1290 = vmatpush.msra.mxu0 %v1176
    %1291 = vmatpush.msra.mxu0 %v1170
    %1292 = vmatpush.msra.mxu0 %v1164
    %1293 = vmatpush.msra.mxu0 %v1158
    %1294 = vmatpush.msra.mxu0 %v1152
    %1295 = vmatpush.msra.mxu0 %v1146
    %1296 = vmatpush.msra.mxu0 %v1140
    %1297 = vmatpush.msra.mxu0 %v1134
    %1298 = vmatpush.msra.mxu0 %v1128
    %1299 = vmatpush.msra.mxu0 %v1122
    %1300 = vmatpush.msra.mxu0 %v1116
    %1301 = vmatpush.msra.mxu0 %v1110
    %1302 = vmatmul.f32.gmra.mxu0 %v725
    %v1303 = vpop.f32.mrf.mxu0
    %v1304 = vadd.f32 %v1284, %v1303
    %1305 = vdwg.mxu0
    %1306 = vmatpush.msra.mxu0 %v817
    %1307 = vmatpush.msra.mxu0 %v811
    %1308 = vmatpush.msra.mxu0 %v805
    %1309 = vmatpush.msra.mxu0 %v799
    %1310 = vmatpush.msra.mxu0 %v793
    %1311 = vmatpush.msra.mxu0 %v787
    %1312 = vmatpush.msra.mxu0 %v781
    %1313 = vmatpush.msra.mxu0 %v775
    %1314 = vmatpush.msra.mxu0 %v769
    %1315 = vmatpush.msra.mxu0 %v763
    %1316 = vmatpush.msra.mxu0 %v757
    %1317 = vmatpush.msra.mxu0 %v751
    %1318 = vmatpush.msra.mxu0 %v745
    %1319 = vmatpush.msra.mxu0 %v739
    %1320 = vmatpush.msra.mxu0 %v733
    %1321 = vmatpush.msra.mxu0 %v727
    %1322 = vmatmul.f32.gmra.mxu0 %v533
    %v1323 = vpop.f32.mrf.mxu0
    %v1324 = vadd.f32 0.0, %v1323
    %1325 = vdwg.mxu0
    %1326 = vmatpush.msra.mxu0 %v913
    %1327 = vmatpush.msra.mxu0 %v907
    %1328 = vmatpush.msra.mxu0 %v901
    %1329 = vmatpush.msra.mxu0 %v895
    %1330 = vmatpush.msra.mxu0 %v889
    %1331 = vmatpush.msra.mxu0 %v883
    %1332 = vmatpush.msra.mxu0 %v877
    %1333 = vmatpush.msra.mxu0 %v871
    %1334 = vmatpush.msra.mxu0 %v865
    %1335 = vmatpush.msra.mxu0 %v859
    %1336 = vmatpush.msra.mxu0 %v853
    %1337 = vmatpush.msra.mxu0 %v847
    %1338 = vmatpush.msra.mxu0 %v841
    %1339 = vmatpush.msra.mxu0 %v835
    %1340 = vmatpush.msra.mxu0 %v829
    %1341 = vmatpush.msra.mxu0 %v823
    %1342 = vmatmul.f32.gmra.mxu0 %v581
    %v1343 = vpop.f32.mrf.mxu0
    %v1344 = vadd.f32 %v1324, %v1343
    %1345 = vdwg.mxu0
    %1346 = vmatpush.msra.mxu0 %v1009
    %1347 = vmatpush.msra.mxu0 %v1003
    %1348 = vmatpush.msra.mxu0 %v997
    %1349 = vmatpush.msra.mxu0 %v991
    %1350 = vmatpush.msra.mxu0 %v985
    %1351 = vmatpush.msra.mxu0 %v979
    %1352 = vmatpush.msra.mxu0 %v973
    %1353 = vmatpush.msra.mxu0 %v967
    %1354 = vmatpush.msra.mxu0 %v961
    %1355 = vmatpush.msra.mxu0 %v955
    %1356 = vmatpush.msra.mxu0 %v949
    %1357 = vmatpush.msra.mxu0 %v943
    %1358 = vmatpush.msra.mxu0 %v937
    %1359 = vmatpush.msra.mxu0 %v931
    %1360 = vmatpush.msra.mxu0 %v925
    %1361 = vmatpush.msra.mxu0 %v919
    %1362 = vmatmul.f32.gmra.mxu0 %v629
    %v1363 = vpop.f32.mrf.mxu0
    %v1364 = vadd.f32 %v1344, %v1363
    %1365 = vdwg.mxu0
    %1366 = vmatpush.msra.mxu0 %v1105
    %1367 = vmatpush.msra.mxu0 %v1099
    %1368 = vmatpush.msra.mxu0 %v1093
    %1369 = vmatpush.msra.mxu0 %v1087
    %1370 = vmatpush.msra.mxu0 %v1081
    %1371 = vmatpush.msra.mxu0 %v1075
    %1372 = vmatpush.msra.mxu0 %v1069
    %1373 = vmatpush.msra.mxu0 %v1063
    %1374 = vmatpush.msra.mxu0 %v1057
    %1375 = vmatpush.msra.mxu0 %v1051
    %1376 = vmatpush.msra.mxu0 %v1045
    %1377 = vmatpush.msra.mxu0 %v1039
    %1378 = vmatpush.msra.mxu0 %v1033
    %1379 = vmatpush.msra.mxu0 %v1027
    %1380 = vmatpush.msra.mxu0 %v1021
    %1381 = vmatpush.msra.mxu0 %v1015
    %1382 = vmatmul.f32.gmra.mxu0 %v677
    %v1383 = vpop.f32.mrf.mxu0
    %v1384 = vadd.f32 %v1364, %v1383
    %1385 = vdwg.mxu0
    %1386 = vmatpush.msra.mxu0 %v1201
    %1387 = vmatpush.msra.mxu0 %v1195
    %1388 = vmatpush.msra.mxu0 %v1189
    %1389 = vmatpush.msra.mxu0 %v1183
    %1390 = vmatpush.msra.mxu0 %v1177
    %1391 = vmatpush.msra.mxu0 %v1171
    %1392 = vmatpush.msra.mxu0 %v1165
    %1393 = vmatpush.msra.mxu0 %v1159
    %1394 = vmatpush.msra.mxu0 %v1153
    %1395 = vmatpush.msra.mxu0 %v1147
    %1396 = vmatpush.msra.mxu0 %v1141
    %1397 = vmatpush.msra.mxu0 %v1135
    %1398 = vmatpush.msra.mxu0 %v1129
    %1399 = vmatpush.msra.mxu0 %v1123
    %1400 = vmatpush.msra.mxu0 %v1117
    %1401 = vmatpush.msra.mxu0 %v1111
    %1402 = vmatmul.f32.gmra.mxu0 %v725
    %v1403 = vpop.f32.mrf.mxu0
    %v1404 = vadd.f32 %v1384, %v1403
    %1405 = vdwg.mxu0
    %1406 = vmatpush.msra.mxu0 %v818
    %1407 = vmatpush.msra.mxu0 %v812
    %1408 = vmatpush.msra.mxu0 %v806
    %1409 = vmatpush.msra.mxu0 %v800
    %1410 = vmatpush.msra.mxu0 %v794
    %1411 = vmatpush.msra.mxu0 %v788
    %1412 = vmatpush.msra.mxu0 %v782
    %1413 = vmatpush.msra.mxu0 %v776
    %1414 = vmatpush.msra.mxu0 %v770
    %1415 = vmatpush.msra.mxu0 %v764
    %1416 = vmatpush.msra.mxu0 %v758
    %1417 = vmatpush.msra.mxu0 %v752
    %1418 = vmatpush.msra.mxu0 %v746
    %1419 = vmatpush.msra.mxu0 %v740
    %1420 = vmatpush.msra.mxu0 %v734
    %1421 = vmatpush.msra.mxu0 %v728
    %1422 = vmatmul.f32.gmra.mxu0 %v533
    %v1423 = vpop.f32.mrf.mxu0
    %v1424 = vadd.f32 0.0, %v1423
    %1425 = vdwg.mxu0
    %1426 = vmatpush.msra.mxu0 %v914
    %1427 = vmatpush.msra.mxu0 %v908
    %1428 = vmatpush.msra.mxu0 %v902
    %1429 = vmatpush.msra.mxu0 %v896
    %1430 = vmatpush.msra.mxu0 %v890
    %1431 = vmatpush.msra.mxu0 %v884
    %1432 = vmatpush.msra.mxu0 %v878
    %1433 = vmatpush.msra.mxu0 %v872
    %1434 = vmatpush.msra.mxu0 %v866
    %1435 = vmatpush.msra.mxu0 %v860
    %1436 = vmatpush.msra.mxu0 %v854
    %1437 = vmatpush.msra.mxu0 %v848
    %1438 = vmatpush.msra.mxu0 %v842
    %1439 = vmatpush.msra.mxu0 %v836
    %1440 = vmatpush.msra.mxu0 %v830
    %1441 = vmatpush.msra.mxu0 %v824
    %1442 = vmatmul.f32.gmra.mxu0 %v581
    %v1443 = vpop.f32.mrf.mxu0
    %v1444 = vadd.f32 %v1424, %v1443
    %1445 = vdwg.mxu0
    %1446 = vmatpush.msra.mxu0 %v1010
    %1447 = vmatpush.msra.mxu0 %v1004
    %1448 = vmatpush.msra.mxu0 %v998
    %1449 = vmatpush.msra.mxu0 %v992
    %1450 = vmatpush.msra.mxu0 %v986
    %1451 = vmatpush.msra.mxu0 %v980
    %1452 = vmatpush.msra.mxu0 %v974
    %1453 = vmatpush.msra.mxu0 %v968
    %1454 = vmatpush.msra.mxu0 %v962
    %1455 = vmatpush.msra.mxu0 %v956
    %1456 = vmatpush.msra.mxu0 %v950
    %1457 = vmatpush.msra.mxu0 %v944
    %1458 = vmatpush.msra.mxu0 %v938
    %1459 = vmatpush.msra.mxu0 %v932
    %1460 = vmatpush.msra.mxu0 %v926
    %1461 = vmatpush.msra.mxu0 %v920
    %1462 = vmatmul.f32.gmra.mxu0 %v629
    %v1463 = vpop.f32.mrf.mxu0
    %v1464 = vadd.f32 %v1444, %v1463
    %1465 = vdwg.mxu0
    %1466 = vmatpush.msra.mxu0 %v1106
    %1467 = vmatpush.msra.mxu0 %v1100
    %1468 = vmatpush.msra.mxu0 %v1094
    %1469 = vmatpush.msra.mxu0 %v1088
    %1470 = vmatpush.msra.mxu0 %v1082
    %1471 = vmatpush.msra.mxu0 %v1076
    %1472 = vmatpush.msra.mxu0 %v1070
    %1473 = vmatpush.msra.mxu0 %v1064
    %1474 = vmatpush.msra.mxu0 %v1058
    %1475 = vmatpush.msra.mxu0 %v1052
    %1476 = vmatpush.msra.mxu0 %v1046
    %1477 = vmatpush.msra.mxu0 %v1040
    %1478 = vmatpush.msra.mxu0 %v1034
    %1479 = vmatpush.msra.mxu0 %v1028
    %1480 = vmatpush.msra.mxu0 %v1022
    %1481 = vmatpush.msra.mxu0 %v1016
    %1482 = vmatmul.f32.gmra.mxu0 %v677
    %v1483 = vpop.f32.mrf.mxu0
    %v1484 = vadd.f32 %v1464, %v1483
    %1485 = vdwg.mxu0
    %1486 = vmatpush.msra.mxu0 %v1202
    %1487 = vmatpush.msra.mxu0 %v1196
    %1488 = vmatpush.msra.mxu0 %v1190
    %1489 = vmatpush.msra.mxu0 %v1184
    %1490 = vmatpush.msra.mxu0 %v1178
    %1491 = vmatpush.msra.mxu0 %v1172
    %1492 = vmatpush.msra.mxu0 %v1166
    %1493 = vmatpush.msra.mxu0 %v1160
    %1494 = vmatpush.msra.mxu0 %v1154
    %1495 = vmatpush.msra.mxu0 %v1148
    %1496 = vmatpush.msra.mxu0 %v1142
    %1497 = vmatpush.msra.mxu0 %v1136
    %1498 = vmatpush.msra.mxu0 %v1130
    %1499 = vmatpush.msra.mxu0 %v1124
    %1500 = vmatpush.msra.mxu0 %v1118
    %1501 = vmatpush.msra.mxu0 %v1112
    %1502 = vmatmul.f32.gmra.mxu0 %v725
    %v1503 = vpop.f32.mrf.mxu0
    %v1504 = vadd.f32 %v1484, %v1503
    %1505 = vdwg.mxu0
    %1506 = vmatpush.msra.mxu0 %v819
    %1507 = vmatpush.msra.mxu0 %v813
    %1508 = vmatpush.msra.mxu0 %v807
    %1509 = vmatpush.msra.mxu0 %v801
    %1510 = vmatpush.msra.mxu0 %v795
    %1511 = vmatpush.msra.mxu0 %v789
    %1512 = vmatpush.msra.mxu0 %v783
    %1513 = vmatpush.msra.mxu0 %v777
    %1514 = vmatpush.msra.mxu0 %v771
    %1515 = vmatpush.msra.mxu0 %v765
    %1516 = vmatpush.msra.mxu0 %v759
    %1517 = vmatpush.msra.mxu0 %v753
    %1518 = vmatpush.msra.mxu0 %v747
    %1519 = vmatpush.msra.mxu0 %v741
    %1520 = vmatpush.msra.mxu0 %v735
    %1521 = vmatpush.msra.mxu0 %v729
    %1522 = vmatmul.f32.gmra.mxu0 %v533
    %v1523 = vpop.f32.mrf.mxu0
    %v1524 = vadd.f32 0.0, %v1523
    %1525 = vdwg.mxu0
    %1526 = vmatpush.msra.mxu0 %v915
    %1527 = vmatpush.msra.mxu0 %v909
    %1528 = vmatpush.msra.mxu0 %v903
    %1529 = vmatpush.msra.mxu0 %v897
    %1530 = vmatpush.msra.mxu0 %v891
    %1531 = vmatpush.msra.mxu0 %v885
    %1532 = vmatpush.msra.mxu0 %v879
    %1533 = vmatpush.msra.mxu0 %v873
    %1534 = vmatpush.msra.mxu0 %v867
    %1535 = vmatpush.msra.mxu0 %v861
    %1536 = vmatpush.msra.mxu0 %v855
    %1537 = vmatpush.msra.mxu0 %v849
    %1538 = vmatpush.msra.mxu0 %v843
    %1539 = vmatpush.msra.mxu0 %v837
    %1540 = vmatpush.msra.mxu0 %v831
    %1541 = vmatpush.msra.mxu0 %v825
    %1542 = vmatmul.f32.gmra.mxu0 %v581
    %v1543 = vpop.f32.mrf.mxu0
    %v1544 = vadd.f32 %v1524, %v1543
    %1545 = vdwg.mxu0
    %1546 = vmatpush.msra.mxu0 %v1011
    %1547 = vmatpush.msra.mxu0 %v1005
    %1548 = vmatpush.msra.mxu0 %v999
    %1549 = vmatpush.msra.mxu0 %v993
    %1550 = vmatpush.msra.mxu0 %v987
    %1551 = vmatpush.msra.mxu0 %v981
    %1552 = vmatpush.msra.mxu0 %v975
    %1553 = vmatpush.msra.mxu0 %v969
    %1554 = vmatpush.msra.mxu0 %v963
    %1555 = vmatpush.msra.mxu0 %v957
    %1556 = vmatpush.msra.mxu0 %v951
    %1557 = vmatpush.msra.mxu0 %v945
    %1558 = vmatpush.msra.mxu0 %v939
    %1559 = vmatpush.msra.mxu0 %v933
    %1560 = vmatpush.msra.mxu0 %v927
    %1561 = vmatpush.msra.mxu0 %v921
    %1562 = vmatmul.f32.gmra.mxu0 %v629
    %v1563 = vpop.f32.mrf.mxu0
    %v1564 = vadd.f32 %v1544, %v1563
    %1565 = vdwg.mxu0
    %1566 = vmatpush.msra.mxu0 %v1107
    %1567 = vmatpush.msra.mxu0 %v1101
    %1568 = vmatpush.msra.mxu0 %v1095
    %1569 = vmatpush.msra.mxu0 %v1089
    %1570 = vmatpush.msra.mxu0 %v1083
    %1571 = vmatpush.msra.mxu0 %v1077
    %1572 = vmatpush.msra.mxu0 %v1071
    %1573 = vmatpush.msra.mxu0 %v1065
    %1574 = vmatpush.msra.mxu0 %v1059
    %1575 = vmatpush.msra.mxu0 %v1053
    %1576 = vmatpush.msra.mxu0 %v1047
    %1577 = vmatpush.msra.mxu0 %v1041
    %1578 = vmatpush.msra.mxu0 %v1035
    %1579 = vmatpush.msra.mxu0 %v1029
    %1580 = vmatpush.msra.mxu0 %v1023
    %1581 = vmatpush.msra.mxu0 %v1017
    %1582 = vmatmul.f32.gmra.mxu0 %v677
    %v1583 = vpop.f32.mrf.mxu0
    %v1584 = vadd.f32 %v1564, %v1583
    %1585 = vdwg.mxu0
    %1586 = vmatpush.msra.mxu0 %v1203
    %1587 = vmatpush.msra.mxu0 %v1197
    %1588 = vmatpush.msra.mxu0 %v1191
    %1589 = vmatpush.msra.mxu0 %v1185
    %1590 = vmatpush.msra.mxu0 %v1179
    %1591 = vmatpush.msra.mxu0 %v1173
    %1592 = vmatpush.msra.mxu0 %v1167
    %1593 = vmatpush.msra.mxu0 %v1161
    %1594 = vmatpush.msra.mxu0 %v1155
    %1595 = vmatpush.msra.mxu0 %v1149
    %1596 = vmatpush.msra.mxu0 %v1143
    %1597 = vmatpush.msra.mxu0 %v1137
    %1598 = vmatpush.msra.mxu0 %v1131
    %1599 = vmatpush.msra.mxu0 %v1125
    %1600 = vmatpush.msra.mxu0 %v1119
    %1601 = vmatpush.msra.mxu0 %v1113
    %1602 = vmatmul.f32.gmra.mxu0 %v725
    %v1603 = vpop.f32.mrf.mxu0
    %v1604 = vadd.f32 %v1584, %v1603
    %1605 = vdwg.mxu0
    %1606 = vmatpush.msra.mxu0 %v820
    %1607 = vmatpush.msra.mxu0 %v814
    %1608 = vmatpush.msra.mxu0 %v808
    %1609 = vmatpush.msra.mxu0 %v802
    %1610 = vmatpush.msra.mxu0 %v796
    %1611 = vmatpush.msra.mxu0 %v790
    %1612 = vmatpush.msra.mxu0 %v784
    %1613 = vmatpush.msra.mxu0 %v778
    %1614 = vmatpush.msra.mxu0 %v772
    %1615 = vmatpush.msra.mxu0 %v766
    %1616 = vmatpush.msra.mxu0 %v760
    %1617 = vmatpush.msra.mxu0 %v754
    %1618 = vmatpush.msra.mxu0 %v748
    %1619 = vmatpush.msra.mxu0 %v742
    %1620 = vmatpush.msra.mxu0 %v736
    %1621 = vmatpush.msra.mxu0 %v730
    %1622 = vmatmul.f32.gmra.mxu0 %v533
    %v1623 = vpop.f32.mrf.mxu0
    %v1624 = vadd.f32 0.0, %v1623
    %1625 = vdwg.mxu0
    %1626 = vmatpush.msra.mxu0 %v916
    %1627 = vmatpush.msra.mxu0 %v910
    %1628 = vmatpush.msra.mxu0 %v904
    %1629 = vmatpush.msra.mxu0 %v898
    %1630 = vmatpush.msra.mxu0 %v892
    %1631 = vmatpush.msra.mxu0 %v886
    %1632 = vmatpush.msra.mxu0 %v880
    %1633 = vmatpush.msra.mxu0 %v874
    %1634 = vmatpush.msra.mxu0 %v868
    %1635 = vmatpush.msra.mxu0 %v862
    %1636 = vmatpush.msra.mxu0 %v856
    %1637 = vmatpush.msra.mxu0 %v850
    %1638 = vmatpush.msra.mxu0 %v844
    %1639 = vmatpush.msra.mxu0 %v838
    %1640 = vmatpush.msra.mxu0 %v832
    %1641 = vmatpush.msra.mxu0 %v826
    %1642 = vmatmul.f32.gmra.mxu0 %v581
    %v1643 = vpop.f32.mrf.mxu0
    %v1644 = vadd.f32 %v1624, %v1643
    %1645 = vdwg.mxu0
    %1646 = vmatpush.msra.mxu0 %v1012
    %1647 = vmatpush.msra.mxu0 %v1006
    %1648 = vmatpush.msra.mxu0 %v1000
    %1649 = vmatpush.msra.mxu0 %v994
    %1650 = vmatpush.msra.mxu0 %v988
    %1651 = vmatpush.msra.mxu0 %v982
    %1652 = vmatpush.msra.mxu0 %v976
    %1653 = vmatpush.msra.mxu0 %v970
    %1654 = vmatpush.msra.mxu0 %v964
    %1655 = vmatpush.msra.mxu0 %v958
    %1656 = vmatpush.msra.mxu0 %v952
    %1657 = vmatpush.msra.mxu0 %v946
    %1658 = vmatpush.msra.mxu0 %v940
    %1659 = vmatpush.msra.mxu0 %v934
    %1660 = vmatpush.msra.mxu0 %v928
    %1661 = vmatpush.msra.mxu0 %v922
    %1662 = vmatmul.f32.gmra.mxu0 %v629
    %v1663 = vpop.f32.mrf.mxu0
    %v1664 = vadd.f32 %v1644, %v1663
    %1665 = vdwg.mxu0
    %1666 = vmatpush.msra.mxu0 %v1108
    %1667 = vmatpush.msra.mxu0 %v1102
    %1668 = vmatpush.msra.mxu0 %v1096
    %1669 = vmatpush.msra.mxu0 %v1090
    %1670 = vmatpush.msra.mxu0 %v1084
    %1671 = vmatpush.msra.mxu0 %v1078
    %1672 = vmatpush.msra.mxu0 %v1072
    %1673 = vmatpush.msra.mxu0 %v1066
    %1674 = vmatpush.msra.mxu0 %v1060
    %1675 = vmatpush.msra.mxu0 %v1054
    %1676 = vmatpush.msra.mxu0 %v1048
    %1677 = vmatpush.msra.mxu0 %v1042
    %1678 = vmatpush.msra.mxu0 %v1036
    %1679 = vmatpush.msra.mxu0 %v1030
    %1680 = vmatpush.msra.mxu0 %v1024
    %1681 = vmatpush.msra.mxu0 %v1018
    %1682 = vmatmul.f32.gmra.mxu0 %v677
    %v1683 = vpop.f32.mrf.mxu0
    %v1684 = vadd.f32 %v1664, %v1683
    %1685 = vdwg.mxu0
    %1686 = vmatpush.msra.mxu0 %v1204
    %1687 = vmatpush.msra.mxu0 %v1198
    %1688 = vmatpush.msra.mxu0 %v1192
    %1689 = vmatpush.msra.mxu0 %v1186
    %1690 = vmatpush.msra.mxu0 %v1180
    %1691 = vmatpush.msra.mxu0 %v1174
    %1692 = vmatpush.msra.mxu0 %v1168
    %1693 = vmatpush.msra.mxu0 %v1162
    %1694 = vmatpush.msra.mxu0 %v1156
    %1695 = vmatpush.msra.mxu0 %v1150
    %1696 = vmatpush.msra.mxu0 %v1144
    %1697 = vmatpush.msra.mxu0 %v1138
    %1698 = vmatpush.msra.mxu0 %v1132
    %1699 = vmatpush.msra.mxu0 %v1126
    %1700 = vmatpush.msra.mxu0 %v1120
    %1701 = vmatpush.msra.mxu0 %v1114
    %1702 = vmatmul.f32.gmra.mxu0 %v725
    %v1703 = vpop.f32.mrf.mxu0
    %v1704 = vadd.f32 %v1684, %v1703
    %1705 = vdwg.mxu0
    %1706 = vmatpush.msra.mxu0 %v821
    %1707 = vmatpush.msra.mxu0 %v815
    %1708 = vmatpush.msra.mxu0 %v809
    %1709 = vmatpush.msra.mxu0 %v803
    %1710 = vmatpush.msra.mxu0 %v797
    %1711 = vmatpush.msra.mxu0 %v791
    %1712 = vmatpush.msra.mxu0 %v785
    %1713 = vmatpush.msra.mxu0 %v779
    %1714 = vmatpush.msra.mxu0 %v773
    %1715 = vmatpush.msra.mxu0 %v767
    %1716 = vmatpush.msra.mxu0 %v761
    %1717 = vmatpush.msra.mxu0 %v755
    %1718 = vmatpush.msra.mxu0 %v749
    %1719 = vmatpush.msra.mxu0 %v743
    %1720 = vmatpush.msra.mxu0 %v737
    %1721 = vmatpush.msra.mxu0 %v731
    %1722 = vmatmul.f32.gmra.mxu0 %v533
    %v1723 = vpop.f32.mrf.mxu0
    %v1724 = vadd.f32 0.0, %v1723
    %1725 = vdwg.mxu0
    %1726 = vmatpush.msra.mxu0 %v917
    %1727 = vmatpush.msra.mxu0 %v911
    %1728 = vmatpush.msra.mxu0 %v905
    %1729 = vmatpush.msra.mxu0 %v899
    %1730 = vmatpush.msra.mxu0 %v893
    %1731 = vmatpush.msra.mxu0 %v887
    %1732 = vmatpush.msra.mxu0 %v881
    %1733 = vmatpush.msra.mxu0 %v875
    %1734 = vmatpush.msra.mxu0 %v869
    %1735 = vmatpush.msra.mxu0 %v863
    %1736 = vmatpush.msra.mxu0 %v857
    %1737 = vmatpush.msra.mxu0 %v851
    %1738 = vmatpush.msra.mxu0 %v845
    %1739 = vmatpush.msra.mxu0 %v839
    %1740 = vmatpush.msra.mxu0 %v833
    %1741 = vmatpush.msra.mxu0 %v827
    %1742 = vmatmul.f32.gmra.mxu0 %v581
    %v1743 = vpop.f32.mrf.mxu0
    %v1744 = vadd.f32 %v1724, %v1743
    %1745 = vdwg.mxu0
    %1746 = vmatpush.msra.mxu0 %v1013
    %1747 = vmatpush.msra.mxu0 %v1007
    %1748 = vmatpush.msra.mxu0 %v1001
    %1749 = vmatpush.msra.mxu0 %v995
    %1750 = vmatpush.msra.mxu0 %v989
    %1751 = vmatpush.msra.mxu0 %v983
    %1752 = vmatpush.msra.mxu0 %v977
    %1753 = vmatpush.msra.mxu0 %v971
    %1754 = vmatpush.msra.mxu0 %v965
    %1755 = vmatpush.msra.mxu0 %v959
    %1756 = vmatpush.msra.mxu0 %v953
    %1757 = vmatpush.msra.mxu0 %v947
    %1758 = vmatpush.msra.mxu0 %v941
    %1759 = vmatpush.msra.mxu0 %v935
    %1760 = vmatpush.msra.mxu0 %v929
    %1761 = vmatpush.msra.mxu0 %v923
    %1762 = vmatmul.f32.gmra.mxu0 %v629
    %v1763 = vpop.f32.mrf.mxu0
    %v1764 = vadd.f32 %v1744, %v1763
    %1765 = vdwg.mxu0
    %1766 = vmatpush.msra.mxu0 %v1109
    %1767 = vmatpush.msra.mxu0 %v1103
    %1768 = vmatpush.msra.mxu0 %v1097
    %1769 = vmatpush.msra.mxu0 %v1091
    %1770 = vmatpush.msra.mxu0 %v1085
    %1771 = vmatpush.msra.mxu0 %v1079
    %1772 = vmatpush.msra.mxu0 %v1073
    %1773 = vmatpush.msra.mxu0 %v1067
    %1774 = vmatpush.msra.mxu0 %v1061
    %1775 = vmatpush.msra.mxu0 %v1055
    %1776 = vmatpush.msra.mxu0 %v1049
    %1777 = vmatpush.msra.mxu0 %v1043
    %1778 = vmatpush.msra.mxu0 %v1037
    %1779 = vmatpush.msra.mxu0 %v1031
    %1780 = vmatpush.msra.mxu0 %v1025
    %1781 = vmatpush.msra.mxu0 %v1019
    %1782 = vmatmul.f32.gmra.mxu0 %v677
    %v1783 = vpop.f32.mrf.mxu0
    %v1784 = vadd.f32 %v1764, %v1783
    %1785 = vdwg.mxu0
    %1786 = vmatpush.msra.mxu0 %v1205
    %1787 = vmatpush.msra.mxu0 %v1199
    %1788 = vmatpush.msra.mxu0 %v1193
    %1789 = vmatpush.msra.mxu0 %v1187
    %1790 = vmatpush.msra.mxu0 %v1181
    %1791 = vmatpush.msra.mxu0 %v1175
    %1792 = vmatpush.msra.mxu0 %v1169
    %1793 = vmatpush.msra.mxu0 %v1163
    %1794 = vmatpush.msra.mxu0 %v1157
    %1795 = vmatpush.msra.mxu0 %v1151
    %1796 = vmatpush.msra.mxu0 %v1145
    %1797 = vmatpush.msra.mxu0 %v1139
    %1798 = vmatpush.msra.mxu0 %v1133
    %1799 = vmatpush.msra.mxu0 %v1127
    %1800 = vmatpush.msra.mxu0 %v1121
    %1801 = vmatpush.msra.mxu0 %v1115
    %1802 = vmatmul.f32.gmra.mxu0 %v725
    %v1803 = vpop.f32.mrf.mxu0
    %v1804 = vadd.f32 %v1784, %v1803
    %1805 = vdwg.mxu0
    %vm1806 = vcmp.gt.f32.partialorder %v1804, 0.0
    %v1807 = vmul.f32 %v1804, 0.2
    %v1808 = vsel %vm1806, %v1804, %v1807
    %v1809 = vsel %vm484, %v1808, -1e+30
    %v1810 = vld [vmem:[%s7] sm:$0x1]
    %v1811 = vsel %vm487, %v1809, -inf
    %1812 = vmax.xlane.f32.xlu0 %v1811
    %v1813 = vpop.xlane.xlu0 %1812
    %v1814 = vsub.f32 %v1809, %v1813
    %v1815 = vmul.f32 %v1814, 1.442695
    %v1816 = vpow.pop %v1815
    %v1817 = vsel %vm487, %v1816, 0.0
    %1818 = vadd.xlane.f32.xlu0 %v1817
    %v1819 = vpop.xlane.xlu0 %1818
    %v1820 = vrcp.pop %v1819
    %v1821 = vmul.f32 %v1816, %v1820
    %1823 = vset.pattern.permute.xlu0 0
    %1824 = vperm.xlu0 %1823, %v1821
    %v1825 = vpop.permute.xlu0 %1824
    %v1827 = vmul.f32 %v1825, %v1304
    %1828 = vset.pattern.permute.xlu0 1
    %1829 = vperm.xlu0 %1828, %v1821
    %v1830 = vpop.permute.xlu0 %1829
    %v1832 = vmul.f32 %v1830, %v1404
    %v1833 = vadd.f32 %v1827, %v1832
    %1834 = vset.pattern.permute.xlu0 2
    %1835 = vperm.xlu0 %1834, %v1821
    %v1836 = vpop.permute.xlu0 %1835
    %v1838 = vmul.f32 %v1836, %v1504
    %v1839 = vadd.f32 %v1833, %v1838
    %1840 = vset.pattern.permute.xlu0 3
    %1841 = vperm.xlu0 %1840, %v1821
    %v1842 = vpop.permute.xlu0 %1841
    %v1844 = vmul.f32 %v1842, %v1604
    %v1845 = vadd.f32 %v1839, %v1844
    %1846 = vset.pattern.permute.xlu0 4
    %1847 = vperm.xlu0 %1846, %v1821
    %v1848 = vpop.permute.xlu0 %1847
    %v1850 = vmul.f32 %v1848, %v1704
    %v1851 = vadd.f32 %v1845, %v1850
    %v1853 = vperm.slane %v1810, 0
    %v1855 = vadd.f32 %v1851, %v1853
    %v1856 = vmax.f32 %v1855, 0.0
    %v1857 = vld [vmem:[%s8] sm:$0xff]
    %v1858 = vld [vmem:[%s8 + $0x8] sm:$0xff]
    %v1859 = vld [vmem:[%s8 + $0x10] sm:$0xff]
    %v1860 = vld [vmem:[%s8 + $0x18] sm:$0xff]
    %v1861 = vld [vmem:[%s8 + $0x20] sm:$0xff]
    %v1862 = vld [vmem:[%s8 + $0x28] sm:$0xff]
    %v1863 = vld [vmem:[%s8 + $0x30] sm:$0xff]
    %v1864 = vld [vmem:[%s8 + $0x38] sm:$0xff]
    %v1865 = vld [vmem:[%s8 + $0x40] sm:$0xff]
    %v1866 = vld [vmem:[%s8 + $0x48] sm:$0xff]
    %v1867 = vld [vmem:[%s8 + $0x50] sm:$0xff]
    %v1868 = vld [vmem:[%s8 + $0x58] sm:$0xff]
    %v1869 = vld [vmem:[%s8 + $0x60] sm:$0xff]
    %v1870 = vld [vmem:[%s8 + $0x68] sm:$0xff]
    %v1871 = vld [vmem:[%s8 + $0x70] sm:$0xff]
    %v1872 = vld [vmem:[%s8 + $0x78] sm:$0xff]
    %v1873 = vld [vmem:[%s8 + $0x80] sm:$0xff]
    %v1874 = vld [vmem:[%s8 + $0x88] sm:$0xff]
    %v1875 = vld [vmem:[%s8 + $0x90] sm:$0xff]
    %v1876 = vld [vmem:[%s8 + $0x98] sm:$0xff]
    %v1877 = vld [vmem:[%s8 + $0xa0] sm:$0xff]
    %v1878 = vld [vmem:[%s8 + $0xa8] sm:$0xff]
    %v1879 = vld [vmem:[%s8 + $0xb0] sm:$0xff]
    %v1880 = vld [vmem:[%s8 + $0xb8] sm:$0xff]
    %v1881 = vld [vmem:[%s8 + $0xc0] sm:$0xff]
    %v1882 = vld [vmem:[%s8 + $0xc8] sm:$0xff]
    %v1883 = vld [vmem:[%s8 + $0xd0] sm:$0xff]
    %v1884 = vld [vmem:[%s8 + $0xd8] sm:$0xff]
    %v1885 = vld [vmem:[%s8 + $0xe0] sm:$0xff]
    %v1886 = vld [vmem:[%s8 + $0xe8] sm:$0xff]
    %v1887 = vld [vmem:[%s8 + $0xf0] sm:$0xff]
    %v1888 = vld [vmem:[%s8 + $0xf8] sm:$0xff]
    %v1889 = vld [vmem:[%s9] sm:$0x1]
    %v1891 = vperm.slane %v1889, 0
    %1893 = vmatpush.msra.mxu0 %v1872
    %1894 = vmatpush.msra.mxu0 %v1871
    %1895 = vmatpush.msra.mxu0 %v1870
    %1896 = vmatpush.msra.mxu0 %v1869
    %1897 = vmatpush.msra.mxu0 %v1868
    %1898 = vmatpush.msra.mxu0 %v1867
    %1899 = vmatpush.msra.mxu0 %v1866
    %1900 = vmatpush.msra.mxu0 %v1865
    %1901 = vmatpush.msra.mxu0 %v1864
    %1902 = vmatpush.msra.mxu0 %v1863
    %1903 = vmatpush.msra.mxu0 %v1862
    %1904 = vmatpush.msra.mxu0 %v1861
    %1905 = vmatpush.msra.mxu0 %v1860
    %1906 = vmatpush.msra.mxu0 %v1859
    %1907 = vmatpush.msra.mxu0 %v1858
    %1908 = vmatpush.msra.mxu0 %v1857
    %1909 = vmatmul.f32.gmra.mxu0 %v533
    %v1910 = vpop.f32.mrf.mxu0
    %v1911 = vadd.f32 %v1891, %v1910
    %1912 = vdwg.mxu0
    %1913 = vmatpush.msra.mxu0 %v1888
    %1914 = vmatpush.msra.mxu0 %v1887
    %1915 = vmatpush.msra.mxu0 %v1886
    %1916 = vmatpush.msra.mxu0 %v1885
    %1917 = vmatpush.msra.mxu0 %v1884
    %1918 = vmatpush.msra.mxu0 %v1883
    %1919 = vmatpush.msra.mxu0 %v1882
    %1920 = vmatpush.msra.mxu0 %v1881
    %1921 = vmatpush.msra.mxu0 %v1880
    %1922 = vmatpush.msra.mxu0 %v1879
    %1923 = vmatpush.msra.mxu0 %v1878
    %1924 = vmatpush.msra.mxu0 %v1877
    %1925 = vmatpush.msra.mxu0 %v1876
    %1926 = vmatpush.msra.mxu0 %v1875
    %1927 = vmatpush.msra.mxu0 %v1874
    %1928 = vmatpush.msra.mxu0 %v1873
    %1929 = vmatmul.f32.gmra.mxu0 %v1856
    %v1930 = vpop.f32.mrf.mxu0
    %v1931 = vadd.f32 %v1911, %v1930
    %1932 = vdwg.mxu0
    %v1933 = vmax.f32 %v1931, 0.0
    %v1934 = vld [vmem:[%s10] sm:$0xff]
    %v1935 = vld [vmem:[%s10 + $0x8] sm:$0xff]
    %v1936 = vld [vmem:[%s10 + $0x10] sm:$0xff]
    %v1937 = vld [vmem:[%s10 + $0x18] sm:$0xff]
    %v1938 = vld [vmem:[%s11] sm:$0x1]
    %v1940 = vperm.slane %v1938, 0
    %v1943 = vsel %vm237, %v1933, 0
    %1945 = vmatpush.msra.mxu0 0.0
    %1946 = vmatpush.msra.mxu0 0.0
    %1947 = vmatpush.msra.mxu0 0.0
    %1948 = vmatpush.msra.mxu0 0.0
    %1949 = vmatpush.msra.mxu0 0.0
    %1950 = vmatpush.msra.mxu0 0.0
    %1951 = vmatpush.msra.mxu0 0.0
    %1952 = vmatpush.msra.mxu0 0.0
    %1953 = vmatpush.msra.mxu0 0.0
    %1954 = vmatpush.msra.mxu0 0.0
    %1955 = vmatpush.msra.mxu0 0.0
    %1956 = vmatpush.msra.mxu0 0.0
    %1957 = vmatpush.msra.mxu0 %v1937
    %1958 = vmatpush.msra.mxu0 %v1936
    %1959 = vmatpush.msra.mxu0 %v1935
    %1960 = vmatpush.msra.mxu0 %v1934
    %1961 = vmatmul.f32.gmra.mxu0 %v1943
    %v1962 = vpop.f32.mrf.mxu0
    %v1963 = vadd.f32 %v1940, %v1962
    %1964 = vdwg.mxu0
    %1965 = vst [vmem:[#allocation2] sm:$0xff] %v1963
    // Predicated region
    $region50: #{tpu_custom_call.1} parent=1 // pred_check
      _
    $region51: #{tpu_custom_call.1} parent=1 // pred_check_branch
      %1967 = sbr.rel (0) target = $region53
    $region52: #{tpu_custom_call.1} parent=1 // pred_region
      %1969 = vsyncadd [#allocation3], 0
      %s1971 = sshll.u32 [#allocation2], 4
      %s1972 = int_to_ptr.vmem [resolvable:$true] %s1971
      %s1973 = sshll.u32 %s12, 4
      %s1974 = int_to_ptr.hbm [resolvable:$true] %s1973
      %1976 = dma.vmem_to_hbm [thread:$0]  %s1972, 128, %s1974, [#allocation3]
    $region53: #{tpu_custom_call.1} parent=1 // pred_fallthru
      _
    // Predicated region
    $region54: #{tpu_custom_call.1} parent=1 // pred_check
      _
    $region55: #{tpu_custom_call.1} parent=1 // pred_check_branch
      %1978 = sbr.rel (0) target = $region57
    $region56: #{tpu_custom_call.1} parent=1 // pred_region
      %1980 = dma.done [#allocation3], 128
    $region57: #{tpu_custom_call.1} parent=1 // pred_fallthru
      _
    %1981 = vsyncpa [#allocation3], 1

</llo_original>
